<compile_context>
chip_gen: v5e
topology: v5e:2x2
jax: 0.10.0
libtpu: 0.0.40
codegen_flags: <defaults>
</compile_context>

<pallas_src>
import functools

import jax
import jax.numpy as jnp
from jax.experimental import pallas as pl
from jax.experimental.pallas import tpu as pltpu

EPS = 1e-5
HEAD_OUT_PAD = 128  # lane-dense padding of the 10-way classifier output


def _round_up(x, m):
    return (x + m - 1) // m * m


def _mad_k3(x, w):
    # (T, 3) @ (3, C) as three VPU broadcast multiply-adds (avoids a K=3 MXU matmul).
    return (x[:, 0:1] * w[0:1, :]
            + x[:, 1:2] * w[1:2, :]
            + x[:, 2:3] * w[2:3, :])


def _bn_relu_points(ys):
    # ys: list of B arrays, each (tile_n, C).
    # BatchNorm1d(N): normalize each point over the (batch, channel) axes
    # (training-mode batch statistics), then ReLU.
    inv_n = 1.0 / (len(ys) * ys[0].shape[-1])
    tot = ys[0].sum(axis=-1, keepdims=True)
    for y in ys[1:]:
        tot = tot + y.sum(axis=-1, keepdims=True)
    mean = tot * inv_n
    ds = [y - mean for y in ys]
    var = (ds[0] * ds[0]).sum(axis=-1, keepdims=True)
    for d in ds[1:]:
        var = var + (d * d).sum(axis=-1, keepdims=True)
    inv_std = jax.lax.rsqrt(var * inv_n + EPS)
    return [jnp.maximum(d * inv_std, 0.0) for d in ds]


def _point_stage_kernel(x_ref, w1_ref, w2_ref,
                        fc1w, fc1b, fc2w, fc2b, fc3w, fc3b,
                        fc4w, fc4b, fc5w, fc5b,
                        pmax_ref, *, n_points):
    batch, tile_n, _ = x_ref.shape

    # Validity mask for padded points in the last tile.  Masking to 0 is exact
    # because every value entering the max is post-ReLU (>= 0).
    base = pl.program_id(0) * tile_n
    point_ids = base + jax.lax.broadcasted_iota(jnp.int32, (tile_n, 1), 0)
    valid = point_ids < n_points

    # Hoist all weight/bias loads (resident across the grid).
    w1 = w1_ref[...]
    w2 = w2_ref[...]
    w_1, b_1 = fc1w[...], fc1b[...]
    w_2, b_2 = fc2w[...], fc2b[...]
    w_3, b_3 = fc3w[...], fc3b[...]
    w_4, b_4 = fc4w[...], fc4b[...]
    w_5, b_5 = fc5w[...], fc5b[...]

    xs = [x_ref[b] for b in range(batch)]                              # B x (tile_n, 3)
    xs = [_mad_k3(x, w1) for x in xs]                                  # x @ weight1 (VPU)
    xs = _bn_relu_points([_mad_k3(x, w_1) + b_1 for x in xs])          # fc1 (K=3, VPU)
    xs = _bn_relu_points(
        [jnp.dot(x, w_2, preferred_element_type=jnp.float32) + b_2 for x in xs])   # fc2
    xs = [jnp.dot(x, w2, preferred_element_type=jnp.float32) for x in xs]           # x @ weight2
    xs = _bn_relu_points(
        [jnp.dot(x, w_3, preferred_element_type=jnp.float32) + b_3 for x in xs])   # fc3
    xs = _bn_relu_points(
        [jnp.dot(x, w_4, preferred_element_type=jnp.float32) + b_4 for x in xs])   # fc4
    xs = _bn_relu_points(
        [jnp.dot(x, w_5, preferred_element_type=jnp.float32) + b_5 for x in xs])   # fc5

    # Per-tile partial max over this tile's (valid) points.
    for b, y in enumerate(xs):
        y = jnp.where(valid, y, 0.0)
        pmax_ref[b:b + 1, :] = jnp.max(y, axis=0, keepdims=True)       # (1, 1024)


def _bn_features(z):
    # BatchNorm1d(C) on a (B, C) tensor: per-feature batch statistics.
    m = jnp.mean(z, axis=0, keepdims=True)
    d = z - m
    v = jnp.mean(d * d, axis=0, keepdims=True)
    return d * jax.lax.rsqrt(v + EPS)


def _head_kernel(pmax_ref, fc6w, fc6b, fc7w, fc7b, fc8w, fc8b, out_ref):
    # Reduce per-tile partial maxes -> global max over points, then fc6..fc8.
    g = pmax_ref[0]
    for t in range(1, pmax_ref.shape[0]):
        g = jnp.maximum(g, pmax_ref[t])
    g = jnp.maximum(_bn_features(
        jnp.dot(g, fc6w[...], preferred_element_type=jnp.float32) + fc6b[...]), 0.0)
    g = jnp.maximum(_bn_features(
        jnp.dot(g, fc7w[...], preferred_element_type=jnp.float32) + fc7b[...]), 0.0)
    g = jnp.maximum(
        jnp.dot(g, fc8w[...], preferred_element_type=jnp.float32) + fc8b[...], 0.0)
    out_ref[...] = g                                                   # (B, 128), lane-dense


def pointnet_forward(x, params, *, tile_n=None):
    batch, n_points, _ = x.shape
    if tile_n is None:
        tile_n = min(256, _round_up(n_points, 8))   # modest default; fits v7x's 64 MiB too
    tile_n = _round_up(tile_n, 8)
    n_pad = _round_up(n_points, tile_n)
    if n_pad != n_points:
        x = jnp.pad(x, ((0, 0), (0, n_pad - n_points), (0, 0)))
    num_tiles = n_pad // tile_n

    point_args = [x, params["w1"], params["w2"]]
    for i in range(1, 6):
        point_args.append(params[f"fc{i}_w"])
        point_args.append(params[f"fc{i}_b"])

    def resident_spec(arr):
        nd = arr.ndim
        return pl.BlockSpec(arr.shape, lambda i, _nd=nd: (0,) * _nd)   # fetched once

    point_in_specs = [pl.BlockSpec((batch, tile_n, 3), lambda i: (0, i, 0))]
    point_in_specs += [resident_spec(a) for a in point_args[1:]]
    point_out_spec = pl.BlockSpec((None, batch, 1024), lambda i: (i, 0, 0))

    # Footprint-based VMEM budget (never the full physical VMEM of any gen).
    weight_bytes = sum(int(a.size) * a.dtype.itemsize for a in point_args[1:])
    act_bytes = 4 * batch * tile_n * 4096            # generous working-set estimate
    io_bytes = 2 * (batch * tile_n * 3 + batch * 1024) * 4
    vmem_budget = min(48 * 1024 * 1024,
                      2 * weight_bytes + act_bytes + io_bytes + 16 * 1024 * 1024)

    partial_max = pl.pallas_call(
        functools.partial(_point_stage_kernel, n_points=n_points),
        grid=(num_tiles,),
        in_specs=point_in_specs,
        out_specs=point_out_spec,
        out_shape=jax.ShapeDtypeStruct((num_tiles, batch, 1024), jnp.float32),
        compiler_params=pltpu.CompilerParams(
            dimension_semantics=("parallel",),
            vmem_limit_bytes=int(vmem_budget)),
    )(*point_args)

    # Classifier head: lane-dense padded fc8 output, sliced to 10 outside.
    pad = HEAD_OUT_PAD - params["fc8_w"].shape[1]
    fc8w = jnp.pad(params["fc8_w"], ((0, 0), (0, pad)))
    fc8b = jnp.pad(params["fc8_b"], ((0, 0), (0, pad)))
    head_args = [partial_max,
                 params["fc6_w"], params["fc6_b"],
                 params["fc7_w"], params["fc7_b"],
                 fc8w, fc8b]
    vmem_spec = pl.BlockSpec(memory_space=pltpu.MemorySpace.VMEM)
    head = pl.pallas_call(
        _head_kernel,
        in_specs=[vmem_spec] * len(head_args),
        out_specs=vmem_spec,
        out_shape=jax.ShapeDtypeStruct((batch, HEAD_OUT_PAD), jnp.float32),
    )(*head_args)
    return head[:, :10]


def init_params(key):
    """Deterministic synthetic parameters (torch.nn.Linear-style init)."""
    params = {
        "w1": jnp.eye(3, dtype=jnp.float32),
        "w2": jnp.eye(64, dtype=jnp.float32),
    }
    dims = [(3, 64), (64, 64), (64, 64), (64, 128),
            (128, 1024), (1024, 512), (512, 256), (256, 10)]
    for i, (cin, cout) in enumerate(dims, start=1):
        key, kw, kb = jax.random.split(key, 3)
        bound = 1.0 / (cin ** 0.5)
        w = jax.random.uniform(kw, (cout, cin), jnp.float32, -bound, bound)  # torch (out, in)
        b = jax.random.uniform(kb, (cout,), jnp.float32, -bound, bound)
        params[f"fc{i}_w"] = jnp.transpose(w)          # (Cin, Cout) for the kernel
        params[f"fc{i}_b"] = b.reshape(1, cout)
    return params


def pointnet_ref(x, params):
    """Pure-JAX reference of the PyTorch forward (train-mode BatchNorm)."""
    relu = lambda t: jnp.maximum(t, 0.0)

    def lin(h, i):
        return h @ params[f"fc{i}_w"] + params[f"fc{i}_b"][0]

    def bn_pts(h):  # (B, N, C): per-point stats over (batch, channel)
        m = h.mean(axis=(0, 2), keepdims=True)
        v = ((h - m) ** 2).mean(axis=(0, 2), keepdims=True)
        return (h - m) / jnp.sqrt(v + EPS)

    def bn_feat(h):  # (B, C): per-feature stats over batch
        m = h.mean(axis=0, keepdims=True)
        v = ((h - m) ** 2).mean(axis=0, keepdims=True)
        return (h - m) / jnp.sqrt(v + EPS)

    h = x @ params["w1"]
    h = relu(bn_pts(lin(h, 1)))
    h = relu(bn_pts(lin(h, 2)))
    h = h @ params["w2"]
    h = relu(bn_pts(lin(h, 3)))
    h = relu(bn_pts(lin(h, 4)))
    h = relu(bn_pts(lin(h, 5)))
    g = h.max(axis=1)
    g = relu(bn_feat(lin(g, 6)))
    g = relu(bn_feat(lin(g, 7)))
    g = relu(lin(g, 8))
    return g


if __name__ == "__main__":
    # Small stand-in for the module's (B, 5000, 3) point cloud; N=80 with
    # tile_n=32 exercises multi-tile streaming AND masking of padded points.
    batch, n_points = 4, 80
    key = jax.random.PRNGKey(0)
    kx, kp = jax.random.split(key)
    x = jax.random.normal(kx, (batch, n_points, 3), dtype=jnp.float32)
    params = init_params(kp)

    out = pointnet_forward(x, params, tile_n=32)
    out = jax.block_until_ready(out)

    ref = pointnet_ref(x, params)
    assert out.shape == (batch, 10), out.shape
    assert bool(jnp.all(jnp.isfinite(out)))
    assert bool(jnp.allclose(out, ref, rtol=2e-3, atol=2e-3)), (out, ref)
    print("KERNEL_OK")
</pallas_src>

<mosaic_0001>
module attributes {stable_mosaic.version = 11 : i64} {
  func.func @_point_stage_kernel(%arg0: i32, %arg1: memref<4x32x3xf32, #tpu.memory_space<vmem>>, %arg2: memref<3x3xf32, #tpu.memory_space<vmem>>, %arg3: memref<64x64xf32, #tpu.memory_space<vmem>>, %arg4: memref<3x64xf32, #tpu.memory_space<vmem>>, %arg5: memref<1x64xf32, #tpu.memory_space<vmem>>, %arg6: memref<64x64xf32, #tpu.memory_space<vmem>>, %arg7: memref<1x64xf32, #tpu.memory_space<vmem>>, %arg8: memref<64x64xf32, #tpu.memory_space<vmem>>, %arg9: memref<1x64xf32, #tpu.memory_space<vmem>>, %arg10: memref<64x128xf32, #tpu.memory_space<vmem>>, %arg11: memref<1x128xf32, #tpu.memory_space<vmem>>, %arg12: memref<128x1024xf32, #tpu.memory_space<vmem>>, %arg13: memref<1x1024xf32, #tpu.memory_space<vmem>>, %arg14: memref<1x4x1024xf32, #tpu.memory_space<vmem>>) attributes {dimension_semantics = [#tpu.dimension_semantics<parallel>], iteration_bounds = array<i64: 3>, scalar_prefetch = 0 : i64, scratch_operands = 0 : i64, tpu.core_type = #tpu.core_type<tc>, window_params = [{transform_indices = @transform_0, window_bounds = array<i64: 4, 32, 3>}, {pipeline_mode = #tpu.pipeline_mode<synchronous>, transform_indices = @transform_1, window_bounds = array<i64: 3, 3>}, {pipeline_mode = #tpu.pipeline_mode<synchronous>, transform_indices = @transform_2, window_bounds = array<i64: 64, 64>}, {pipeline_mode = #tpu.pipeline_mode<synchronous>, transform_indices = @transform_3, window_bounds = array<i64: 3, 64>}, {pipeline_mode = #tpu.pipeline_mode<synchronous>, transform_indices = @transform_4, window_bounds = array<i64: 1, 64>}, {pipeline_mode = #tpu.pipeline_mode<synchronous>, transform_indices = @transform_5, window_bounds = array<i64: 64, 64>}, {pipeline_mode = #tpu.pipeline_mode<synchronous>, transform_indices = @transform_6, window_bounds = array<i64: 1, 64>}, {pipeline_mode = #tpu.pipeline_mode<synchronous>, transform_indices = @transform_7, window_bounds = array<i64: 64, 64>}, {pipeline_mode = #tpu.pipeline_mode<synchronous>, transform_indices = @transform_8, window_bounds = array<i64: 1, 64>}, {pipeline_mode = #tpu.pipeline_mode<synchronous>, transform_indices = @transform_9, window_bounds = array<i64: 64, 128>}, {pipeline_mode = #tpu.pipeline_mode<synchronous>, transform_indices = @transform_10, window_bounds = array<i64: 1, 128>}, {pipeline_mode = #tpu.pipeline_mode<synchronous>, transform_indices = @transform_11, window_bounds = array<i64: 128, 1024>}, {pipeline_mode = #tpu.pipeline_mode<synchronous>, transform_indices = @transform_12, window_bounds = array<i64: 1, 1024>}, {transform_indices = @transform_13, window_bounds = array<i64: 1, 4, 1024>}]} {
    %c32_i32 = arith.constant 32 : i32
    %0 = arith.muli %arg0, %c32_i32 : i32
    %1 = tpu.iota {dimensions = array<i32: 0>} : vector<32x1xi32>
    %2 = vector.broadcast %0 : i32 to vector<32x1xi32>
    %3 = arith.addi %2, %1 : vector<32x1xi32>
    %c80_i32 = arith.constant 80 : i32
    %4 = vector.broadcast %c80_i32 : i32 to vector<32x1xi32>
    %5 = arith.cmpi slt, %3, %4 : vector<32x1xi32>
    %c0 = arith.constant 0 : index
    %c0_0 = arith.constant 0 : index
    %6 = vector.load %arg2[%c0, %c0_0] : memref<3x3xf32, #tpu.memory_space<vmem>>, vector<3x3xf32>
    %c0_1 = arith.constant 0 : index
    %c0_2 = arith.constant 0 : index
    %7 = vector.load %arg3[%c0_1, %c0_2] : memref<64x64xf32, #tpu.memory_space<vmem>>, vector<64x64xf32>
    %c0_3 = arith.constant 0 : index
    %c0_4 = arith.constant 0 : index
    %8 = vector.load %arg4[%c0_3, %c0_4] : memref<3x64xf32, #tpu.memory_space<vmem>>, vector<3x64xf32>
    %c0_5 = arith.constant 0 : index
    %c0_6 = arith.constant 0 : index
    %9 = vector.load %arg5[%c0_5, %c0_6] : memref<1x64xf32, #tpu.memory_space<vmem>>, vector<1x64xf32>
    %c0_7 = arith.constant 0 : index
    %c0_8 = arith.constant 0 : index
    %10 = vector.load %arg6[%c0_7, %c0_8] : memref<64x64xf32, #tpu.memory_space<vmem>>, vector<64x64xf32>
    %c0_9 = arith.constant 0 : index
    %c0_10 = arith.constant 0 : index
    %11 = vector.load %arg7[%c0_9, %c0_10] : memref<1x64xf32, #tpu.memory_space<vmem>>, vector<1x64xf32>
    %c0_11 = arith.constant 0 : index
    %c0_12 = arith.constant 0 : index
    %12 = vector.load %arg8[%c0_11, %c0_12] : memref<64x64xf32, #tpu.memory_space<vmem>>, vector<64x64xf32>
    %c0_13 = arith.constant 0 : index
    %c0_14 = arith.constant 0 : index
    %13 = vector.load %arg9[%c0_13, %c0_14] : memref<1x64xf32, #tpu.memory_space<vmem>>, vector<1x64xf32>
    %c0_15 = arith.constant 0 : index
    %c0_16 = arith.constant 0 : index
    %14 = vector.load %arg10[%c0_15, %c0_16] : memref<64x128xf32, #tpu.memory_space<vmem>>, vector<64x128xf32>
    %c0_17 = arith.constant 0 : index
    %c0_18 = arith.constant 0 : index
    %15 = vector.load %arg11[%c0_17, %c0_18] : memref<1x128xf32, #tpu.memory_space<vmem>>, vector<1x128xf32>
    %c0_19 = arith.constant 0 : index
    %c0_20 = arith.constant 0 : index
    %16 = vector.load %arg12[%c0_19, %c0_20] : memref<128x1024xf32, #tpu.memory_space<vmem>>, vector<128x1024xf32>
    %c0_21 = arith.constant 0 : index
    %c0_22 = arith.constant 0 : index
    %17 = vector.load %arg13[%c0_21, %c0_22] : memref<1x1024xf32, #tpu.memory_space<vmem>>, vector<1x1024xf32>
    %c0_23 = arith.constant 0 : index
    %c0_24 = arith.constant 0 : index
    %c0_25 = arith.constant 0 : index
    %18 = vector.load %arg1[%c0_23, %c0_24, %c0_25] : memref<4x32x3xf32, #tpu.memory_space<vmem>>, vector<1x32x3xf32>
    %19 = vector.shape_cast %18 : vector<1x32x3xf32> to vector<32x3xf32>
    %c1 = arith.constant 1 : index
    %c0_26 = arith.constant 0 : index
    %c0_27 = arith.constant 0 : index
    %20 = vector.load %arg1[%c1, %c0_26, %c0_27] : memref<4x32x3xf32, #tpu.memory_space<vmem>>, vector<1x32x3xf32>
    %21 = vector.shape_cast %20 : vector<1x32x3xf32> to vector<32x3xf32>
    %c2 = arith.constant 2 : index
    %c0_28 = arith.constant 0 : index
    %c0_29 = arith.constant 0 : index
    %22 = vector.load %arg1[%c2, %c0_28, %c0_29] : memref<4x32x3xf32, #tpu.memory_space<vmem>>, vector<1x32x3xf32>
    %23 = vector.shape_cast %22 : vector<1x32x3xf32> to vector<32x3xf32>
    %c3 = arith.constant 3 : index
    %c0_30 = arith.constant 0 : index
    %c0_31 = arith.constant 0 : index
    %24 = vector.load %arg1[%c3, %c0_30, %c0_31] : memref<4x32x3xf32, #tpu.memory_space<vmem>>, vector<1x32x3xf32>
    %25 = vector.shape_cast %24 : vector<1x32x3xf32> to vector<32x3xf32>
    %26 = vector.extract_strided_slice %19 {offsets = [0, 0], sizes = [32, 1], strides = [1, 1]} : vector<32x3xf32> to vector<32x1xf32>
    %27 = vector.extract_strided_slice %6 {offsets = [0, 0], sizes = [1, 3], strides = [1, 1]} : vector<3x3xf32> to vector<1x3xf32>
    %28 = vector.broadcast %26 : vector<32x1xf32> to vector<32x3xf32>
    %29 = vector.broadcast %27 : vector<1x3xf32> to vector<32x3xf32>
    %30 = arith.mulf %28, %29 : vector<32x3xf32>
    %31 = vector.extract_strided_slice %19 {offsets = [0, 1], sizes = [32, 1], strides = [1, 1]} : vector<32x3xf32> to vector<32x1xf32>
    %32 = vector.extract_strided_slice %6 {offsets = [1, 0], sizes = [1, 3], strides = [1, 1]} : vector<3x3xf32> to vector<1x3xf32>
    %33 = vector.broadcast %31 : vector<32x1xf32> to vector<32x3xf32>
    %34 = vector.broadcast %32 : vector<1x3xf32> to vector<32x3xf32>
    %35 = arith.mulf %33, %34 : vector<32x3xf32>
    %36 = arith.addf %30, %35 : vector<32x3xf32>
    %37 = vector.extract_strided_slice %19 {offsets = [0, 2], sizes = [32, 1], strides = [1, 1]} : vector<32x3xf32> to vector<32x1xf32>
    %38 = vector.extract_strided_slice %6 {offsets = [2, 0], sizes = [1, 3], strides = [1, 1]} : vector<3x3xf32> to vector<1x3xf32>
    %39 = vector.broadcast %37 : vector<32x1xf32> to vector<32x3xf32>
    %40 = vector.broadcast %38 : vector<1x3xf32> to vector<32x3xf32>
    %41 = arith.mulf %39, %40 : vector<32x3xf32>
    %42 = arith.addf %36, %41 : vector<32x3xf32>
    %43 = vector.extract_strided_slice %21 {offsets = [0, 0], sizes = [32, 1], strides = [1, 1]} : vector<32x3xf32> to vector<32x1xf32>
    %44 = vector.extract_strided_slice %6 {offsets = [0, 0], sizes = [1, 3], strides = [1, 1]} : vector<3x3xf32> to vector<1x3xf32>
    %45 = vector.broadcast %43 : vector<32x1xf32> to vector<32x3xf32>
    %46 = vector.broadcast %44 : vector<1x3xf32> to vector<32x3xf32>
    %47 = arith.mulf %45, %46 : vector<32x3xf32>
    %48 = vector.extract_strided_slice %21 {offsets = [0, 1], sizes = [32, 1], strides = [1, 1]} : vector<32x3xf32> to vector<32x1xf32>
    %49 = vector.extract_strided_slice %6 {offsets = [1, 0], sizes = [1, 3], strides = [1, 1]} : vector<3x3xf32> to vector<1x3xf32>
    %50 = vector.broadcast %48 : vector<32x1xf32> to vector<32x3xf32>
    %51 = vector.broadcast %49 : vector<1x3xf32> to vector<32x3xf32>
    %52 = arith.mulf %50, %51 : vector<32x3xf32>
    %53 = arith.addf %47, %52 : vector<32x3xf32>
    %54 = vector.extract_strided_slice %21 {offsets = [0, 2], sizes = [32, 1], strides = [1, 1]} : vector<32x3xf32> to vector<32x1xf32>
    %55 = vector.extract_strided_slice %6 {offsets = [2, 0], sizes = [1, 3], strides = [1, 1]} : vector<3x3xf32> to vector<1x3xf32>
    %56 = vector.broadcast %54 : vector<32x1xf32> to vector<32x3xf32>
    %57 = vector.broadcast %55 : vector<1x3xf32> to vector<32x3xf32>
    %58 = arith.mulf %56, %57 : vector<32x3xf32>
    %59 = arith.addf %53, %58 : vector<32x3xf32>
    %60 = vector.extract_strided_slice %23 {offsets = [0, 0], sizes = [32, 1], strides = [1, 1]} : vector<32x3xf32> to vector<32x1xf32>
    %61 = vector.extract_strided_slice %6 {offsets = [0, 0], sizes = [1, 3], strides = [1, 1]} : vector<3x3xf32> to vector<1x3xf32>
    %62 = vector.broadcast %60 : vector<32x1xf32> to vector<32x3xf32>
    %63 = vector.broadcast %61 : vector<1x3xf32> to vector<32x3xf32>
    %64 = arith.mulf %62, %63 : vector<32x3xf32>
    %65 = vector.extract_strided_slice %23 {offsets = [0, 1], sizes = [32, 1], strides = [1, 1]} : vector<32x3xf32> to vector<32x1xf32>
    %66 = vector.extract_strided_slice %6 {offsets = [1, 0], sizes = [1, 3], strides = [1, 1]} : vector<3x3xf32> to vector<1x3xf32>
    %67 = vector.broadcast %65 : vector<32x1xf32> to vector<32x3xf32>
    %68 = vector.broadcast %66 : vector<1x3xf32> to vector<32x3xf32>
    %69 = arith.mulf %67, %68 : vector<32x3xf32>
    %70 = arith.addf %64, %69 : vector<32x3xf32>
    %71 = vector.extract_strided_slice %23 {offsets = [0, 2], sizes = [32, 1], strides = [1, 1]} : vector<32x3xf32> to vector<32x1xf32>
    %72 = vector.extract_strided_slice %6 {offsets = [2, 0], sizes = [1, 3], strides = [1, 1]} : vector<3x3xf32> to vector<1x3xf32>
    %73 = vector.broadcast %71 : vector<32x1xf32> to vector<32x3xf32>
    %74 = vector.broadcast %72 : vector<1x3xf32> to vector<32x3xf32>
    %75 = arith.mulf %73, %74 : vector<32x3xf32>
    %76 = arith.addf %70, %75 : vector<32x3xf32>
    %77 = vector.extract_strided_slice %25 {offsets = [0, 0], sizes = [32, 1], strides = [1, 1]} : vector<32x3xf32> to vector<32x1xf32>
    %78 = vector.extract_strided_slice %6 {offsets = [0, 0], sizes = [1, 3], strides = [1, 1]} : vector<3x3xf32> to vector<1x3xf32>
    %79 = vector.broadcast %77 : vector<32x1xf32> to vector<32x3xf32>
    %80 = vector.broadcast %78 : vector<1x3xf32> to vector<32x3xf32>
    %81 = arith.mulf %79, %80 : vector<32x3xf32>
    %82 = vector.extract_strided_slice %25 {offsets = [0, 1], sizes = [32, 1], strides = [1, 1]} : vector<32x3xf32> to vector<32x1xf32>
    %83 = vector.extract_strided_slice %6 {offsets = [1, 0], sizes = [1, 3], strides = [1, 1]} : vector<3x3xf32> to vector<1x3xf32>
    %84 = vector.broadcast %82 : vector<32x1xf32> to vector<32x3xf32>
    %85 = vector.broadcast %83 : vector<1x3xf32> to vector<32x3xf32>
    %86 = arith.mulf %84, %85 : vector<32x3xf32>
    %87 = arith.addf %81, %86 : vector<32x3xf32>
    %88 = vector.extract_strided_slice %25 {offsets = [0, 2], sizes = [32, 1], strides = [1, 1]} : vector<32x3xf32> to vector<32x1xf32>
    %89 = vector.extract_strided_slice %6 {offsets = [2, 0], sizes = [1, 3], strides = [1, 1]} : vector<3x3xf32> to vector<1x3xf32>
    %90 = vector.broadcast %88 : vector<32x1xf32> to vector<32x3xf32>
    %91 = vector.broadcast %89 : vector<1x3xf32> to vector<32x3xf32>
    %92 = arith.mulf %90, %91 : vector<32x3xf32>
    %93 = arith.addf %87, %92 : vector<32x3xf32>
    %94 = vector.extract_strided_slice %42 {offsets = [0, 0], sizes = [32, 1], strides = [1, 1]} : vector<32x3xf32> to vector<32x1xf32>
    %95 = vector.extract_strided_slice %8 {offsets = [0, 0], sizes = [1, 64], strides = [1, 1]} : vector<3x64xf32> to vector<1x64xf32>
    %96 = vector.broadcast %94 : vector<32x1xf32> to vector<32x64xf32>
    %97 = vector.broadcast %95 : vector<1x64xf32> to vector<32x64xf32>
    %98 = arith.mulf %96, %97 : vector<32x64xf32>
    %99 = vector.extract_strided_slice %42 {offsets = [0, 1], sizes = [32, 1], strides = [1, 1]} : vector<32x3xf32> to vector<32x1xf32>
    %100 = vector.extract_strided_slice %8 {offsets = [1, 0], sizes = [1, 64], strides = [1, 1]} : vector<3x64xf32> to vector<1x64xf32>
    %101 = vector.broadcast %99 : vector<32x1xf32> to vector<32x64xf32>
    %102 = vector.broadcast %100 : vector<1x64xf32> to vector<32x64xf32>
    %103 = arith.mulf %101, %102 : vector<32x64xf32>
    %104 = arith.addf %98, %103 : vector<32x64xf32>
    %105 = vector.extract_strided_slice %42 {offsets = [0, 2], sizes = [32, 1], strides = [1, 1]} : vector<32x3xf32> to vector<32x1xf32>
    %106 = vector.extract_strided_slice %8 {offsets = [2, 0], sizes = [1, 64], strides = [1, 1]} : vector<3x64xf32> to vector<1x64xf32>
    %107 = vector.broadcast %105 : vector<32x1xf32> to vector<32x64xf32>
    %108 = vector.broadcast %106 : vector<1x64xf32> to vector<32x64xf32>
    %109 = arith.mulf %107, %108 : vector<32x64xf32>
    %110 = arith.addf %104, %109 : vector<32x64xf32>
    %111 = vector.broadcast %9 : vector<1x64xf32> to vector<32x64xf32>
    %112 = arith.addf %110, %111 : vector<32x64xf32>
    %113 = vector.extract_strided_slice %59 {offsets = [0, 0], sizes = [32, 1], strides = [1, 1]} : vector<32x3xf32> to vector<32x1xf32>
    %114 = vector.extract_strided_slice %8 {offsets = [0, 0], sizes = [1, 64], strides = [1, 1]} : vector<3x64xf32> to vector<1x64xf32>
    %115 = vector.broadcast %113 : vector<32x1xf32> to vector<32x64xf32>
    %116 = vector.broadcast %114 : vector<1x64xf32> to vector<32x64xf32>
    %117 = arith.mulf %115, %116 : vector<32x64xf32>
    %118 = vector.extract_strided_slice %59 {offsets = [0, 1], sizes = [32, 1], strides = [1, 1]} : vector<32x3xf32> to vector<32x1xf32>
    %119 = vector.extract_strided_slice %8 {offsets = [1, 0], sizes = [1, 64], strides = [1, 1]} : vector<3x64xf32> to vector<1x64xf32>
    %120 = vector.broadcast %118 : vector<32x1xf32> to vector<32x64xf32>
    %121 = vector.broadcast %119 : vector<1x64xf32> to vector<32x64xf32>
    %122 = arith.mulf %120, %121 : vector<32x64xf32>
    %123 = arith.addf %117, %122 : vector<32x64xf32>
    %124 = vector.extract_strided_slice %59 {offsets = [0, 2], sizes = [32, 1], strides = [1, 1]} : vector<32x3xf32> to vector<32x1xf32>
    %125 = vector.extract_strided_slice %8 {offsets = [2, 0], sizes = [1, 64], strides = [1, 1]} : vector<3x64xf32> to vector<1x64xf32>
    %126 = vector.broadcast %124 : vector<32x1xf32> to vector<32x64xf32>
    %127 = vector.broadcast %125 : vector<1x64xf32> to vector<32x64xf32>
    %128 = arith.mulf %126, %127 : vector<32x64xf32>
    %129 = arith.addf %123, %128 : vector<32x64xf32>
    %130 = vector.broadcast %9 : vector<1x64xf32> to vector<32x64xf32>
    %131 = arith.addf %129, %130 : vector<32x64xf32>
    %132 = vector.extract_strided_slice %76 {offsets = [0, 0], sizes = [32, 1], strides = [1, 1]} : vector<32x3xf32> to vector<32x1xf32>
    %133 = vector.extract_strided_slice %8 {offsets = [0, 0], sizes = [1, 64], strides = [1, 1]} : vector<3x64xf32> to vector<1x64xf32>
    %134 = vector.broadcast %132 : vector<32x1xf32> to vector<32x64xf32>
    %135 = vector.broadcast %133 : vector<1x64xf32> to vector<32x64xf32>
    %136 = arith.mulf %134, %135 : vector<32x64xf32>
    %137 = vector.extract_strided_slice %76 {offsets = [0, 1], sizes = [32, 1], strides = [1, 1]} : vector<32x3xf32> to vector<32x1xf32>
    %138 = vector.extract_strided_slice %8 {offsets = [1, 0], sizes = [1, 64], strides = [1, 1]} : vector<3x64xf32> to vector<1x64xf32>
    %139 = vector.broadcast %137 : vector<32x1xf32> to vector<32x64xf32>
    %140 = vector.broadcast %138 : vector<1x64xf32> to vector<32x64xf32>
    %141 = arith.mulf %139, %140 : vector<32x64xf32>
    %142 = arith.addf %136, %141 : vector<32x64xf32>
    %143 = vector.extract_strided_slice %76 {offsets = [0, 2], sizes = [32, 1], strides = [1, 1]} : vector<32x3xf32> to vector<32x1xf32>
    %144 = vector.extract_strided_slice %8 {offsets = [2, 0], sizes = [1, 64], strides = [1, 1]} : vector<3x64xf32> to vector<1x64xf32>
    %145 = vector.broadcast %143 : vector<32x1xf32> to vector<32x64xf32>
    %146 = vector.broadcast %144 : vector<1x64xf32> to vector<32x64xf32>
    %147 = arith.mulf %145, %146 : vector<32x64xf32>
    %148 = arith.addf %142, %147 : vector<32x64xf32>
    %149 = vector.broadcast %9 : vector<1x64xf32> to vector<32x64xf32>
    %150 = arith.addf %148, %149 : vector<32x64xf32>
    %151 = vector.extract_strided_slice %93 {offsets = [0, 0], sizes = [32, 1], strides = [1, 1]} : vector<32x3xf32> to vector<32x1xf32>
    %152 = vector.extract_strided_slice %8 {offsets = [0, 0], sizes = [1, 64], strides = [1, 1]} : vector<3x64xf32> to vector<1x64xf32>
    %153 = vector.broadcast %151 : vector<32x1xf32> to vector<32x64xf32>
    %154 = vector.broadcast %152 : vector<1x64xf32> to vector<32x64xf32>
    %155 = arith.mulf %153, %154 : vector<32x64xf32>
    %156 = vector.extract_strided_slice %93 {offsets = [0, 1], sizes = [32, 1], strides = [1, 1]} : vector<32x3xf32> to vector<32x1xf32>
    %157 = vector.extract_strided_slice %8 {offsets = [1, 0], sizes = [1, 64], strides = [1, 1]} : vector<3x64xf32> to vector<1x64xf32>
    %158 = vector.broadcast %156 : vector<32x1xf32> to vector<32x64xf32>
    %159 = vector.broadcast %157 : vector<1x64xf32> to vector<32x64xf32>
    %160 = arith.mulf %158, %159 : vector<32x64xf32>
    %161 = arith.addf %155, %160 : vector<32x64xf32>
    %162 = vector.extract_strided_slice %93 {offsets = [0, 2], sizes = [32, 1], strides = [1, 1]} : vector<32x3xf32> to vector<32x1xf32>
    %163 = vector.extract_strided_slice %8 {offsets = [2, 0], sizes = [1, 64], strides = [1, 1]} : vector<3x64xf32> to vector<1x64xf32>
    %164 = vector.broadcast %162 : vector<32x1xf32> to vector<32x64xf32>
    %165 = vector.broadcast %163 : vector<1x64xf32> to vector<32x64xf32>
    %166 = arith.mulf %164, %165 : vector<32x64xf32>
    %167 = arith.addf %161, %166 : vector<32x64xf32>
    %168 = vector.broadcast %9 : vector<1x64xf32> to vector<32x64xf32>
    %169 = arith.addf %167, %168 : vector<32x64xf32>
    %cst = arith.constant dense<0.000000e+00> : vector<32xf32>
    %170 = vector.multi_reduction <add>, %112, %cst [1] : vector<32x64xf32> to vector<32xf32>
    %171 = vector.shape_cast %170 : vector<32xf32> to vector<32x1xf32>
    %cst_32 = arith.constant dense<0.000000e+00> : vector<32xf32>
    %172 = vector.multi_reduction <add>, %131, %cst_32 [1] : vector<32x64xf32> to vector<32xf32>
    %173 = vector.shape_cast %172 : vector<32xf32> to vector<32x1xf32>
    %174 = arith.addf %171, %173 : vector<32x1xf32>
    %cst_33 = arith.constant dense<0.000000e+00> : vector<32xf32>
    %175 = vector.multi_reduction <add>, %150, %cst_33 [1] : vector<32x64xf32> to vector<32xf32>
    %176 = vector.shape_cast %175 : vector<32xf32> to vector<32x1xf32>
    %177 = arith.addf %174, %176 : vector<32x1xf32>
    %cst_34 = arith.constant dense<0.000000e+00> : vector<32xf32>
    %178 = vector.multi_reduction <add>, %169, %cst_34 [1] : vector<32x64xf32> to vector<32xf32>
    %179 = vector.shape_cast %178 : vector<32xf32> to vector<32x1xf32>
    %180 = arith.addf %177, %179 : vector<32x1xf32>
    %cst_35 = arith.constant 3.906250e-03 : f32
    %181 = vector.broadcast %cst_35 : f32 to vector<32x1xf32>
    %182 = arith.mulf %180, %181 : vector<32x1xf32>
    %183 = vector.broadcast %182 : vector<32x1xf32> to vector<32x64xf32>
    %184 = arith.subf %112, %183 : vector<32x64xf32>
    %185 = vector.broadcast %182 : vector<32x1xf32> to vector<32x64xf32>
    %186 = arith.subf %131, %185 : vector<32x64xf32>
    %187 = vector.broadcast %182 : vector<32x1xf32> to vector<32x64xf32>
    %188 = arith.subf %150, %187 : vector<32x64xf32>
    %189 = vector.broadcast %182 : vector<32x1xf32> to vector<32x64xf32>
    %190 = arith.subf %169, %189 : vector<32x64xf32>
    %191 = arith.mulf %184, %184 : vector<32x64xf32>
    %cst_36 = arith.constant dense<0.000000e+00> : vector<32xf32>
    %192 = vector.multi_reduction <add>, %191, %cst_36 [1] : vector<32x64xf32> to vector<32xf32>
    %193 = vector.shape_cast %192 : vector<32xf32> to vector<32x1xf32>
    %194 = arith.mulf %186, %186 : vector<32x64xf32>
    %cst_37 = arith.constant dense<0.000000e+00> : vector<32xf32>
    %195 = vector.multi_reduction <add>, %194, %cst_37 [1] : vector<32x64xf32> to vector<32xf32>
    %196 = vector.shape_cast %195 : vector<32xf32> to vector<32x1xf32>
    %197 = arith.addf %193, %196 : vector<32x1xf32>
    %198 = arith.mulf %188, %188 : vector<32x64xf32>
    %cst_38 = arith.constant dense<0.000000e+00> : vector<32xf32>
    %199 = vector.multi_reduction <add>, %198, %cst_38 [1] : vector<32x64xf32> to vector<32xf32>
    %200 = vector.shape_cast %199 : vector<32xf32> to vector<32x1xf32>
    %201 = arith.addf %197, %200 : vector<32x1xf32>
    %202 = arith.mulf %190, %190 : vector<32x64xf32>
    %cst_39 = arith.constant dense<0.000000e+00> : vector<32xf32>
    %203 = vector.multi_reduction <add>, %202, %cst_39 [1] : vector<32x64xf32> to vector<32xf32>
    %204 = vector.shape_cast %203 : vector<32xf32> to vector<32x1xf32>
    %205 = arith.addf %201, %204 : vector<32x1xf32>
    %cst_40 = arith.constant 3.906250e-03 : f32
    %206 = vector.broadcast %cst_40 : f32 to vector<32x1xf32>
    %207 = arith.mulf %205, %206 : vector<32x1xf32>
    %cst_41 = arith.constant 9.99999974E-6 : f32
    %208 = vector.broadcast %cst_41 : f32 to vector<32x1xf32>
    %209 = arith.addf %207, %208 : vector<32x1xf32>
    %210 = math.rsqrt %209 : vector<32x1xf32>
    %211 = vector.broadcast %210 : vector<32x1xf32> to vector<32x64xf32>
    %212 = arith.mulf %184, %211 : vector<32x64xf32>
    %cst_42 = arith.constant 0.000000e+00 : f32
    %213 = vector.broadcast %cst_42 : f32 to vector<32x64xf32>
    %214 = arith.maximumf %212, %213 : vector<32x64xf32>
    %215 = vector.broadcast %210 : vector<32x1xf32> to vector<32x64xf32>
    %216 = arith.mulf %186, %215 : vector<32x64xf32>
    %cst_43 = arith.constant 0.000000e+00 : f32
    %217 = vector.broadcast %cst_43 : f32 to vector<32x64xf32>
    %218 = arith.maximumf %216, %217 : vector<32x64xf32>
    %219 = vector.broadcast %210 : vector<32x1xf32> to vector<32x64xf32>
    %220 = arith.mulf %188, %219 : vector<32x64xf32>
    %cst_44 = arith.constant 0.000000e+00 : f32
    %221 = vector.broadcast %cst_44 : f32 to vector<32x64xf32>
    %222 = arith.maximumf %220, %221 : vector<32x64xf32>
    %223 = vector.broadcast %210 : vector<32x1xf32> to vector<32x64xf32>
    %224 = arith.mulf %190, %223 : vector<32x64xf32>
    %cst_45 = arith.constant 0.000000e+00 : f32
    %225 = vector.broadcast %cst_45 : f32 to vector<32x64xf32>
    %226 = arith.maximumf %224, %225 : vector<32x64xf32>
    %cst_46 = arith.constant dense<0.000000e+00> : vector<32x64xf32>
    %227 = tpu.matmul %214, %10, %cst_46 {dimension_numbers = #tpu.dot_dimension_numbers<[1], [0], [0], [1], [0, 0, 1, 1], [], []>} : vector<32x64xf32>, vector<64x64xf32>, vector<32x64xf32> -> vector<32x64xf32>
    %228 = vector.broadcast %11 : vector<1x64xf32> to vector<32x64xf32>
    %229 = arith.addf %227, %228 : vector<32x64xf32>
    %cst_47 = arith.constant dense<0.000000e+00> : vector<32x64xf32>
    %230 = tpu.matmul %218, %10, %cst_47 {dimension_numbers = #tpu.dot_dimension_numbers<[1], [0], [0], [1], [0, 0, 1, 1], [], []>} : vector<32x64xf32>, vector<64x64xf32>, vector<32x64xf32> -> vector<32x64xf32>
    %231 = vector.broadcast %11 : vector<1x64xf32> to vector<32x64xf32>
    %232 = arith.addf %230, %231 : vector<32x64xf32>
    %cst_48 = arith.constant dense<0.000000e+00> : vector<32x64xf32>
    %233 = tpu.matmul %222, %10, %cst_48 {dimension_numbers = #tpu.dot_dimension_numbers<[1], [0], [0], [1], [0, 0, 1, 1], [], []>} : vector<32x64xf32>, vector<64x64xf32>, vector<32x64xf32> -> vector<32x64xf32>
    %234 = vector.broadcast %11 : vector<1x64xf32> to vector<32x64xf32>
    %235 = arith.addf %233, %234 : vector<32x64xf32>
    %cst_49 = arith.constant dense<0.000000e+00> : vector<32x64xf32>
    %236 = tpu.matmul %226, %10, %cst_49 {dimension_numbers = #tpu.dot_dimension_numbers<[1], [0], [0], [1], [0, 0, 1, 1], [], []>} : vector<32x64xf32>, vector<64x64xf32>, vector<32x64xf32> -> vector<32x64xf32>
    %237 = vector.broadcast %11 : vector<1x64xf32> to vector<32x64xf32>
    %238 = arith.addf %236, %237 : vector<32x64xf32>
    %cst_50 = arith.constant dense<0.000000e+00> : vector<32xf32>
    %239 = vector.multi_reduction <add>, %229, %cst_50 [1] : vector<32x64xf32> to vector<32xf32>
    %240 = vector.shape_cast %239 : vector<32xf32> to vector<32x1xf32>
    %cst_51 = arith.constant dense<0.000000e+00> : vector<32xf32>
    %241 = vector.multi_reduction <add>, %232, %cst_51 [1] : vector<32x64xf32> to vector<32xf32>
    %242 = vector.shape_cast %241 : vector<32xf32> to vector<32x1xf32>
    %243 = arith.addf %240, %242 : vector<32x1xf32>
    %cst_52 = arith.constant dense<0.000000e+00> : vector<32xf32>
    %244 = vector.multi_reduction <add>, %235, %cst_52 [1] : vector<32x64xf32> to vector<32xf32>
    %245 = vector.shape_cast %244 : vector<32xf32> to vector<32x1xf32>
    %246 = arith.addf %243, %245 : vector<32x1xf32>
    %cst_53 = arith.constant dense<0.000000e+00> : vector<32xf32>
    %247 = vector.multi_reduction <add>, %238, %cst_53 [1] : vector<32x64xf32> to vector<32xf32>
    %248 = vector.shape_cast %247 : vector<32xf32> to vector<32x1xf32>
    %249 = arith.addf %246, %248 : vector<32x1xf32>
    %cst_54 = arith.constant 3.906250e-03 : f32
    %250 = vector.broadcast %cst_54 : f32 to vector<32x1xf32>
    %251 = arith.mulf %249, %250 : vector<32x1xf32>
    %252 = vector.broadcast %251 : vector<32x1xf32> to vector<32x64xf32>
    %253 = arith.subf %229, %252 : vector<32x64xf32>
    %254 = vector.broadcast %251 : vector<32x1xf32> to vector<32x64xf32>
    %255 = arith.subf %232, %254 : vector<32x64xf32>
    %256 = vector.broadcast %251 : vector<32x1xf32> to vector<32x64xf32>
    %257 = arith.subf %235, %256 : vector<32x64xf32>
    %258 = vector.broadcast %251 : vector<32x1xf32> to vector<32x64xf32>
    %259 = arith.subf %238, %258 : vector<32x64xf32>
    %260 = arith.mulf %253, %253 : vector<32x64xf32>
    %cst_55 = arith.constant dense<0.000000e+00> : vector<32xf32>
    %261 = vector.multi_reduction <add>, %260, %cst_55 [1] : vector<32x64xf32> to vector<32xf32>
    %262 = vector.shape_cast %261 : vector<32xf32> to vector<32x1xf32>
    %263 = arith.mulf %255, %255 : vector<32x64xf32>
    %cst_56 = arith.constant dense<0.000000e+00> : vector<32xf32>
    %264 = vector.multi_reduction <add>, %263, %cst_56 [1] : vector<32x64xf32> to vector<32xf32>
    %265 = vector.shape_cast %264 : vector<32xf32> to vector<32x1xf32>
    %266 = arith.addf %262, %265 : vector<32x1xf32>
    %267 = arith.mulf %257, %257 : vector<32x64xf32>
    %cst_57 = arith.constant dense<0.000000e+00> : vector<32xf32>
    %268 = vector.multi_reduction <add>, %267, %cst_57 [1] : vector<32x64xf32> to vector<32xf32>
    %269 = vector.shape_cast %268 : vector<32xf32> to vector<32x1xf32>
    %270 = arith.addf %266, %269 : vector<32x1xf32>
    %271 = arith.mulf %259, %259 : vector<32x64xf32>
    %cst_58 = arith.constant dense<0.000000e+00> : vector<32xf32>
    %272 = vector.multi_reduction <add>, %271, %cst_58 [1] : vector<32x64xf32> to vector<32xf32>
    %273 = vector.shape_cast %272 : vector<32xf32> to vector<32x1xf32>
    %274 = arith.addf %270, %273 : vector<32x1xf32>
    %cst_59 = arith.constant 3.906250e-03 : f32
    %275 = vector.broadcast %cst_59 : f32 to vector<32x1xf32>
    %276 = arith.mulf %274, %275 : vector<32x1xf32>
    %cst_60 = arith.constant 9.99999974E-6 : f32
    %277 = vector.broadcast %cst_60 : f32 to vector<32x1xf32>
    %278 = arith.addf %276, %277 : vector<32x1xf32>
    %279 = math.rsqrt %278 : vector<32x1xf32>
    %280 = vector.broadcast %279 : vector<32x1xf32> to vector<32x64xf32>
    %281 = arith.mulf %253, %280 : vector<32x64xf32>
    %cst_61 = arith.constant 0.000000e+00 : f32
    %282 = vector.broadcast %cst_61 : f32 to vector<32x64xf32>
    %283 = arith.maximumf %281, %282 : vector<32x64xf32>
    %284 = vector.broadcast %279 : vector<32x1xf32> to vector<32x64xf32>
    %285 = arith.mulf %255, %284 : vector<32x64xf32>
    %cst_62 = arith.constant 0.000000e+00 : f32
    %286 = vector.broadcast %cst_62 : f32 to vector<32x64xf32>
    %287 = arith.maximumf %285, %286 : vector<32x64xf32>
    %288 = vector.broadcast %279 : vector<32x1xf32> to vector<32x64xf32>
    %289 = arith.mulf %257, %288 : vector<32x64xf32>
    %cst_63 = arith.constant 0.000000e+00 : f32
    %290 = vector.broadcast %cst_63 : f32 to vector<32x64xf32>
    %291 = arith.maximumf %289, %290 : vector<32x64xf32>
    %292 = vector.broadcast %279 : vector<32x1xf32> to vector<32x64xf32>
    %293 = arith.mulf %259, %292 : vector<32x64xf32>
    %cst_64 = arith.constant 0.000000e+00 : f32
    %294 = vector.broadcast %cst_64 : f32 to vector<32x64xf32>
    %295 = arith.maximumf %293, %294 : vector<32x64xf32>
    %cst_65 = arith.constant dense<0.000000e+00> : vector<32x64xf32>
    %296 = tpu.matmul %283, %7, %cst_65 {dimension_numbers = #tpu.dot_dimension_numbers<[1], [0], [0], [1], [0, 0, 1, 1], [], []>} : vector<32x64xf32>, vector<64x64xf32>, vector<32x64xf32> -> vector<32x64xf32>
    %cst_66 = arith.constant dense<0.000000e+00> : vector<32x64xf32>
    %297 = tpu.matmul %287, %7, %cst_66 {dimension_numbers = #tpu.dot_dimension_numbers<[1], [0], [0], [1], [0, 0, 1, 1], [], []>} : vector<32x64xf32>, vector<64x64xf32>, vector<32x64xf32> -> vector<32x64xf32>
    %cst_67 = arith.constant dense<0.000000e+00> : vector<32x64xf32>
    %298 = tpu.matmul %291, %7, %cst_67 {dimension_numbers = #tpu.dot_dimension_numbers<[1], [0], [0], [1], [0, 0, 1, 1], [], []>} : vector<32x64xf32>, vector<64x64xf32>, vector<32x64xf32> -> vector<32x64xf32>
    %cst_68 = arith.constant dense<0.000000e+00> : vector<32x64xf32>
    %299 = tpu.matmul %295, %7, %cst_68 {dimension_numbers = #tpu.dot_dimension_numbers<[1], [0], [0], [1], [0, 0, 1, 1], [], []>} : vector<32x64xf32>, vector<64x64xf32>, vector<32x64xf32> -> vector<32x64xf32>
    %cst_69 = arith.constant dense<0.000000e+00> : vector<32x64xf32>
    %300 = tpu.matmul %296, %12, %cst_69 {dimension_numbers = #tpu.dot_dimension_numbers<[1], [0], [0], [1], [0, 0, 1, 1], [], []>} : vector<32x64xf32>, vector<64x64xf32>, vector<32x64xf32> -> vector<32x64xf32>
    %301 = vector.broadcast %13 : vector<1x64xf32> to vector<32x64xf32>
    %302 = arith.addf %300, %301 : vector<32x64xf32>
    %cst_70 = arith.constant dense<0.000000e+00> : vector<32x64xf32>
    %303 = tpu.matmul %297, %12, %cst_70 {dimension_numbers = #tpu.dot_dimension_numbers<[1], [0], [0], [1], [0, 0, 1, 1], [], []>} : vector<32x64xf32>, vector<64x64xf32>, vector<32x64xf32> -> vector<32x64xf32>
    %304 = vector.broadcast %13 : vector<1x64xf32> to vector<32x64xf32>
    %305 = arith.addf %303, %304 : vector<32x64xf32>
    %cst_71 = arith.constant dense<0.000000e+00> : vector<32x64xf32>
    %306 = tpu.matmul %298, %12, %cst_71 {dimension_numbers = #tpu.dot_dimension_numbers<[1], [0], [0], [1], [0, 0, 1, 1], [], []>} : vector<32x64xf32>, vector<64x64xf32>, vector<32x64xf32> -> vector<32x64xf32>
    %307 = vector.broadcast %13 : vector<1x64xf32> to vector<32x64xf32>
    %308 = arith.addf %306, %307 : vector<32x64xf32>
    %cst_72 = arith.constant dense<0.000000e+00> : vector<32x64xf32>
    %309 = tpu.matmul %299, %12, %cst_72 {dimension_numbers = #tpu.dot_dimension_numbers<[1], [0], [0], [1], [0, 0, 1, 1], [], []>} : vector<32x64xf32>, vector<64x64xf32>, vector<32x64xf32> -> vector<32x64xf32>
    %310 = vector.broadcast %13 : vector<1x64xf32> to vector<32x64xf32>
    %311 = arith.addf %309, %310 : vector<32x64xf32>
    %cst_73 = arith.constant dense<0.000000e+00> : vector<32xf32>
    %312 = vector.multi_reduction <add>, %302, %cst_73 [1] : vector<32x64xf32> to vector<32xf32>
    %313 = vector.shape_cast %312 : vector<32xf32> to vector<32x1xf32>
    %cst_74 = arith.constant dense<0.000000e+00> : vector<32xf32>
    %314 = vector.multi_reduction <add>, %305, %cst_74 [1] : vector<32x64xf32> to vector<32xf32>
    %315 = vector.shape_cast %314 : vector<32xf32> to vector<32x1xf32>
    %316 = arith.addf %313, %315 : vector<32x1xf32>
    %cst_75 = arith.constant dense<0.000000e+00> : vector<32xf32>
    %317 = vector.multi_reduction <add>, %308, %cst_75 [1] : vector<32x64xf32> to vector<32xf32>
    %318 = vector.shape_cast %317 : vector<32xf32> to vector<32x1xf32>
    %319 = arith.addf %316, %318 : vector<32x1xf32>
    %cst_76 = arith.constant dense<0.000000e+00> : vector<32xf32>
    %320 = vector.multi_reduction <add>, %311, %cst_76 [1] : vector<32x64xf32> to vector<32xf32>
    %321 = vector.shape_cast %320 : vector<32xf32> to vector<32x1xf32>
    %322 = arith.addf %319, %321 : vector<32x1xf32>
    %cst_77 = arith.constant 3.906250e-03 : f32
    %323 = vector.broadcast %cst_77 : f32 to vector<32x1xf32>
    %324 = arith.mulf %322, %323 : vector<32x1xf32>
    %325 = vector.broadcast %324 : vector<32x1xf32> to vector<32x64xf32>
    %326 = arith.subf %302, %325 : vector<32x64xf32>
    %327 = vector.broadcast %324 : vector<32x1xf32> to vector<32x64xf32>
    %328 = arith.subf %305, %327 : vector<32x64xf32>
    %329 = vector.broadcast %324 : vector<32x1xf32> to vector<32x64xf32>
    %330 = arith.subf %308, %329 : vector<32x64xf32>
    %331 = vector.broadcast %324 : vector<32x1xf32> to vector<32x64xf32>
    %332 = arith.subf %311, %331 : vector<32x64xf32>
    %333 = arith.mulf %326, %326 : vector<32x64xf32>
    %cst_78 = arith.constant dense<0.000000e+00> : vector<32xf32>
    %334 = vector.multi_reduction <add>, %333, %cst_78 [1] : vector<32x64xf32> to vector<32xf32>
    %335 = vector.shape_cast %334 : vector<32xf32> to vector<32x1xf32>
    %336 = arith.mulf %328, %328 : vector<32x64xf32>
    %cst_79 = arith.constant dense<0.000000e+00> : vector<32xf32>
    %337 = vector.multi_reduction <add>, %336, %cst_79 [1] : vector<32x64xf32> to vector<32xf32>
    %338 = vector.shape_cast %337 : vector<32xf32> to vector<32x1xf32>
    %339 = arith.addf %335, %338 : vector<32x1xf32>
    %340 = arith.mulf %330, %330 : vector<32x64xf32>
    %cst_80 = arith.constant dense<0.000000e+00> : vector<32xf32>
    %341 = vector.multi_reduction <add>, %340, %cst_80 [1] : vector<32x64xf32> to vector<32xf32>
    %342 = vector.shape_cast %341 : vector<32xf32> to vector<32x1xf32>
    %343 = arith.addf %339, %342 : vector<32x1xf32>
    %344 = arith.mulf %332, %332 : vector<32x64xf32>
    %cst_81 = arith.constant dense<0.000000e+00> : vector<32xf32>
    %345 = vector.multi_reduction <add>, %344, %cst_81 [1] : vector<32x64xf32> to vector<32xf32>
    %346 = vector.shape_cast %345 : vector<32xf32> to vector<32x1xf32>
    %347 = arith.addf %343, %346 : vector<32x1xf32>
    %cst_82 = arith.constant 3.906250e-03 : f32
    %348 = vector.broadcast %cst_82 : f32 to vector<32x1xf32>
    %349 = arith.mulf %347, %348 : vector<32x1xf32>
    %cst_83 = arith.constant 9.99999974E-6 : f32
    %350 = vector.broadcast %cst_83 : f32 to vector<32x1xf32>
    %351 = arith.addf %349, %350 : vector<32x1xf32>
    %352 = math.rsqrt %351 : vector<32x1xf32>
    %353 = vector.broadcast %352 : vector<32x1xf32> to vector<32x64xf32>
    %354 = arith.mulf %326, %353 : vector<32x64xf32>
    %cst_84 = arith.constant 0.000000e+00 : f32
    %355 = vector.broadcast %cst_84 : f32 to vector<32x64xf32>
    %356 = arith.maximumf %354, %355 : vector<32x64xf32>
    %357 = vector.broadcast %352 : vector<32x1xf32> to vector<32x64xf32>
    %358 = arith.mulf %328, %357 : vector<32x64xf32>
    %cst_85 = arith.constant 0.000000e+00 : f32
    %359 = vector.broadcast %cst_85 : f32 to vector<32x64xf32>
    %360 = arith.maximumf %358, %359 : vector<32x64xf32>
    %361 = vector.broadcast %352 : vector<32x1xf32> to vector<32x64xf32>
    %362 = arith.mulf %330, %361 : vector<32x64xf32>
    %cst_86 = arith.constant 0.000000e+00 : f32
    %363 = vector.broadcast %cst_86 : f32 to vector<32x64xf32>
    %364 = arith.maximumf %362, %363 : vector<32x64xf32>
    %365 = vector.broadcast %352 : vector<32x1xf32> to vector<32x64xf32>
    %366 = arith.mulf %332, %365 : vector<32x64xf32>
    %cst_87 = arith.constant 0.000000e+00 : f32
    %367 = vector.broadcast %cst_87 : f32 to vector<32x64xf32>
    %368 = arith.maximumf %366, %367 : vector<32x64xf32>
    %cst_88 = arith.constant dense<0.000000e+00> : vector<32x128xf32>
    %369 = tpu.matmul %356, %14, %cst_88 {dimension_numbers = #tpu.dot_dimension_numbers<[1], [0], [0], [1], [0, 0, 1, 1], [], []>} : vector<32x64xf32>, vector<64x128xf32>, vector<32x128xf32> -> vector<32x128xf32>
    %370 = vector.broadcast %15 : vector<1x128xf32> to vector<32x128xf32>
    %371 = arith.addf %369, %370 : vector<32x128xf32>
    %cst_89 = arith.constant dense<0.000000e+00> : vector<32x128xf32>
    %372 = tpu.matmul %360, %14, %cst_89 {dimension_numbers = #tpu.dot_dimension_numbers<[1], [0], [0], [1], [0, 0, 1, 1], [], []>} : vector<32x64xf32>, vector<64x128xf32>, vector<32x128xf32> -> vector<32x128xf32>
    %373 = vector.broadcast %15 : vector<1x128xf32> to vector<32x128xf32>
    %374 = arith.addf %372, %373 : vector<32x128xf32>
    %cst_90 = arith.constant dense<0.000000e+00> : vector<32x128xf32>
    %375 = tpu.matmul %364, %14, %cst_90 {dimension_numbers = #tpu.dot_dimension_numbers<[1], [0], [0], [1], [0, 0, 1, 1], [], []>} : vector<32x64xf32>, vector<64x128xf32>, vector<32x128xf32> -> vector<32x128xf32>
    %376 = vector.broadcast %15 : vector<1x128xf32> to vector<32x128xf32>
    %377 = arith.addf %375, %376 : vector<32x128xf32>
    %cst_91 = arith.constant dense<0.000000e+00> : vector<32x128xf32>
    %378 = tpu.matmul %368, %14, %cst_91 {dimension_numbers = #tpu.dot_dimension_numbers<[1], [0], [0], [1], [0, 0, 1, 1], [], []>} : vector<32x64xf32>, vector<64x128xf32>, vector<32x128xf32> -> vector<32x128xf32>
    %379 = vector.broadcast %15 : vector<1x128xf32> to vector<32x128xf32>
    %380 = arith.addf %378, %379 : vector<32x128xf32>
    %cst_92 = arith.constant dense<0.000000e+00> : vector<32xf32>
    %381 = vector.multi_reduction <add>, %371, %cst_92 [1] : vector<32x128xf32> to vector<32xf32>
    %382 = vector.shape_cast %381 : vector<32xf32> to vector<32x1xf32>
    %cst_93 = arith.constant dense<0.000000e+00> : vector<32xf32>
    %383 = vector.multi_reduction <add>, %374, %cst_93 [1] : vector<32x128xf32> to vector<32xf32>
    %384 = vector.shape_cast %383 : vector<32xf32> to vector<32x1xf32>
    %385 = arith.addf %382, %384 : vector<32x1xf32>
    %cst_94 = arith.constant dense<0.000000e+00> : vector<32xf32>
    %386 = vector.multi_reduction <add>, %377, %cst_94 [1] : vector<32x128xf32> to vector<32xf32>
    %387 = vector.shape_cast %386 : vector<32xf32> to vector<32x1xf32>
    %388 = arith.addf %385, %387 : vector<32x1xf32>
    %cst_95 = arith.constant dense<0.000000e+00> : vector<32xf32>
    %389 = vector.multi_reduction <add>, %380, %cst_95 [1] : vector<32x128xf32> to vector<32xf32>
    %390 = vector.shape_cast %389 : vector<32xf32> to vector<32x1xf32>
    %391 = arith.addf %388, %390 : vector<32x1xf32>
    %cst_96 = arith.constant 0.001953125 : f32
    %392 = vector.broadcast %cst_96 : f32 to vector<32x1xf32>
    %393 = arith.mulf %391, %392 : vector<32x1xf32>
    %394 = vector.broadcast %393 : vector<32x1xf32> to vector<32x128xf32>
    %395 = arith.subf %371, %394 : vector<32x128xf32>
    %396 = vector.broadcast %393 : vector<32x1xf32> to vector<32x128xf32>
    %397 = arith.subf %374, %396 : vector<32x128xf32>
    %398 = vector.broadcast %393 : vector<32x1xf32> to vector<32x128xf32>
    %399 = arith.subf %377, %398 : vector<32x128xf32>
    %400 = vector.broadcast %393 : vector<32x1xf32> to vector<32x128xf32>
    %401 = arith.subf %380, %400 : vector<32x128xf32>
    %402 = arith.mulf %395, %395 : vector<32x128xf32>
    %cst_97 = arith.constant dense<0.000000e+00> : vector<32xf32>
    %403 = vector.multi_reduction <add>, %402, %cst_97 [1] : vector<32x128xf32> to vector<32xf32>
    %404 = vector.shape_cast %403 : vector<32xf32> to vector<32x1xf32>
    %405 = arith.mulf %397, %397 : vector<32x128xf32>
    %cst_98 = arith.constant dense<0.000000e+00> : vector<32xf32>
    %406 = vector.multi_reduction <add>, %405, %cst_98 [1] : vector<32x128xf32> to vector<32xf32>
    %407 = vector.shape_cast %406 : vector<32xf32> to vector<32x1xf32>
    %408 = arith.addf %404, %407 : vector<32x1xf32>
    %409 = arith.mulf %399, %399 : vector<32x128xf32>
    %cst_99 = arith.constant dense<0.000000e+00> : vector<32xf32>
    %410 = vector.multi_reduction <add>, %409, %cst_99 [1] : vector<32x128xf32> to vector<32xf32>
    %411 = vector.shape_cast %410 : vector<32xf32> to vector<32x1xf32>
    %412 = arith.addf %408, %411 : vector<32x1xf32>
    %413 = arith.mulf %401, %401 : vector<32x128xf32>
    %cst_100 = arith.constant dense<0.000000e+00> : vector<32xf32>
    %414 = vector.multi_reduction <add>, %413, %cst_100 [1] : vector<32x128xf32> to vector<32xf32>
    %415 = vector.shape_cast %414 : vector<32xf32> to vector<32x1xf32>
    %416 = arith.addf %412, %415 : vector<32x1xf32>
    %cst_101 = arith.constant 0.001953125 : f32
    %417 = vector.broadcast %cst_101 : f32 to vector<32x1xf32>
    %418 = arith.mulf %416, %417 : vector<32x1xf32>
    %cst_102 = arith.constant 9.99999974E-6 : f32
    %419 = vector.broadcast %cst_102 : f32 to vector<32x1xf32>
    %420 = arith.addf %418, %419 : vector<32x1xf32>
    %421 = math.rsqrt %420 : vector<32x1xf32>
    %422 = vector.broadcast %421 : vector<32x1xf32> to vector<32x128xf32>
    %423 = arith.mulf %395, %422 : vector<32x128xf32>
    %cst_103 = arith.constant 0.000000e+00 : f32
    %424 = vector.broadcast %cst_103 : f32 to vector<32x128xf32>
    %425 = arith.maximumf %423, %424 : vector<32x128xf32>
    %426 = vector.broadcast %421 : vector<32x1xf32> to vector<32x128xf32>
    %427 = arith.mulf %397, %426 : vector<32x128xf32>
    %cst_104 = arith.constant 0.000000e+00 : f32
    %428 = vector.broadcast %cst_104 : f32 to vector<32x128xf32>
    %429 = arith.maximumf %427, %428 : vector<32x128xf32>
    %430 = vector.broadcast %421 : vector<32x1xf32> to vector<32x128xf32>
    %431 = arith.mulf %399, %430 : vector<32x128xf32>
    %cst_105 = arith.constant 0.000000e+00 : f32
    %432 = vector.broadcast %cst_105 : f32 to vector<32x128xf32>
    %433 = arith.maximumf %431, %432 : vector<32x128xf32>
    %434 = vector.broadcast %421 : vector<32x1xf32> to vector<32x128xf32>
    %435 = arith.mulf %401, %434 : vector<32x128xf32>
    %cst_106 = arith.constant 0.000000e+00 : f32
    %436 = vector.broadcast %cst_106 : f32 to vector<32x128xf32>
    %437 = arith.maximumf %435, %436 : vector<32x128xf32>
    %cst_107 = arith.constant dense<0.000000e+00> : vector<32x1024xf32>
    %438 = tpu.matmul %425, %16, %cst_107 {dimension_numbers = #tpu.dot_dimension_numbers<[1], [0], [0], [1], [0, 0, 1, 1], [], []>} : vector<32x128xf32>, vector<128x1024xf32>, vector<32x1024xf32> -> vector<32x1024xf32>
    %439 = vector.broadcast %17 : vector<1x1024xf32> to vector<32x1024xf32>
    %440 = arith.addf %438, %439 : vector<32x1024xf32>
    %cst_108 = arith.constant dense<0.000000e+00> : vector<32x1024xf32>
    %441 = tpu.matmul %429, %16, %cst_108 {dimension_numbers = #tpu.dot_dimension_numbers<[1], [0], [0], [1], [0, 0, 1, 1], [], []>} : vector<32x128xf32>, vector<128x1024xf32>, vector<32x1024xf32> -> vector<32x1024xf32>
    %442 = vector.broadcast %17 : vector<1x1024xf32> to vector<32x1024xf32>
    %443 = arith.addf %441, %442 : vector<32x1024xf32>
    %cst_109 = arith.constant dense<0.000000e+00> : vector<32x1024xf32>
    %444 = tpu.matmul %433, %16, %cst_109 {dimension_numbers = #tpu.dot_dimension_numbers<[1], [0], [0], [1], [0, 0, 1, 1], [], []>} : vector<32x128xf32>, vector<128x1024xf32>, vector<32x1024xf32> -> vector<32x1024xf32>
    %445 = vector.broadcast %17 : vector<1x1024xf32> to vector<32x1024xf32>
    %446 = arith.addf %444, %445 : vector<32x1024xf32>
    %cst_110 = arith.constant dense<0.000000e+00> : vector<32x1024xf32>
    %447 = tpu.matmul %437, %16, %cst_110 {dimension_numbers = #tpu.dot_dimension_numbers<[1], [0], [0], [1], [0, 0, 1, 1], [], []>} : vector<32x128xf32>, vector<128x1024xf32>, vector<32x1024xf32> -> vector<32x1024xf32>
    %448 = vector.broadcast %17 : vector<1x1024xf32> to vector<32x1024xf32>
    %449 = arith.addf %447, %448 : vector<32x1024xf32>
    %cst_111 = arith.constant dense<0.000000e+00> : vector<32xf32>
    %450 = vector.multi_reduction <add>, %440, %cst_111 [1] : vector<32x1024xf32> to vector<32xf32>
    %451 = vector.shape_cast %450 : vector<32xf32> to vector<32x1xf32>
    %cst_112 = arith.constant dense<0.000000e+00> : vector<32xf32>
    %452 = vector.multi_reduction <add>, %443, %cst_112 [1] : vector<32x1024xf32> to vector<32xf32>
    %453 = vector.shape_cast %452 : vector<32xf32> to vector<32x1xf32>
    %454 = arith.addf %451, %453 : vector<32x1xf32>
    %cst_113 = arith.constant dense<0.000000e+00> : vector<32xf32>
    %455 = vector.multi_reduction <add>, %446, %cst_113 [1] : vector<32x1024xf32> to vector<32xf32>
    %456 = vector.shape_cast %455 : vector<32xf32> to vector<32x1xf32>
    %457 = arith.addf %454, %456 : vector<32x1xf32>
    %cst_114 = arith.constant dense<0.000000e+00> : vector<32xf32>
    %458 = vector.multi_reduction <add>, %449, %cst_114 [1] : vector<32x1024xf32> to vector<32xf32>
    %459 = vector.shape_cast %458 : vector<32xf32> to vector<32x1xf32>
    %460 = arith.addf %457, %459 : vector<32x1xf32>
    %cst_115 = arith.constant 2.44140625E-4 : f32
    %461 = vector.broadcast %cst_115 : f32 to vector<32x1xf32>
    %462 = arith.mulf %460, %461 : vector<32x1xf32>
    %463 = vector.broadcast %462 : vector<32x1xf32> to vector<32x1024xf32>
    %464 = arith.subf %440, %463 : vector<32x1024xf32>
    %465 = vector.broadcast %462 : vector<32x1xf32> to vector<32x1024xf32>
    %466 = arith.subf %443, %465 : vector<32x1024xf32>
    %467 = vector.broadcast %462 : vector<32x1xf32> to vector<32x1024xf32>
    %468 = arith.subf %446, %467 : vector<32x1024xf32>
    %469 = vector.broadcast %462 : vector<32x1xf32> to vector<32x1024xf32>
    %470 = arith.subf %449, %469 : vector<32x1024xf32>
    %471 = arith.mulf %464, %464 : vector<32x1024xf32>
    %cst_116 = arith.constant dense<0.000000e+00> : vector<32xf32>
    %472 = vector.multi_reduction <add>, %471, %cst_116 [1] : vector<32x1024xf32> to vector<32xf32>
    %473 = vector.shape_cast %472 : vector<32xf32> to vector<32x1xf32>
    %474 = arith.mulf %466, %466 : vector<32x1024xf32>
    %cst_117 = arith.constant dense<0.000000e+00> : vector<32xf32>
    %475 = vector.multi_reduction <add>, %474, %cst_117 [1] : vector<32x1024xf32> to vector<32xf32>
    %476 = vector.shape_cast %475 : vector<32xf32> to vector<32x1xf32>
    %477 = arith.addf %473, %476 : vector<32x1xf32>
    %478 = arith.mulf %468, %468 : vector<32x1024xf32>
    %cst_118 = arith.constant dense<0.000000e+00> : vector<32xf32>
    %479 = vector.multi_reduction <add>, %478, %cst_118 [1] : vector<32x1024xf32> to vector<32xf32>
    %480 = vector.shape_cast %479 : vector<32xf32> to vector<32x1xf32>
    %481 = arith.addf %477, %480 : vector<32x1xf32>
    %482 = arith.mulf %470, %470 : vector<32x1024xf32>
    %cst_119 = arith.constant dense<0.000000e+00> : vector<32xf32>
    %483 = vector.multi_reduction <add>, %482, %cst_119 [1] : vector<32x1024xf32> to vector<32xf32>
    %484 = vector.shape_cast %483 : vector<32xf32> to vector<32x1xf32>
    %485 = arith.addf %481, %484 : vector<32x1xf32>
    %cst_120 = arith.constant 2.44140625E-4 : f32
    %486 = vector.broadcast %cst_120 : f32 to vector<32x1xf32>
    %487 = arith.mulf %485, %486 : vector<32x1xf32>
    %cst_121 = arith.constant 9.99999974E-6 : f32
    %488 = vector.broadcast %cst_121 : f32 to vector<32x1xf32>
    %489 = arith.addf %487, %488 : vector<32x1xf32>
    %490 = math.rsqrt %489 : vector<32x1xf32>
    %491 = vector.broadcast %490 : vector<32x1xf32> to vector<32x1024xf32>
    %492 = arith.mulf %464, %491 : vector<32x1024xf32>
    %cst_122 = arith.constant 0.000000e+00 : f32
    %493 = vector.broadcast %cst_122 : f32 to vector<32x1024xf32>
    %494 = arith.maximumf %492, %493 : vector<32x1024xf32>
    %495 = vector.broadcast %490 : vector<32x1xf32> to vector<32x1024xf32>
    %496 = arith.mulf %466, %495 : vector<32x1024xf32>
    %cst_123 = arith.constant 0.000000e+00 : f32
    %497 = vector.broadcast %cst_123 : f32 to vector<32x1024xf32>
    %498 = arith.maximumf %496, %497 : vector<32x1024xf32>
    %499 = vector.broadcast %490 : vector<32x1xf32> to vector<32x1024xf32>
    %500 = arith.mulf %468, %499 : vector<32x1024xf32>
    %cst_124 = arith.constant 0.000000e+00 : f32
    %501 = vector.broadcast %cst_124 : f32 to vector<32x1024xf32>
    %502 = arith.maximumf %500, %501 : vector<32x1024xf32>
    %503 = vector.broadcast %490 : vector<32x1xf32> to vector<32x1024xf32>
    %504 = arith.mulf %470, %503 : vector<32x1024xf32>
    %cst_125 = arith.constant 0.000000e+00 : f32
    %505 = vector.broadcast %cst_125 : f32 to vector<32x1024xf32>
    %506 = arith.maximumf %504, %505 : vector<32x1024xf32>
    %cst_126 = arith.constant 0.000000e+00 : f32
    %507 = vector.shape_cast %5 : vector<32x1xi1> to vector<32x1xi1>
    %508 = vector.broadcast %507 : vector<32x1xi1> to vector<32x1024xi1>
    %509 = vector.broadcast %cst_126 : f32 to vector<32x1024xf32>
    %510 = arith.select %508, %494, %509 : vector<32x1024xi1>, vector<32x1024xf32>
    %cst_127 = arith.constant dense<0xFF800000> : vector<1024xf32>
    %511 = vector.multi_reduction <maximumf>, %510, %cst_127 [0] : vector<32x1024xf32> to vector<1024xf32>
    %512 = vector.shape_cast %511 : vector<1024xf32> to vector<1x1024xf32>
    %c0_128 = arith.constant 0 : index
    %c0_129 = arith.constant 0 : index
    %c0_130 = arith.constant 0 : index
    %513 = vector.load %arg14[%c0_128, %c0_129, %c0_130] : memref<1x4x1024xf32, #tpu.memory_space<vmem>>, vector<1x1x1024xf32>
    %514 = vector.shape_cast %513 : vector<1x1x1024xf32> to vector<1x1024xf32>
    %515 = vector.shape_cast %512 : vector<1x1024xf32> to vector<1x1x1024xf32>
    tpu.vector_store %arg14[%c0_128, %c0_129, %c0_130], %515 {strides = array<i32>} : memref<1x4x1024xf32, #tpu.memory_space<vmem>>, vector<1x1x1024xf32>,
    %cst_131 = arith.constant 0.000000e+00 : f32
    %516 = vector.shape_cast %5 : vector<32x1xi1> to vector<32x1xi1>
    %517 = vector.broadcast %516 : vector<32x1xi1> to vector<32x1024xi1>
    %518 = vector.broadcast %cst_131 : f32 to vector<32x1024xf32>
    %519 = arith.select %517, %498, %518 : vector<32x1024xi1>, vector<32x1024xf32>
    %cst_132 = arith.constant dense<0xFF800000> : vector<1024xf32>
    %520 = vector.multi_reduction <maximumf>, %519, %cst_132 [0] : vector<32x1024xf32> to vector<1024xf32>
    %521 = vector.shape_cast %520 : vector<1024xf32> to vector<1x1024xf32>
    %c0_133 = arith.constant 0 : index
    %c1_134 = arith.constant 1 : index
    %c0_135 = arith.constant 0 : index
    %522 = vector.load %arg14[%c0_133, %c1_134, %c0_135] : memref<1x4x1024xf32, #tpu.memory_space<vmem>>, vector<1x1x1024xf32>
    %523 = vector.shape_cast %522 : vector<1x1x1024xf32> to vector<1x1024xf32>
    %524 = vector.shape_cast %521 : vector<1x1024xf32> to vector<1x1x1024xf32>
    tpu.vector_store %arg14[%c0_133, %c1_134, %c0_135], %524 {strides = array<i32>} : memref<1x4x1024xf32, #tpu.memory_space<vmem>>, vector<1x1x1024xf32>,
    %cst_136 = arith.constant 0.000000e+00 : f32
    %525 = vector.shape_cast %5 : vector<32x1xi1> to vector<32x1xi1>
    %526 = vector.broadcast %525 : vector<32x1xi1> to vector<32x1024xi1>
    %527 = vector.broadcast %cst_136 : f32 to vector<32x1024xf32>
    %528 = arith.select %526, %502, %527 : vector<32x1024xi1>, vector<32x1024xf32>
    %cst_137 = arith.constant dense<0xFF800000> : vector<1024xf32>
    %529 = vector.multi_reduction <maximumf>, %528, %cst_137 [0] : vector<32x1024xf32> to vector<1024xf32>
    %530 = vector.shape_cast %529 : vector<1024xf32> to vector<1x1024xf32>
    %c0_138 = arith.constant 0 : index
    %c2_139 = arith.constant 2 : index
    %c0_140 = arith.constant 0 : index
    %531 = vector.load %arg14[%c0_138, %c2_139, %c0_140] : memref<1x4x1024xf32, #tpu.memory_space<vmem>>, vector<1x1x1024xf32>
    %532 = vector.shape_cast %531 : vector<1x1x1024xf32> to vector<1x1024xf32>
    %533 = vector.shape_cast %530 : vector<1x1024xf32> to vector<1x1x1024xf32>
    tpu.vector_store %arg14[%c0_138, %c2_139, %c0_140], %533 {strides = array<i32>} : memref<1x4x1024xf32, #tpu.memory_space<vmem>>, vector<1x1x1024xf32>,
    %cst_141 = arith.constant 0.000000e+00 : f32
    %534 = vector.shape_cast %5 : vector<32x1xi1> to vector<32x1xi1>
    %535 = vector.broadcast %534 : vector<32x1xi1> to vector<32x1024xi1>
    %536 = vector.broadcast %cst_141 : f32 to vector<32x1024xf32>
    %537 = arith.select %535, %506, %536 : vector<32x1024xi1>, vector<32x1024xf32>
    %cst_142 = arith.constant dense<0xFF800000> : vector<1024xf32>
    %538 = vector.multi_reduction <maximumf>, %537, %cst_142 [0] : vector<32x1024xf32> to vector<1024xf32>
    %539 = vector.shape_cast %538 : vector<1024xf32> to vector<1x1024xf32>
    %c0_143 = arith.constant 0 : index
    %c3_144 = arith.constant 3 : index
    %c0_145 = arith.constant 0 : index
    %540 = vector.load %arg14[%c0_143, %c3_144, %c0_145] : memref<1x4x1024xf32, #tpu.memory_space<vmem>>, vector<1x1x1024xf32>
    %541 = vector.shape_cast %540 : vector<1x1x1024xf32> to vector<1x1024xf32>
    %542 = vector.shape_cast %539 : vector<1x1024xf32> to vector<1x1x1024xf32>
    tpu.vector_store %arg14[%c0_143, %c3_144, %c0_145], %542 {strides = array<i32>} : memref<1x4x1024xf32, #tpu.memory_space<vmem>>, vector<1x1x1024xf32>,
    return
  }
  func.func @transform_0(%arg0: i32) -> (i32, i32, i32) {
    %c0_i32 = arith.constant 0 : i32
    %c0_i32_0 = arith.constant 0 : i32
    %c0_i32_1 = arith.constant 0 : i32
    return %c0_i32, %arg0, %c0_i32_0 : i32, i32, i32
  }
  func.func @transform_1(%arg0: i32) -> (i32, i32) {
    %c0_i32 = arith.constant 0 : i32
    %c0_i32_0 = arith.constant 0 : i32
    %c0_i32_1 = arith.constant 0 : i32
    return %c0_i32, %c0_i32_0 : i32, i32
  }
  func.func @transform_2(%arg0: i32) -> (i32, i32) {
    %c0_i32 = arith.constant 0 : i32
    %c0_i32_0 = arith.constant 0 : i32
    %c0_i32_1 = arith.constant 0 : i32
    return %c0_i32, %c0_i32_0 : i32, i32
  }
  func.func @transform_3(%arg0: i32) -> (i32, i32) {
    %c0_i32 = arith.constant 0 : i32
    %c0_i32_0 = arith.constant 0 : i32
    %c0_i32_1 = arith.constant 0 : i32
    return %c0_i32, %c0_i32_0 : i32, i32
  }
  func.func @transform_4(%arg0: i32) -> (i32, i32) {
    %c0_i32 = arith.constant 0 : i32
    %c0_i32_0 = arith.constant 0 : i32
    %c0_i32_1 = arith.constant 0 : i32
    return %c0_i32, %c0_i32_0 : i32, i32
  }
  func.func @transform_5(%arg0: i32) -> (i32, i32) {
    %c0_i32 = arith.constant 0 : i32
    %c0_i32_0 = arith.constant 0 : i32
    %c0_i32_1 = arith.constant 0 : i32
    return %c0_i32, %c0_i32_0 : i32, i32
  }
  func.func @transform_6(%arg0: i32) -> (i32, i32) {
    %c0_i32 = arith.constant 0 : i32
    %c0_i32_0 = arith.constant 0 : i32
    %c0_i32_1 = arith.constant 0 : i32
    return %c0_i32, %c0_i32_0 : i32, i32
  }
  func.func @transform_7(%arg0: i32) -> (i32, i32) {
    %c0_i32 = arith.constant 0 : i32
    %c0_i32_0 = arith.constant 0 : i32
    %c0_i32_1 = arith.constant 0 : i32
    return %c0_i32, %c0_i32_0 : i32, i32
  }
  func.func @transform_8(%arg0: i32) -> (i32, i32) {
    %c0_i32 = arith.constant 0 : i32
    %c0_i32_0 = arith.constant 0 : i32
    %c0_i32_1 = arith.constant 0 : i32
    return %c0_i32, %c0_i32_0 : i32, i32
  }
  func.func @transform_9(%arg0: i32) -> (i32, i32) {
    %c0_i32 = arith.constant 0 : i32
    %c0_i32_0 = arith.constant 0 : i32
    %c0_i32_1 = arith.constant 0 : i32
    return %c0_i32, %c0_i32_0 : i32, i32
  }
  func.func @transform_10(%arg0: i32) -> (i32, i32) {
    %c0_i32 = arith.constant 0 : i32
    %c0_i32_0 = arith.constant 0 : i32
    %c0_i32_1 = arith.constant 0 : i32
    return %c0_i32, %c0_i32_0 : i32, i32
  }
  func.func @transform_11(%arg0: i32) -> (i32, i32) {
    %c0_i32 = arith.constant 0 : i32
    %c0_i32_0 = arith.constant 0 : i32
    %c0_i32_1 = arith.constant 0 : i32
    return %c0_i32, %c0_i32_0 : i32, i32
  }
  func.func @transform_12(%arg0: i32) -> (i32, i32) {
    %c0_i32 = arith.constant 0 : i32
    %c0_i32_0 = arith.constant 0 : i32
    %c0_i32_1 = arith.constant 0 : i32
    return %c0_i32, %c0_i32_0 : i32, i32
  }
  func.func @transform_13(%arg0: i32) -> (i32, i32, i32) {
    %c0_i32 = arith.constant 0 : i32
    %c0_i32_0 = arith.constant 0 : i32
    %c0_i32_1 = arith.constant 0 : i32
    return %arg0, %c0_i32, %c0_i32_0 : i32, i32, i32
  }
}

</mosaic_0001>

<llo_original>
// kernel: tpu_custom_call.1
$region0: #{tpu_custom_call.1}
  #allocation0 [shape = 'u32[]', space=smem, size = 0x4, offset = 0x4, fixed_abs, tag = 'smem constant byte address 0x4 - core index']
  #allocation1 [shape = 'u32[72,128]{1,0:T(1,128)}', space=vmem, size = 0x9000, scoped, tag = 'internal scratch']
  %s0 = inlined_call_operand.vmem [shape: f32[4,96,3], index: 0, kind: input, shape index: {}]
  %s1 = inlined_call_operand.vmem [shape: f32[3,3], index: 1, kind: input, shape index: {}]
  %s2 = inlined_call_operand.vmem [shape: f32[64,64], index: 2, kind: input, shape index: {}]
  %s3 = inlined_call_operand.vmem [shape: f32[3,64], index: 3, kind: input, shape index: {}]
  %s4 = inlined_call_operand.vmem [shape: f32[1,64], index: 4, kind: input, shape index: {}]
  %s5 = inlined_call_operand.vmem [shape: f32[64,64], index: 5, kind: input, shape index: {}]
  %s6 = inlined_call_operand.vmem [shape: f32[1,64], index: 6, kind: input, shape index: {}]
  %s7 = inlined_call_operand.vmem [shape: f32[64,64], index: 7, kind: input, shape index: {}]
  %s8 = inlined_call_operand.vmem [shape: f32[1,64], index: 8, kind: input, shape index: {}]
  %s9 = inlined_call_operand.vmem [shape: f32[64,128], index: 9, kind: input, shape index: {}]
  %s10 = inlined_call_operand.vmem [shape: f32[1,128], index: 10, kind: input, shape index: {}]
  %s11 = inlined_call_operand.hbm [shape: f32[128,1024], index: 11, kind: input, shape index: {}]
  %s12 = inlined_call_operand.vmem [shape: f32[1,1024], index: 12, kind: input, shape index: {}]
  %s13 = inlined_call_operand.hbm [shape: f32[3,4,1024], index: 13, kind: output, shape index: {}]
  %s14 = sld [smem:[#allocation0]]
  $region127: #{tpu_custom_call.1} parent=0
    _
  %s16 = ssub.s32 1, %s14
  %s17 = scalar_select 0, %s16, %s14
  $region1: #{tpu_custom_call.1} parent=0
    #allocation2 [shape = 'u8[131072]{0}', space=vmem, size = 0x20000, scoped, tag = 'input window, operand 0']
    #allocation3 [shape = 'u8[524288]{0}', space=vmem, size = 0x80000, scoped, tag = 'input window, operand 11, single buffered']
    #allocation4 [shape = 's32[2]{0}', space=sflag, size = 0x8, scoped, tag = 'scoped memory for tpu_custom_call.1']
    #allocation5 [shape = 's32[2]{0}', space=sflag, size = 0x8, scoped, tag = 'scoped memory for tpu_custom_call.1']
    #allocation6 [shape = 'u8[32768]{0}', space=vmem, size = 0x8000, scoped, tag = 'output window, operand 0']
    %18 = vsyncpa [#allocation4], 0
    %19 = vsyncpa [#allocation5], 0
    %s20 = scalar_lea.sflag [#allocation5], 1
    %21 = vsyncpa %s20, 0
    loop: start=0, step=1, limit=5
    $region2: #{tpu_custom_call.1} parent=1 // loop_pre_header
      _
    $region3: #{tpu_custom_call.1} parent=1 // loop_header
      %s23 = sphi 0, %s27
      %p24 = scmp.ge.s32.totalorder %s23, 5
      %s33 = sphi 0, %s35
      %s36 = sphi 0, %s33
      %s37 = sphi 0, %s36
      %s53 = sphi 0, %s37
      %s57 = sphi 0, %s57
      %s59 = sphi 0, %s57
      %s60 = sphi 0, %s59
      %s74 = sphi 0, %s60
      %s78 = sphi 0, %s78
      %s80 = sphi 0, %s78
      %s81 = sphi 0, %s80
      %s95 = sphi 0, %s81
      %s99 = sphi 0, %s99
      %s101 = sphi 0, %s99
      %s102 = sphi 0, %s101
      %s116 = sphi 0, %s102
      %s120 = sphi 0, %s120
      %s122 = sphi 0, %s120
      %s123 = sphi 0, %s122
      %s137 = sphi 0, %s123
      %s141 = sphi 0, %s141
      %s143 = sphi 0, %s141
      %s144 = sphi 0, %s143
      %s158 = sphi 0, %s144
      %s162 = sphi 0, %s162
      %s164 = sphi 0, %s162
      %s165 = sphi 0, %s164
      %s179 = sphi 0, %s165
      %s183 = sphi 0, %s183
      %s185 = sphi 0, %s183
      %s186 = sphi 0, %s185
      %s200 = sphi 0, %s186
      %s204 = sphi 0, %s204
      %s206 = sphi 0, %s204
      %s207 = sphi 0, %s206
      %s221 = sphi 0, %s207
      %s225 = sphi 0, %s225
      %s227 = sphi 0, %s225
      %s228 = sphi 0, %s227
      %s242 = sphi 0, %s228
      %s246 = sphi 0, %s246
      %s248 = sphi 0, %s246
      %s249 = sphi 0, %s248
      %s263 = sphi 0, %s249
      %s267 = sphi 0, %s267
      %s269 = sphi 0, %s267
      %s270 = sphi 0, %s269
      %s284 = sphi 0, %s270
      %s288 = sphi 0, %s288
      %s290 = sphi 0, %s288
      %s291 = sphi 0, %s290
      %s305 = sphi 0, %s291
      %s311 = sphi 0, %s313
      %s314 = sphi 0, %s311
      %s315 = sphi 0, %s314
      %s331 = sphi 0, %s315
    $region4: #{tpu_custom_call.1} parent=1 // loop_header_branch
      %26 = sbr.rel (%p24) target = $region8
    $region5: #{tpu_custom_call.1} parent=1 // loop_body
      %s28 = ssub.s32 %s23, 1
      %s29 = ssub.s32 %s23, 2
      %s30 = sadd.s32 %s23, 1
      %s31 = ssub.s32 %s23, %s30
      %p32 = scmp.eq.s32.totalorder %s31, 0
      %s34 = sadd.s32 %s33, 1
      %s35 = scalar_select %p32, %s33, %s34
      %p38 = pneg %p32
      %p39 = scmp.eq.s32.totalorder %s23, 2
      %p40 = por %p38, %p39
      %p41 = scmp.ne.s32.totalorder %s33, %s36
      %p42 = scmp.eq.s32.totalorder %s23, 0
      %p43 = por %p41, %p42
      %p44 = scmp.ne.s32.totalorder %s33, %s36
      %p45 = scmp.eq.s32.totalorder %s28, 2
      %p46 = por %p44, %p45
      %p47 = scmp.ne.s32.totalorder %s36, %s37
      %p48 = scmp.eq.s32.totalorder %s28, 0
      %p49 = por %p47, %p48
      %p50 = scmp.ne.s32.totalorder %s36, %s37
      %p51 = scmp.eq.s32.totalorder %s29, 2
      %p52 = por %p50, %p51
      %p54 = scmp.ne.s32.totalorder %s37, %s53
      %p55 = scmp.eq.s32.totalorder %s29, 0
      %p56 = por %p54, %p55
      %s58 = sadd.s32 %s57, 1
      %p61 = scmp.eq.s32.totalorder %s23, 2
      %p62 = scmp.ne.s32.totalorder %s57, %s59
      %p63 = scmp.eq.s32.totalorder %s23, 0
      %p64 = por %p62, %p63
      %p65 = scmp.ne.s32.totalorder %s57, %s59
      %p66 = scmp.eq.s32.totalorder %s28, 2
      %p67 = por %p65, %p66
      %p68 = scmp.ne.s32.totalorder %s59, %s60
      %p69 = scmp.eq.s32.totalorder %s28, 0
      %p70 = por %p68, %p69
      %p71 = scmp.ne.s32.totalorder %s59, %s60
      %p72 = scmp.eq.s32.totalorder %s29, 2
      %p73 = por %p71, %p72
      %p75 = scmp.ne.s32.totalorder %s60, %s74
      %p76 = scmp.eq.s32.totalorder %s29, 0
      %p77 = por %p75, %p76
      %s79 = sadd.s32 %s78, 1
      %p82 = scmp.eq.s32.totalorder %s23, 2
      %p83 = scmp.ne.s32.totalorder %s78, %s80
      %p84 = scmp.eq.s32.totalorder %s23, 0
      %p85 = por %p83, %p84
      %p86 = scmp.ne.s32.totalorder %s78, %s80
      %p87 = scmp.eq.s32.totalorder %s28, 2
      %p88 = por %p86, %p87
      %p89 = scmp.ne.s32.totalorder %s80, %s81
      %p90 = scmp.eq.s32.totalorder %s28, 0
      %p91 = por %p89, %p90
      %p92 = scmp.ne.s32.totalorder %s80, %s81
      %p93 = scmp.eq.s32.totalorder %s29, 2
      %p94 = por %p92, %p93
      %p96 = scmp.ne.s32.totalorder %s81, %s95
      %p97 = scmp.eq.s32.totalorder %s29, 0
      %p98 = por %p96, %p97
      %s100 = sadd.s32 %s99, 1
      %p103 = scmp.eq.s32.totalorder %s23, 2
      %p104 = scmp.ne.s32.totalorder %s99, %s101
      %p105 = scmp.eq.s32.totalorder %s23, 0
      %p106 = por %p104, %p105
      %p107 = scmp.ne.s32.totalorder %s99, %s101
      %p108 = scmp.eq.s32.totalorder %s28, 2
      %p109 = por %p107, %p108
      %p110 = scmp.ne.s32.totalorder %s101, %s102
      %p111 = scmp.eq.s32.totalorder %s28, 0
      %p112 = por %p110, %p111
      %p113 = scmp.ne.s32.totalorder %s101, %s102
      %p114 = scmp.eq.s32.totalorder %s29, 2
      %p115 = por %p113, %p114
      %p117 = scmp.ne.s32.totalorder %s102, %s116
      %p118 = scmp.eq.s32.totalorder %s29, 0
      %p119 = por %p117, %p118
      %s121 = sadd.s32 %s120, 1
      %p124 = scmp.eq.s32.totalorder %s23, 2
      %p125 = scmp.ne.s32.totalorder %s120, %s122
      %p126 = scmp.eq.s32.totalorder %s23, 0
      %p127 = por %p125, %p126
      %p128 = scmp.ne.s32.totalorder %s120, %s122
      %p129 = scmp.eq.s32.totalorder %s28, 2
      %p130 = por %p128, %p129
      %p131 = scmp.ne.s32.totalorder %s122, %s123
      %p132 = scmp.eq.s32.totalorder %s28, 0
      %p133 = por %p131, %p132
      %p134 = scmp.ne.s32.totalorder %s122, %s123
      %p135 = scmp.eq.s32.totalorder %s29, 2
      %p136 = por %p134, %p135
      %p138 = scmp.ne.s32.totalorder %s123, %s137
      %p139 = scmp.eq.s32.totalorder %s29, 0
      %p140 = por %p138, %p139
      %s142 = sadd.s32 %s141, 1
      %p145 = scmp.eq.s32.totalorder %s23, 2
      %p146 = scmp.ne.s32.totalorder %s141, %s143
      %p147 = scmp.eq.s32.totalorder %s23, 0
      %p148 = por %p146, %p147
      %p149 = scmp.ne.s32.totalorder %s141, %s143
      %p150 = scmp.eq.s32.totalorder %s28, 2
      %p151 = por %p149, %p150
      %p152 = scmp.ne.s32.totalorder %s143, %s144
      %p153 = scmp.eq.s32.totalorder %s28, 0
      %p154 = por %p152, %p153
      %p155 = scmp.ne.s32.totalorder %s143, %s144
      %p156 = scmp.eq.s32.totalorder %s29, 2
      %p157 = por %p155, %p156
      %p159 = scmp.ne.s32.totalorder %s144, %s158
      %p160 = scmp.eq.s32.totalorder %s29, 0
      %p161 = por %p159, %p160
      %s163 = sadd.s32 %s162, 1
      %p166 = scmp.eq.s32.totalorder %s23, 2
      %p167 = scmp.ne.s32.totalorder %s162, %s164
      %p168 = scmp.eq.s32.totalorder %s23, 0
      %p169 = por %p167, %p168
      %p170 = scmp.ne.s32.totalorder %s162, %s164
      %p171 = scmp.eq.s32.totalorder %s28, 2
      %p172 = por %p170, %p171
      %p173 = scmp.ne.s32.totalorder %s164, %s165
      %p174 = scmp.eq.s32.totalorder %s28, 0
      %p175 = por %p173, %p174
      %p176 = scmp.ne.s32.totalorder %s164, %s165
      %p177 = scmp.eq.s32.totalorder %s29, 2
      %p178 = por %p176, %p177
      %p180 = scmp.ne.s32.totalorder %s165, %s179
      %p181 = scmp.eq.s32.totalorder %s29, 0
      %p182 = por %p180, %p181
      %s184 = sadd.s32 %s183, 1
      %p187 = scmp.eq.s32.totalorder %s23, 2
      %p188 = scmp.ne.s32.totalorder %s183, %s185
      %p189 = scmp.eq.s32.totalorder %s23, 0
      %p190 = por %p188, %p189
      %p191 = scmp.ne.s32.totalorder %s183, %s185
      %p192 = scmp.eq.s32.totalorder %s28, 2
      %p193 = por %p191, %p192
      %p194 = scmp.ne.s32.totalorder %s185, %s186
      %p195 = scmp.eq.s32.totalorder %s28, 0
      %p196 = por %p194, %p195
      %p197 = scmp.ne.s32.totalorder %s185, %s186
      %p198 = scmp.eq.s32.totalorder %s29, 2
      %p199 = por %p197, %p198
      %p201 = scmp.ne.s32.totalorder %s186, %s200
      %p202 = scmp.eq.s32.totalorder %s29, 0
      %p203 = por %p201, %p202
      %s205 = sadd.s32 %s204, 1
      %p208 = scmp.eq.s32.totalorder %s23, 2
      %p209 = scmp.ne.s32.totalorder %s204, %s206
      %p210 = scmp.eq.s32.totalorder %s23, 0
      %p211 = por %p209, %p210
      %p212 = scmp.ne.s32.totalorder %s204, %s206
      %p213 = scmp.eq.s32.totalorder %s28, 2
      %p214 = por %p212, %p213
      %p215 = scmp.ne.s32.totalorder %s206, %s207
      %p216 = scmp.eq.s32.totalorder %s28, 0
      %p217 = por %p215, %p216
      %p218 = scmp.ne.s32.totalorder %s206, %s207
      %p219 = scmp.eq.s32.totalorder %s29, 2
      %p220 = por %p218, %p219
      %p222 = scmp.ne.s32.totalorder %s207, %s221
      %p223 = scmp.eq.s32.totalorder %s29, 0
      %p224 = por %p222, %p223
      %s226 = sadd.s32 %s225, 1
      %p229 = scmp.eq.s32.totalorder %s23, 2
      %p230 = scmp.ne.s32.totalorder %s225, %s227
      %p231 = scmp.eq.s32.totalorder %s23, 0
      %p232 = por %p230, %p231
      %p233 = scmp.ne.s32.totalorder %s225, %s227
      %p234 = scmp.eq.s32.totalorder %s28, 2
      %p235 = por %p233, %p234
      %p236 = scmp.ne.s32.totalorder %s227, %s228
      %p237 = scmp.eq.s32.totalorder %s28, 0
      %p238 = por %p236, %p237
      %p239 = scmp.ne.s32.totalorder %s227, %s228
      %p240 = scmp.eq.s32.totalorder %s29, 2
      %p241 = por %p239, %p240
      %p243 = scmp.ne.s32.totalorder %s228, %s242
      %p244 = scmp.eq.s32.totalorder %s29, 0
      %p245 = por %p243, %p244
      %s247 = sadd.s32 %s246, 1
      %p250 = scmp.eq.s32.totalorder %s23, 2
      %p251 = scmp.ne.s32.totalorder %s246, %s248
      %p252 = scmp.eq.s32.totalorder %s23, 0
      %p253 = por %p251, %p252
      %p254 = scmp.ne.s32.totalorder %s246, %s248
      %p255 = scmp.eq.s32.totalorder %s28, 2
      %p256 = por %p254, %p255
      %p257 = scmp.ne.s32.totalorder %s248, %s249
      %p258 = scmp.eq.s32.totalorder %s28, 0
      %p259 = por %p257, %p258
      %p260 = scmp.ne.s32.totalorder %s248, %s249
      %p261 = scmp.eq.s32.totalorder %s29, 2
      %p262 = por %p260, %p261
      %p264 = scmp.ne.s32.totalorder %s249, %s263
      %p265 = scmp.eq.s32.totalorder %s29, 0
      %p266 = por %p264, %p265
      %s268 = sadd.s32 %s267, 1
      %p271 = scmp.eq.s32.totalorder %s23, 2
      %p272 = scmp.ne.s32.totalorder %s267, %s269
      %p273 = scmp.eq.s32.totalorder %s23, 0
      %p274 = por %p272, %p273
      %p275 = scmp.ne.s32.totalorder %s267, %s269
      %p276 = scmp.eq.s32.totalorder %s28, 2
      %p277 = por %p275, %p276
      %p278 = scmp.ne.s32.totalorder %s269, %s270
      %p279 = scmp.eq.s32.totalorder %s28, 0
      %p280 = por %p278, %p279
      %p281 = scmp.ne.s32.totalorder %s269, %s270
      %p282 = scmp.eq.s32.totalorder %s29, 2
      %p283 = por %p281, %p282
      %p285 = scmp.ne.s32.totalorder %s270, %s284
      %p286 = scmp.eq.s32.totalorder %s29, 0
      %p287 = por %p285, %p286
      %s289 = sadd.s32 %s288, 1
      %p292 = scmp.eq.s32.totalorder %s23, 2
      %p293 = scmp.ne.s32.totalorder %s288, %s290
      %p294 = scmp.eq.s32.totalorder %s23, 0
      %p295 = por %p293, %p294
      %p296 = scmp.ne.s32.totalorder %s288, %s290
      %p297 = scmp.eq.s32.totalorder %s28, 2
      %p298 = por %p296, %p297
      %p299 = scmp.ne.s32.totalorder %s290, %s291
      %p300 = scmp.eq.s32.totalorder %s28, 0
      %p301 = por %p299, %p300
      %p302 = scmp.ne.s32.totalorder %s290, %s291
      %p303 = scmp.eq.s32.totalorder %s29, 2
      %p304 = por %p302, %p303
      %p306 = scmp.ne.s32.totalorder %s291, %s305
      %p307 = scmp.eq.s32.totalorder %s29, 0
      %p308 = por %p306, %p307
      %s309 = ssub.s32 %s23, %s30
      %p310 = scmp.eq.s32.totalorder %s309, 0
      %s312 = sadd.s32 %s311, 1
      %s313 = scalar_select %p310, %s311, %s312
      %p316 = pneg %p310
      %p317 = scmp.eq.s32.totalorder %s23, 2
      %p318 = por %p316, %p317
      %p319 = scmp.ne.s32.totalorder %s311, %s314
      %p320 = scmp.eq.s32.totalorder %s23, 0
      %p321 = por %p319, %p320
      %p322 = scmp.ne.s32.totalorder %s311, %s314
      %p323 = scmp.eq.s32.totalorder %s28, 2
      %p324 = por %p322, %p323
      %p325 = scmp.ne.s32.totalorder %s314, %s315
      %p326 = scmp.eq.s32.totalorder %s28, 0
      %p327 = por %p325, %p326
      %p328 = scmp.ne.s32.totalorder %s314, %s315
      %p329 = scmp.eq.s32.totalorder %s29, 2
      %p330 = por %p328, %p329
      %p332 = scmp.ne.s32.totalorder %s315, %s331
      %p333 = scmp.eq.s32.totalorder %s29, 0
      %p334 = por %p332, %p333
      %p335 = scmp.le.s32.totalorder 1, %s23
      %p336 = scmp.lt.s32.totalorder %s23, 4
      %p337 = pnand %p335, %p336
      %p338 = pneg %p337
      // Predicated region
      $region9: #{tpu_custom_call.1} parent=5 // pred_check
        _
      $region10: #{tpu_custom_call.1} parent=5 // pred_check_branch
        %340 = sbr.rel (%p337) target = $region12
      $region11: #{tpu_custom_call.1} parent=5 // pred_region
        %s341 = ssub.s32 %s23, 1
        // Predicated region
        $region13: #{tpu_custom_call.1} parent=11 // pred_check
          %p342 = pneg %p70
        $region14: #{tpu_custom_call.1} parent=11 // pred_check_branch
          %344 = sbr.rel (%p342) target = $region16
        $region15: #{tpu_custom_call.1} parent=11 // pred_region
          _
        $region16: #{tpu_custom_call.1} parent=11 // pred_fallthru
          _
        // Predicated region
        $region17: #{tpu_custom_call.1} parent=11 // pred_check
          %p345 = pneg %p91
        $region18: #{tpu_custom_call.1} parent=11 // pred_check_branch
          %347 = sbr.rel (%p345) target = $region20
        $region19: #{tpu_custom_call.1} parent=11 // pred_region
          _
        $region20: #{tpu_custom_call.1} parent=11 // pred_fallthru
          _
        // Predicated region
        $region21: #{tpu_custom_call.1} parent=11 // pred_check
          %p348 = pneg %p112
        $region22: #{tpu_custom_call.1} parent=11 // pred_check_branch
          %350 = sbr.rel (%p348) target = $region24
        $region23: #{tpu_custom_call.1} parent=11 // pred_region
          _
        $region24: #{tpu_custom_call.1} parent=11 // pred_fallthru
          _
        // Predicated region
        $region25: #{tpu_custom_call.1} parent=11 // pred_check
          %p351 = pneg %p133
        $region26: #{tpu_custom_call.1} parent=11 // pred_check_branch
          %353 = sbr.rel (%p351) target = $region28
        $region27: #{tpu_custom_call.1} parent=11 // pred_region
          _
        $region28: #{tpu_custom_call.1} parent=11 // pred_fallthru
          _
        // Predicated region
        $region29: #{tpu_custom_call.1} parent=11 // pred_check
          %p354 = pneg %p154
        $region30: #{tpu_custom_call.1} parent=11 // pred_check_branch
          %356 = sbr.rel (%p354) target = $region32
        $region31: #{tpu_custom_call.1} parent=11 // pred_region
          _
        $region32: #{tpu_custom_call.1} parent=11 // pred_fallthru
          _
        // Predicated region
        $region33: #{tpu_custom_call.1} parent=11 // pred_check
          %p357 = pneg %p175
        $region34: #{tpu_custom_call.1} parent=11 // pred_check_branch
          %359 = sbr.rel (%p357) target = $region36
        $region35: #{tpu_custom_call.1} parent=11 // pred_region
          _
        $region36: #{tpu_custom_call.1} parent=11 // pred_fallthru
          _
        // Predicated region
        $region37: #{tpu_custom_call.1} parent=11 // pred_check
          %p360 = pneg %p196
        $region38: #{tpu_custom_call.1} parent=11 // pred_check_branch
          %362 = sbr.rel (%p360) target = $region40
        $region39: #{tpu_custom_call.1} parent=11 // pred_region
          _
        $region40: #{tpu_custom_call.1} parent=11 // pred_fallthru
          _
        // Predicated region
        $region41: #{tpu_custom_call.1} parent=11 // pred_check
          %p363 = pneg %p217
        $region42: #{tpu_custom_call.1} parent=11 // pred_check_branch
          %365 = sbr.rel (%p363) target = $region44
        $region43: #{tpu_custom_call.1} parent=11 // pred_region
          _
        $region44: #{tpu_custom_call.1} parent=11 // pred_fallthru
          _
        // Predicated region
        $region45: #{tpu_custom_call.1} parent=11 // pred_check
          %p366 = pneg %p238
        $region46: #{tpu_custom_call.1} parent=11 // pred_check_branch
          %368 = sbr.rel (%p366) target = $region48
        $region47: #{tpu_custom_call.1} parent=11 // pred_region
          _
        $region48: #{tpu_custom_call.1} parent=11 // pred_fallthru
          _
        // Predicated region
        $region49: #{tpu_custom_call.1} parent=11 // pred_check
          %p369 = pneg %p259
        $region50: #{tpu_custom_call.1} parent=11 // pred_check_branch
          %371 = sbr.rel (%p369) target = $region52
        $region51: #{tpu_custom_call.1} parent=11 // pred_region
          _
        $region52: #{tpu_custom_call.1} parent=11 // pred_fallthru
          _
        // Predicated region
        $region53: #{tpu_custom_call.1} parent=11 // pred_check
          %p372 = pneg %p280
        $region54: #{tpu_custom_call.1} parent=11 // pred_check_branch
          %374 = sbr.rel (%p372) target = $region56
        $region55: #{tpu_custom_call.1} parent=11 // pred_region
          %376 = vsyncadd [#allocation4], 0
          %s377 = sshll.u32 %s11, 4
          %s378 = int_to_ptr.hbm [resolvable:$true] %s377
          %s379 = sshll.u32 [#allocation3], 4
          %s380 = int_to_ptr.vmem [resolvable:$true] %s379
          %385 = dma.hbm_to_vmem [thread:$0]  %s378, 16384, %s380, [#allocation4], 1024, 1024, 64
        $region56: #{tpu_custom_call.1} parent=11 // pred_fallthru
          _
        // Predicated region
        $region57: #{tpu_custom_call.1} parent=11 // pred_check
          %p386 = pneg %p301
        $region58: #{tpu_custom_call.1} parent=11 // pred_check_branch
          %388 = sbr.rel (%p386) target = $region60
        $region59: #{tpu_custom_call.1} parent=11 // pred_region
          _
        $region60: #{tpu_custom_call.1} parent=11 // pred_fallthru
          _
      $region12: #{tpu_custom_call.1} parent=5 // pred_fallthru
        _
      %p389 = scmp.lt.s32.totalorder %s23, 3
      // Predicated region
      $region61: #{tpu_custom_call.1} parent=5 // pred_check
        %p390 = pneg %p389
      $region62: #{tpu_custom_call.1} parent=5 // pred_check_branch
        %392 = sbr.rel (%p390) target = $region64
      $region63: #{tpu_custom_call.1} parent=5 // pred_region
        // Predicated region
        $region65: #{tpu_custom_call.1} parent=63 // pred_check
          %p393 = pneg %p43
        $region66: #{tpu_custom_call.1} parent=63 // pred_check_branch
          %395 = sbr.rel (%p393) target = $region68
        $region67: #{tpu_custom_call.1} parent=63 // pred_region
          %s396 = sand.u32 %s33, 1
          %s397 = sand.u32 %s33, 1
          %s398 = smul.addr %s397, 128
          %s399 = scalar_lea.vmem [#allocation2], %s398
          %s400 = smul.u32 4, %s23
          %s401 = smul.addr %s400, 8
          %s402 = scalar_lea.vmem %s0, %s401
          // Predicated region
          $region69: #{tpu_custom_call.1} parent=67 // pred_check
            _
          $region70: #{tpu_custom_call.1} parent=67 // pred_check_branch
            %404 = sbr.rel (0) target = $region72
          $region71: #{tpu_custom_call.1} parent=67 // pred_region
            // Predicated region
            $region73: #{tpu_custom_call.1} parent=71 // pred_check
              _
            $region74: #{tpu_custom_call.1} parent=71 // pred_check_branch
              %406 = sbr.rel (0) target = $region76
            $region75: #{tpu_custom_call.1} parent=71 // pred_region
              // Predicated region
              $region88: #{tpu_custom_call.1} parent=75 // pred_check
                _
              $region89: #{tpu_custom_call.1} parent=75 // pred_check_branch
                %452 = sbr.rel (0) target = $region91
              $region90: #{tpu_custom_call.1} parent=75 // pred_region
                loop: start=0, step=1, limit=1
                $region92: #{tpu_custom_call.1} parent=90 // loop_pre_header
                  _
                $region93: #{tpu_custom_call.1} parent=90 // loop_header
                  %s454 = sphi 0, %s458
                  %p455 = scmp.ge.s32.totalorder %s454, 1
                  %s459 = sphi %s402, %s402
                  %s460 = sphi %s399, %s399
                $region94: #{tpu_custom_call.1} parent=90 // loop_header_branch
                  %457 = sbr.rel (%p455) target = $region98
                $region95: #{tpu_custom_call.1} parent=90 // loop_body
                  %v461 = vld [vmem:[%s459] sm:$0xff]
                  %462 = vst [vmem:[%s460] sm:$0xff] %v461
                  %v463 = vld [vmem:[%s459 + $0x8] sm:$0xff]
                  %464 = vst [vmem:[%s460 + $0x8] sm:$0xff] %v463
                  %v465 = vld [vmem:[%s459 + $0x10] sm:$0xff]
                  %466 = vst [vmem:[%s460 + $0x10] sm:$0xff] %v465
                  %v467 = vld [vmem:[%s459 + $0x18] sm:$0xff]
                  %468 = vst [vmem:[%s460 + $0x18] sm:$0xff] %v467
                  %v469 = vld [vmem:[%s459 + $0x60] sm:$0xff]
                  %470 = vst [vmem:[%s460 + $0x20] sm:$0xff] %v469
                  %v471 = vld [vmem:[%s459 + $0x68] sm:$0xff]
                  %472 = vst [vmem:[%s460 + $0x28] sm:$0xff] %v471
                  %v473 = vld [vmem:[%s459 + $0x70] sm:$0xff]
                  %474 = vst [vmem:[%s460 + $0x30] sm:$0xff] %v473
                  %v475 = vld [vmem:[%s459 + $0x78] sm:$0xff]
                  %476 = vst [vmem:[%s460 + $0x38] sm:$0xff] %v475
                  %v477 = vld [vmem:[%s459 + $0xc0] sm:$0xff]
                  %478 = vst [vmem:[%s460 + $0x40] sm:$0xff] %v477
                  %v479 = vld [vmem:[%s459 + $0xc8] sm:$0xff]
                  %480 = vst [vmem:[%s460 + $0x48] sm:$0xff] %v479
                  %v481 = vld [vmem:[%s459 + $0xd0] sm:$0xff]
                  %482 = vst [vmem:[%s460 + $0x50] sm:$0xff] %v481
                  %v483 = vld [vmem:[%s459 + $0xd8] sm:$0xff]
                  %484 = vst [vmem:[%s460 + $0x58] sm:$0xff] %v483
                  %v485 = vld [vmem:[%s459 + $0x120] sm:$0xff]
                  %486 = vst [vmem:[%s460 + $0x60] sm:$0xff] %v485
                  %v487 = vld [vmem:[%s459 + $0x128] sm:$0xff]
                  %488 = vst [vmem:[%s460 + $0x68] sm:$0xff] %v487
                  %v489 = vld [vmem:[%s459 + $0x130] sm:$0xff]
                  %490 = vst [vmem:[%s460 + $0x70] sm:$0xff] %v489
                  %v491 = vld [vmem:[%s459 + $0x138] sm:$0xff]
                  %492 = vst [vmem:[%s460 + $0x78] sm:$0xff] %v491
                $region96: #{tpu_custom_call.1} parent=90 // loop_footer
                  %s458 = sadd.s32 1, %s454
                $region97: #{tpu_custom_call.1} parent=90 // loop_footer_branch
                  %453 = sbr.rel target = $region93
                $region98: #{tpu_custom_call.1} parent=90 // loop_exit
                  _
              $region91: #{tpu_custom_call.1} parent=75 // pred_fallthru
                _
              // Predicated region
              $region99: #{tpu_custom_call.1} parent=75 // pred_check
                _
              $region100: #{tpu_custom_call.1} parent=75 // pred_check_branch
                %494 = sbr.rel target = $region102
              $region101: #{tpu_custom_call.1} parent=75 // pred_region
                _
              $region102: #{tpu_custom_call.1} parent=75 // pred_fallthru
                _
            $region76: #{tpu_custom_call.1} parent=71 // pred_fallthru
              _
            // Predicated region
            $region77: #{tpu_custom_call.1} parent=71 // pred_check
              _
            $region78: #{tpu_custom_call.1} parent=71 // pred_check_branch
              %408 = sbr.rel target = $region80
            $region79: #{tpu_custom_call.1} parent=71 // pred_region
              %s410 = ssub.s32 256, 1
              loop: start=0, step=1, limit=1
              $region81: #{tpu_custom_call.1} parent=79 // loop_pre_header
                _
              $region82: #{tpu_custom_call.1} parent=79 // loop_header
                %s412 = sphi 0, %s416
                %p413 = scmp.ge.s32.totalorder %s412, 1
                %s417 = sphi %s402, %s402
                %s418 = sphi %s399, %s399
              $region83: #{tpu_custom_call.1} parent=79 // loop_header_branch
                %415 = sbr.rel (%p413) target = $region87
              $region84: #{tpu_custom_call.1} parent=79 // loop_body
                %v419 = vld [vmem:[%s417] sm:%s410]
                %420 = vst [vmem:[%s418] sm:%s410] %v419
                %v421 = vld [vmem:[%s417 + $0x8] sm:%s410]
                %422 = vst [vmem:[%s418 + $0x8] sm:%s410] %v421
                %v423 = vld [vmem:[%s417 + $0x10] sm:%s410]
                %424 = vst [vmem:[%s418 + $0x10] sm:%s410] %v423
                %v425 = vld [vmem:[%s417 + $0x18] sm:%s410]
                %426 = vst [vmem:[%s418 + $0x18] sm:%s410] %v425
                %v427 = vld [vmem:[%s417 + $0x60] sm:%s410]
                %428 = vst [vmem:[%s418 + $0x20] sm:%s410] %v427
                %v429 = vld [vmem:[%s417 + $0x68] sm:%s410]
                %430 = vst [vmem:[%s418 + $0x28] sm:%s410] %v429
                %v431 = vld [vmem:[%s417 + $0x70] sm:%s410]
                %432 = vst [vmem:[%s418 + $0x30] sm:%s410] %v431
                %v433 = vld [vmem:[%s417 + $0x78] sm:%s410]
                %434 = vst [vmem:[%s418 + $0x38] sm:%s410] %v433
                %v435 = vld [vmem:[%s417 + $0xc0] sm:%s410]
                %436 = vst [vmem:[%s418 + $0x40] sm:%s410] %v435
                %v437 = vld [vmem:[%s417 + $0xc8] sm:%s410]
                %438 = vst [vmem:[%s418 + $0x48] sm:%s410] %v437
                %v439 = vld [vmem:[%s417 + $0xd0] sm:%s410]
                %440 = vst [vmem:[%s418 + $0x50] sm:%s410] %v439
                %v441 = vld [vmem:[%s417 + $0xd8] sm:%s410]
                %442 = vst [vmem:[%s418 + $0x58] sm:%s410] %v441
                %v443 = vld [vmem:[%s417 + $0x120] sm:%s410]
                %444 = vst [vmem:[%s418 + $0x60] sm:%s410] %v443
                %v445 = vld [vmem:[%s417 + $0x128] sm:%s410]
                %446 = vst [vmem:[%s418 + $0x68] sm:%s410] %v445
                %v447 = vld [vmem:[%s417 + $0x130] sm:%s410]
                %448 = vst [vmem:[%s418 + $0x70] sm:%s410] %v447
                %v449 = vld [vmem:[%s417 + $0x138] sm:%s410]
                %450 = vst [vmem:[%s418 + $0x78] sm:%s410] %v449
              $region85: #{tpu_custom_call.1} parent=79 // loop_footer
                %s416 = sadd.s32 1, %s412
              $region86: #{tpu_custom_call.1} parent=79 // loop_footer_branch
                %411 = sbr.rel target = $region82
              $region87: #{tpu_custom_call.1} parent=79 // loop_exit
                _
            $region80: #{tpu_custom_call.1} parent=71 // pred_fallthru
              _
          $region72: #{tpu_custom_call.1} parent=67 // pred_fallthru
            _
          %495 = vnop
        $region68: #{tpu_custom_call.1} parent=63 // pred_fallthru
          _
      $region64: #{tpu_custom_call.1} parent=5 // pred_fallthru
        _
      %p496 = scmp.le.s32.totalorder 1, %s23
      %p497 = scmp.lt.s32.totalorder %s23, 4
      %p498 = pnand %p496, %p497
      %p499 = pneg %p498
      // Predicated region
      $region103: #{tpu_custom_call.1} parent=5 // pred_check
        _
      $region104: #{tpu_custom_call.1} parent=5 // pred_check_branch
        %501 = sbr.rel (%p498) target = $region106
      $region105: #{tpu_custom_call.1} parent=5 // pred_region
        %s502 = ssub.s32 %s23, 1
        %s503 = sand.u32 %s36, 1
        %s504 = sand.u32 %s36, 1
        %s505 = smul.addr %s504, 128
        %s506 = scalar_lea.vmem [#allocation2], %s505
        // Predicated region
        $region107: #{tpu_custom_call.1} parent=105 // pred_check
          %p507 = pneg %p49
        $region108: #{tpu_custom_call.1} parent=105 // pred_check_branch
          %509 = sbr.rel (%p507) target = $region110
        $region109: #{tpu_custom_call.1} parent=105 // pred_region
          _
        $region110: #{tpu_custom_call.1} parent=105 // pred_fallthru
          _
        // Predicated region
        $region111: #{tpu_custom_call.1} parent=105 // pred_check
          %p510 = pneg %p280
        $region112: #{tpu_custom_call.1} parent=105 // pred_check_branch
          %512 = sbr.rel (%p510) target = $region114
        $region113: #{tpu_custom_call.1} parent=105 // pred_region
          %514 = dma.done [#allocation4], 16384
        $region114: #{tpu_custom_call.1} parent=105 // pred_fallthru
          _
        %s515 = sand.u32 %s36, 1
        %s516 = sand.u32 %s36, 1
        %s517 = smul.addr %s516, 128
        %s518 = scalar_lea.vmem [#allocation2], %s517
        %p519 = pneg %p49
        %p520 = pneg %p46
        %p521 = pneg %p70
        %p522 = pneg %p67
        %p523 = pneg %p91
        %p524 = pneg %p88
        %p525 = pneg %p112
        %p526 = pneg %p109
        %p527 = pneg %p133
        %p528 = pneg %p130
        %p529 = pneg %p154
        %p530 = pneg %p151
        %p531 = pneg %p175
        %p532 = pneg %p172
        %p533 = pneg %p196
        %p534 = pneg %p193
        %p535 = pneg %p217
        %p536 = pneg %p214
        %p537 = pneg %p238
        %p538 = pneg %p235
        %p539 = pneg %p259
        %p540 = pneg %p256
        %p541 = pneg %p280
        %p542 = pneg %p277
        %p543 = pneg %p301
        %p544 = pneg %p298
        %p545 = pneg %p327
        %p546 = pneg %p324
        %s547 = sand.u32 %s314, 1
        %s548 = scalar_lea.sflag [#allocation5], %s547
        %s549 = sand.u32 %s314, 1
        %s550 = smul.addr %s549, 32
        %s551 = scalar_lea.vmem [#allocation6], %s550
        %s552 = smul.u32 4, %s28
        %s553 = smul.u32 %s28, 32
        %v554 = vlaneseq
        %v555 = vshrl.u32 %v554, 7
        %v556 = vadd.s32 %v555, 8
        %v557 = vadd.s32 %v555, 16
        %v558 = vadd.s32 %v555, 24
        %v559 = vstv %s553
        %v560 = vadd.s32 %v559, %v555
        %v561 = vadd.s32 %v559, %v556
        %v562 = vadd.s32 %v559, %v557
        %v563 = vadd.s32 %v559, %v558
        %vm564 = vcmp.lt.s32.totalorder %v560, 80
        %vm565 = vcmp.lt.s32.totalorder %v561, 80
        %vm566 = vcmp.lt.s32.totalorder %v562, 80
        %vm567 = vcmp.lt.s32.totalorder %v563, 80
        %v568 = vld [vmem:[%s1] sm:$0x7]
        %v569 = vld [vmem:[%s2] sm:$0xff]
        %v570 = vld [vmem:[%s2 + $0x8] sm:$0xff]
        %v571 = vld [vmem:[%s2 + $0x10] sm:$0xff]
        %v572 = vld [vmem:[%s2 + $0x18] sm:$0xff]
        %v573 = vld [vmem:[%s2 + $0x20] sm:$0xff]
        %v574 = vld [vmem:[%s2 + $0x28] sm:$0xff]
        %v575 = vld [vmem:[%s2 + $0x30] sm:$0xff]
        %v576 = vld [vmem:[%s2 + $0x38] sm:$0xff]
        %v577 = vld [vmem:[%s3] sm:$0x7]
        %v578 = vld [vmem:[%s4] sm:$0x1]
        %v579 = vld [vmem:[%s5] sm:$0xff]
        %v580 = vld [vmem:[%s5 + $0x8] sm:$0xff]
        %v581 = vld [vmem:[%s5 + $0x10] sm:$0xff]
        %v582 = vld [vmem:[%s5 + $0x18] sm:$0xff]
        %v583 = vld [vmem:[%s5 + $0x20] sm:$0xff]
        %v584 = vld [vmem:[%s5 + $0x28] sm:$0xff]
        %v585 = vld [vmem:[%s5 + $0x30] sm:$0xff]
        %v586 = vld [vmem:[%s5 + $0x38] sm:$0xff]
        %v587 = vld [vmem:[%s6] sm:$0x1]
        %v588 = vld [vmem:[%s7] sm:$0xff]
        %v589 = vld [vmem:[%s7 + $0x8] sm:$0xff]
        %v590 = vld [vmem:[%s7 + $0x10] sm:$0xff]
        %v591 = vld [vmem:[%s7 + $0x18] sm:$0xff]
        %v592 = vld [vmem:[%s7 + $0x20] sm:$0xff]
        %v593 = vld [vmem:[%s7 + $0x28] sm:$0xff]
        %v594 = vld [vmem:[%s7 + $0x30] sm:$0xff]
        %v595 = vld [vmem:[%s7 + $0x38] sm:$0xff]
        %v596 = vld [vmem:[%s8] sm:$0x1]
        %v597 = vld [vmem:[%s9] sm:$0xff]
        %v598 = vld [vmem:[%s9 + $0x8] sm:$0xff]
        %v599 = vld [vmem:[%s9 + $0x10] sm:$0xff]
        %v600 = vld [vmem:[%s9 + $0x18] sm:$0xff]
        %v601 = vld [vmem:[%s9 + $0x20] sm:$0xff]
        %v602 = vld [vmem:[%s9 + $0x28] sm:$0xff]
        %v603 = vld [vmem:[%s9 + $0x30] sm:$0xff]
        %v604 = vld [vmem:[%s9 + $0x38] sm:$0xff]
        %v605 = vld [vmem:[%s10] sm:$0x1]
        %v606 = vld [vmem:[#allocation3] sm:$0xff]
        %v607 = vld [vmem:[#allocation3 + $0x8] sm:$0xff]
        %v608 = vld [vmem:[#allocation3 + $0x10] sm:$0xff]
        %v609 = vld [vmem:[#allocation3 + $0x18] sm:$0xff]
        %v610 = vld [vmem:[#allocation3 + $0x20] sm:$0xff]
        %v611 = vld [vmem:[#allocation3 + $0x28] sm:$0xff]
        %v612 = vld [vmem:[#allocation3 + $0x30] sm:$0xff]
        %v613 = vld [vmem:[#allocation3 + $0x38] sm:$0xff]
        %v614 = vld [vmem:[#allocation3 + $0x40] sm:$0xff]
        %v615 = vld [vmem:[#allocation3 + $0x48] sm:$0xff]
        %v616 = vld [vmem:[#allocation3 + $0x50] sm:$0xff]
        %v617 = vld [vmem:[#allocation3 + $0x58] sm:$0xff]
        %v618 = vld [vmem:[#allocation3 + $0x60] sm:$0xff]
        %v619 = vld [vmem:[#allocation3 + $0x68] sm:$0xff]
        %v620 = vld [vmem:[#allocation3 + $0x70] sm:$0xff]
        %v621 = vld [vmem:[#allocation3 + $0x78] sm:$0xff]
        %v622 = vld [vmem:[#allocation3 + $0x80] sm:$0xff]
        %v623 = vld [vmem:[#allocation3 + $0x88] sm:$0xff]
        %v624 = vld [vmem:[#allocation3 + $0x90] sm:$0xff]
        %v625 = vld [vmem:[#allocation3 + $0x98] sm:$0xff]
        %v626 = vld [vmem:[#allocation3 + $0xa0] sm:$0xff]
        %v627 = vld [vmem:[#allocation3 + $0xa8] sm:$0xff]
        %v628 = vld [vmem:[#allocation3 + $0xb0] sm:$0xff]
        %v629 = vld [vmem:[#allocation3 + $0xb8] sm:$0xff]
        %v630 = vld [vmem:[#allocation3 + $0xc0] sm:$0xff]
        %v631 = vld [vmem:[#allocation3 + $0xc8] sm:$0xff]
        %v632 = vld [vmem:[#allocation3 + $0xd0] sm:$0xff]
        %v633 = vld [vmem:[#allocation3 + $0xd8] sm:$0xff]
        %v634 = vld [vmem:[#allocation3 + $0xe0] sm:$0xff]
        %v635 = vld [vmem:[#allocation3 + $0xe8] sm:$0xff]
        %v636 = vld [vmem:[#allocation3 + $0xf0] sm:$0xff]
        %v637 = vld [vmem:[#allocation3 + $0xf8] sm:$0xff]
        %v638 = vld [vmem:[#allocation3 + $0x100] sm:$0xff]
        %v639 = vld [vmem:[#allocation3 + $0x108] sm:$0xff]
        %v640 = vld [vmem:[#allocation3 + $0x110] sm:$0xff]
        %v641 = vld [vmem:[#allocation3 + $0x118] sm:$0xff]
        %v642 = vld [vmem:[#allocation3 + $0x120] sm:$0xff]
        %v643 = vld [vmem:[#allocation3 + $0x128] sm:$0xff]
        %v644 = vld [vmem:[#allocation3 + $0x130] sm:$0xff]
        %v645 = vld [vmem:[#allocation3 + $0x138] sm:$0xff]
        %v646 = vld [vmem:[#allocation3 + $0x140] sm:$0xff]
        %v647 = vld [vmem:[#allocation3 + $0x148] sm:$0xff]
        %v648 = vld [vmem:[#allocation3 + $0x150] sm:$0xff]
        %v649 = vld [vmem:[#allocation3 + $0x158] sm:$0xff]
        %v650 = vld [vmem:[#allocation3 + $0x160] sm:$0xff]
        %v651 = vld [vmem:[#allocation3 + $0x168] sm:$0xff]
        %v652 = vld [vmem:[#allocation3 + $0x170] sm:$0xff]
        %v653 = vld [vmem:[#allocation3 + $0x178] sm:$0xff]
        %v654 = vld [vmem:[#allocation3 + $0x180] sm:$0xff]
        %v655 = vld [vmem:[#allocation3 + $0x188] sm:$0xff]
        %v656 = vld [vmem:[#allocation3 + $0x190] sm:$0xff]
        %v657 = vld [vmem:[#allocation3 + $0x198] sm:$0xff]
        %v658 = vld [vmem:[#allocation3 + $0x1a0] sm:$0xff]
        %v659 = vld [vmem:[#allocation3 + $0x1a8] sm:$0xff]
        %v660 = vld [vmem:[#allocation3 + $0x1b0] sm:$0xff]
        %v661 = vld [vmem:[#allocation3 + $0x1b8] sm:$0xff]
        %v662 = vld [vmem:[#allocation3 + $0x1c0] sm:$0xff]
        %v663 = vld [vmem:[#allocation3 + $0x1c8] sm:$0xff]
        %v664 = vld [vmem:[#allocation3 + $0x1d0] sm:$0xff]
        %v665 = vld [vmem:[#allocation3 + $0x1d8] sm:$0xff]
        %v666 = vld [vmem:[#allocation3 + $0x1e0] sm:$0xff]
        %v667 = vld [vmem:[#allocation3 + $0x1e8] sm:$0xff]
        %v668 = vld [vmem:[#allocation3 + $0x1f0] sm:$0xff]
        %v669 = vld [vmem:[#allocation3 + $0x1f8] sm:$0xff]
        %v670 = vld [vmem:[#allocation3 + $0x200] sm:$0xff]
        %v671 = vld [vmem:[#allocation3 + $0x208] sm:$0xff]
        %v672 = vld [vmem:[#allocation3 + $0x210] sm:$0xff]
        %v673 = vld [vmem:[#allocation3 + $0x218] sm:$0xff]
        %v674 = vld [vmem:[#allocation3 + $0x220] sm:$0xff]
        %v675 = vld [vmem:[#allocation3 + $0x228] sm:$0xff]
        %v676 = vld [vmem:[#allocation3 + $0x230] sm:$0xff]
        %v677 = vld [vmem:[#allocation3 + $0x238] sm:$0xff]
        %v678 = vld [vmem:[#allocation3 + $0x240] sm:$0xff]
        %v679 = vld [vmem:[#allocation3 + $0x248] sm:$0xff]
        %v680 = vld [vmem:[#allocation3 + $0x250] sm:$0xff]
        %v681 = vld [vmem:[#allocation3 + $0x258] sm:$0xff]
        %v682 = vld [vmem:[#allocation3 + $0x260] sm:$0xff]
        %v683 = vld [vmem:[#allocation3 + $0x268] sm:$0xff]
        %v684 = vld [vmem:[#allocation3 + $0x270] sm:$0xff]
        %v685 = vld [vmem:[#allocation3 + $0x278] sm:$0xff]
        %v686 = vld [vmem:[#allocation3 + $0x280] sm:$0xff]
        %v687 = vld [vmem:[#allocation3 + $0x288] sm:$0xff]
        %v688 = vld [vmem:[#allocation3 + $0x290] sm:$0xff]
        %v689 = vld [vmem:[#allocation3 + $0x298] sm:$0xff]
        %v690 = vld [vmem:[#allocation3 + $0x2a0] sm:$0xff]
        %v691 = vld [vmem:[#allocation3 + $0x2a8] sm:$0xff]
        %v692 = vld [vmem:[#allocation3 + $0x2b0] sm:$0xff]
        %v693 = vld [vmem:[#allocation3 + $0x2b8] sm:$0xff]
        %v694 = vld [vmem:[#allocation3 + $0x2c0] sm:$0xff]
        %v695 = vld [vmem:[#allocation3 + $0x2c8] sm:$0xff]
        %v696 = vld [vmem:[#allocation3 + $0x2d0] sm:$0xff]
        %v697 = vld [vmem:[#allocation3 + $0x2d8] sm:$0xff]
        %v698 = vld [vmem:[#allocation3 + $0x2e0] sm:$0xff]
        %v699 = vld [vmem:[#allocation3 + $0x2e8] sm:$0xff]
        %v700 = vld [vmem:[#allocation3 + $0x2f0] sm:$0xff]
        %v701 = vld [vmem:[#allocation3 + $0x2f8] sm:$0xff]
        %v702 = vld [vmem:[#allocation3 + $0x300] sm:$0xff]
        %v703 = vld [vmem:[#allocation3 + $0x308] sm:$0xff]
        %v704 = vld [vmem:[#allocation3 + $0x310] sm:$0xff]
        %v705 = vld [vmem:[#allocation3 + $0x318] sm:$0xff]
        %v706 = vld [vmem:[#allocation3 + $0x320] sm:$0xff]
        %v707 = vld [vmem:[#allocation3 + $0x328] sm:$0xff]
        %v708 = vld [vmem:[#allocation3 + $0x330] sm:$0xff]
        %v709 = vld [vmem:[#allocation3 + $0x338] sm:$0xff]
        %v710 = vld [vmem:[#allocation3 + $0x340] sm:$0xff]
        %v711 = vld [vmem:[#allocation3 + $0x348] sm:$0xff]
        %v712 = vld [vmem:[#allocation3 + $0x350] sm:$0xff]
        %v713 = vld [vmem:[#allocation3 + $0x358] sm:$0xff]
        %v714 = vld [vmem:[#allocation3 + $0x360] sm:$0xff]
        %v715 = vld [vmem:[#allocation3 + $0x368] sm:$0xff]
        %v716 = vld [vmem:[#allocation3 + $0x370] sm:$0xff]
        %v717 = vld [vmem:[#allocation3 + $0x378] sm:$0xff]
        %v718 = vld [vmem:[#allocation3 + $0x380] sm:$0xff]
        %v719 = vld [vmem:[#allocation3 + $0x388] sm:$0xff]
        %v720 = vld [vmem:[#allocation3 + $0x390] sm:$0xff]
        %v721 = vld [vmem:[#allocation3 + $0x398] sm:$0xff]
        %v722 = vld [vmem:[#allocation3 + $0x3a0] sm:$0xff]
        %v723 = vld [vmem:[#allocation3 + $0x3a8] sm:$0xff]
        %v724 = vld [vmem:[#allocation3 + $0x3b0] sm:$0xff]
        %v725 = vld [vmem:[#allocation3 + $0x3b8] sm:$0xff]
        %v726 = vld [vmem:[#allocation3 + $0x3c0] sm:$0xff]
        %v727 = vld [vmem:[#allocation3 + $0x3c8] sm:$0xff]
        %v728 = vld [vmem:[#allocation3 + $0x3d0] sm:$0xff]
        %v729 = vld [vmem:[#allocation3 + $0x3d8] sm:$0xff]
        %v730 = vld [vmem:[#allocation3 + $0x3e0] sm:$0xff]
        %v731 = vld [vmem:[#allocation3 + $0x3e8] sm:$0xff]
        %v732 = vld [vmem:[#allocation3 + $0x3f0] sm:$0xff]
        %v733 = vld [vmem:[#allocation3 + $0x3f8] sm:$0xff]
        %v734 = vld [vmem:[%s12] sm:$0xff]
        %v735 = vld [vmem:[%s506] sm:$0xff]
        %v736 = vld [vmem:[%s506 + $0x8] sm:$0xff]
        %v737 = vld [vmem:[%s506 + $0x10] sm:$0xff]
        %v738 = vld [vmem:[%s506 + $0x18] sm:$0xff]
        %s739 = scalar_lea.vmem %s506, 32 [#allocation2]
        %v740 = vld [vmem:[%s739] sm:$0xff]
        %v741 = vld [vmem:[%s739 + $0x8] sm:$0xff]
        %v742 = vld [vmem:[%s739 + $0x10] sm:$0xff]
        %v743 = vld [vmem:[%s739 + $0x18] sm:$0xff]
        %s744 = scalar_lea.vmem %s506, 64 [#allocation2]
        %v745 = vld [vmem:[%s744] sm:$0xff]
        %v746 = vld [vmem:[%s744 + $0x8] sm:$0xff]
        %v747 = vld [vmem:[%s744 + $0x10] sm:$0xff]
        %v748 = vld [vmem:[%s744 + $0x18] sm:$0xff]
        %s749 = scalar_lea.vmem %s506, 96 [#allocation2]
        %v750 = vld [vmem:[%s749] sm:$0xff]
        %v751 = vld [vmem:[%s749 + $0x8] sm:$0xff]
        %v752 = vld [vmem:[%s749 + $0x10] sm:$0xff]
        %v753 = vld [vmem:[%s749 + $0x18] sm:$0xff]
        %755 = vset.pattern.permute.xlu0 0
        %756 = vperm.xlu0 %755, %v735
        %v757 = vpop.permute.xlu0 %756
        %760 = vset.pattern.permute.xlu0 0
        %761 = vperm.xlu0 %760, %v736
        %v762 = vpop.permute.xlu0 %761
        %765 = vset.pattern.permute.xlu0 0
        %766 = vperm.xlu0 %765, %v737
        %v767 = vpop.permute.xlu0 %766
        %770 = vset.pattern.permute.xlu0 0
        %771 = vperm.xlu0 %770, %v738
        %v772 = vpop.permute.xlu0 %771
        %v774 = vperm.slane %v568, 0
        %v775 = vmul.f32 %v757, %v774
        %v776 = vmul.f32 %v762, %v774
        %v777 = vmul.f32 %v767, %v774
        %v778 = vmul.f32 %v772, %v774
        %779 = vset.pattern.permute.xlu0 1
        %780 = vperm.xlu0 %779, %v735
        %v781 = vpop.permute.xlu0 %780
        %783 = vset.pattern.permute.xlu0 1
        %784 = vperm.xlu0 %783, %v736
        %v785 = vpop.permute.xlu0 %784
        %787 = vset.pattern.permute.xlu0 1
        %788 = vperm.xlu0 %787, %v737
        %v789 = vpop.permute.xlu0 %788
        %791 = vset.pattern.permute.xlu0 1
        %792 = vperm.xlu0 %791, %v738
        %v793 = vpop.permute.xlu0 %792
        %v795 = vperm.slane %v568, 1
        %v796 = vmul.f32 %v781, %v795
        %v797 = vmul.f32 %v785, %v795
        %v798 = vmul.f32 %v789, %v795
        %v799 = vmul.f32 %v793, %v795
        %v800 = vadd.f32 %v775, %v796
        %v801 = vadd.f32 %v776, %v797
        %v802 = vadd.f32 %v777, %v798
        %v803 = vadd.f32 %v778, %v799
        %804 = vset.pattern.permute.xlu0 2
        %805 = vperm.xlu0 %804, %v735
        %v806 = vpop.permute.xlu0 %805
        %808 = vset.pattern.permute.xlu0 2
        %809 = vperm.xlu0 %808, %v736
        %v810 = vpop.permute.xlu0 %809
        %812 = vset.pattern.permute.xlu0 2
        %813 = vperm.xlu0 %812, %v737
        %v814 = vpop.permute.xlu0 %813
        %816 = vset.pattern.permute.xlu0 2
        %817 = vperm.xlu0 %816, %v738
        %v818 = vpop.permute.xlu0 %817
        %v820 = vperm.slane %v568, 2
        %v821 = vmul.f32 %v806, %v820
        %v822 = vmul.f32 %v810, %v820
        %v823 = vmul.f32 %v814, %v820
        %v824 = vmul.f32 %v818, %v820
        %v825 = vadd.f32 %v800, %v821
        %v826 = vadd.f32 %v801, %v822
        %v827 = vadd.f32 %v802, %v823
        %v828 = vadd.f32 %v803, %v824
        %830 = vset.pattern.permute.xlu0 0
        %831 = vperm.xlu0 %830, %v740
        %v832 = vpop.permute.xlu0 %831
        %835 = vset.pattern.permute.xlu0 0
        %836 = vperm.xlu0 %835, %v741
        %v837 = vpop.permute.xlu0 %836
        %840 = vset.pattern.permute.xlu0 0
        %841 = vperm.xlu0 %840, %v742
        %v842 = vpop.permute.xlu0 %841
        %845 = vset.pattern.permute.xlu0 0
        %846 = vperm.xlu0 %845, %v743
        %v847 = vpop.permute.xlu0 %846
        %v849 = vmul.f32 %v832, %v774
        %v850 = vmul.f32 %v837, %v774
        %v851 = vmul.f32 %v842, %v774
        %v852 = vmul.f32 %v847, %v774
        %853 = vset.pattern.permute.xlu0 1
        %854 = vperm.xlu0 %853, %v740
        %v855 = vpop.permute.xlu0 %854
        %857 = vset.pattern.permute.xlu0 1
        %858 = vperm.xlu0 %857, %v741
        %v859 = vpop.permute.xlu0 %858
        %861 = vset.pattern.permute.xlu0 1
        %862 = vperm.xlu0 %861, %v742
        %v863 = vpop.permute.xlu0 %862
        %865 = vset.pattern.permute.xlu0 1
        %866 = vperm.xlu0 %865, %v743
        %v867 = vpop.permute.xlu0 %866
        %v869 = vmul.f32 %v855, %v795
        %v870 = vmul.f32 %v859, %v795
        %v871 = vmul.f32 %v863, %v795
        %v872 = vmul.f32 %v867, %v795
        %v873 = vadd.f32 %v849, %v869
        %v874 = vadd.f32 %v850, %v870
        %v875 = vadd.f32 %v851, %v871
        %v876 = vadd.f32 %v852, %v872
        %877 = vset.pattern.permute.xlu0 2
        %878 = vperm.xlu0 %877, %v740
        %v879 = vpop.permute.xlu0 %878
        %881 = vset.pattern.permute.xlu0 2
        %882 = vperm.xlu0 %881, %v741
        %v883 = vpop.permute.xlu0 %882
        %885 = vset.pattern.permute.xlu0 2
        %886 = vperm.xlu0 %885, %v742
        %v887 = vpop.permute.xlu0 %886
        %889 = vset.pattern.permute.xlu0 2
        %890 = vperm.xlu0 %889, %v743
        %v891 = vpop.permute.xlu0 %890
        %v893 = vmul.f32 %v879, %v820
        %v894 = vmul.f32 %v883, %v820
        %v895 = vmul.f32 %v887, %v820
        %v896 = vmul.f32 %v891, %v820
        %v897 = vadd.f32 %v873, %v893
        %v898 = vadd.f32 %v874, %v894
        %v899 = vadd.f32 %v875, %v895
        %v900 = vadd.f32 %v876, %v896
        %902 = vset.pattern.permute.xlu0 0
        %903 = vperm.xlu0 %902, %v745
        %v904 = vpop.permute.xlu0 %903
        %907 = vset.pattern.permute.xlu0 0
        %908 = vperm.xlu0 %907, %v746
        %v909 = vpop.permute.xlu0 %908
        %912 = vset.pattern.permute.xlu0 0
        %913 = vperm.xlu0 %912, %v747
        %v914 = vpop.permute.xlu0 %913
        %917 = vset.pattern.permute.xlu0 0
        %918 = vperm.xlu0 %917, %v748
        %v919 = vpop.permute.xlu0 %918
        %v921 = vmul.f32 %v904, %v774
        %v922 = vmul.f32 %v909, %v774
        %v923 = vmul.f32 %v914, %v774
        %v924 = vmul.f32 %v919, %v774
        %925 = vset.pattern.permute.xlu0 1
        %926 = vperm.xlu0 %925, %v745
        %v927 = vpop.permute.xlu0 %926
        %929 = vset.pattern.permute.xlu0 1
        %930 = vperm.xlu0 %929, %v746
        %v931 = vpop.permute.xlu0 %930
        %933 = vset.pattern.permute.xlu0 1
        %934 = vperm.xlu0 %933, %v747
        %v935 = vpop.permute.xlu0 %934
        %937 = vset.pattern.permute.xlu0 1
        %938 = vperm.xlu0 %937, %v748
        %v939 = vpop.permute.xlu0 %938
        %v941 = vmul.f32 %v927, %v795
        %v942 = vmul.f32 %v931, %v795
        %v943 = vmul.f32 %v935, %v795
        %v944 = vmul.f32 %v939, %v795
        %v945 = vadd.f32 %v921, %v941
        %v946 = vadd.f32 %v922, %v942
        %v947 = vadd.f32 %v923, %v943
        %v948 = vadd.f32 %v924, %v944
        %949 = vset.pattern.permute.xlu0 2
        %950 = vperm.xlu0 %949, %v745
        %v951 = vpop.permute.xlu0 %950
        %953 = vset.pattern.permute.xlu0 2
        %954 = vperm.xlu0 %953, %v746
        %v955 = vpop.permute.xlu0 %954
        %957 = vset.pattern.permute.xlu0 2
        %958 = vperm.xlu0 %957, %v747
        %v959 = vpop.permute.xlu0 %958
        %961 = vset.pattern.permute.xlu0 2
        %962 = vperm.xlu0 %961, %v748
        %v963 = vpop.permute.xlu0 %962
        %v965 = vmul.f32 %v951, %v820
        %v966 = vmul.f32 %v955, %v820
        %v967 = vmul.f32 %v959, %v820
        %v968 = vmul.f32 %v963, %v820
        %v969 = vadd.f32 %v945, %v965
        %v970 = vadd.f32 %v946, %v966
        %v971 = vadd.f32 %v947, %v967
        %v972 = vadd.f32 %v948, %v968
        %974 = vset.pattern.permute.xlu0 0
        %975 = vperm.xlu0 %974, %v750
        %v976 = vpop.permute.xlu0 %975
        %979 = vset.pattern.permute.xlu0 0
        %980 = vperm.xlu0 %979, %v751
        %v981 = vpop.permute.xlu0 %980
        %984 = vset.pattern.permute.xlu0 0
        %985 = vperm.xlu0 %984, %v752
        %v986 = vpop.permute.xlu0 %985
        %989 = vset.pattern.permute.xlu0 0
        %990 = vperm.xlu0 %989, %v753
        %v991 = vpop.permute.xlu0 %990
        %v993 = vmul.f32 %v976, %v774
        %v994 = vmul.f32 %v981, %v774
        %v995 = vmul.f32 %v986, %v774
        %v996 = vmul.f32 %v991, %v774
        %997 = vset.pattern.permute.xlu0 1
        %998 = vperm.xlu0 %997, %v750
        %v999 = vpop.permute.xlu0 %998
        %1001 = vset.pattern.permute.xlu0 1
        %1002 = vperm.xlu0 %1001, %v751
        %v1003 = vpop.permute.xlu0 %1002
        %1005 = vset.pattern.permute.xlu0 1
        %1006 = vperm.xlu0 %1005, %v752
        %v1007 = vpop.permute.xlu0 %1006
        %1009 = vset.pattern.permute.xlu0 1
        %1010 = vperm.xlu0 %1009, %v753
        %v1011 = vpop.permute.xlu0 %1010
        %v1013 = vmul.f32 %v999, %v795
        %v1014 = vmul.f32 %v1003, %v795
        %v1015 = vmul.f32 %v1007, %v795
        %v1016 = vmul.f32 %v1011, %v795
        %v1017 = vadd.f32 %v993, %v1013
        %v1018 = vadd.f32 %v994, %v1014
        %v1019 = vadd.f32 %v995, %v1015
        %v1020 = vadd.f32 %v996, %v1016
        %1021 = vset.pattern.permute.xlu0 2
        %1022 = vperm.xlu0 %1021, %v750
        %v1023 = vpop.permute.xlu0 %1022
        %1025 = vset.pattern.permute.xlu0 2
        %1026 = vperm.xlu0 %1025, %v751
        %v1027 = vpop.permute.xlu0 %1026
        %1029 = vset.pattern.permute.xlu0 2
        %1030 = vperm.xlu0 %1029, %v752
        %v1031 = vpop.permute.xlu0 %1030
        %1033 = vset.pattern.permute.xlu0 2
        %1034 = vperm.xlu0 %1033, %v753
        %v1035 = vpop.permute.xlu0 %1034
        %v1037 = vmul.f32 %v1023, %v820
        %v1038 = vmul.f32 %v1027, %v820
        %v1039 = vmul.f32 %v1031, %v820
        %v1040 = vmul.f32 %v1035, %v820
        %v1041 = vadd.f32 %v1017, %v1037
        %v1042 = vadd.f32 %v1018, %v1038
        %v1043 = vadd.f32 %v1019, %v1039
        %v1044 = vadd.f32 %v1020, %v1040
        %1046 = vset.pattern.permute.xlu0 0
        %1047 = vperm.xlu0 %1046, %v825
        %v1048 = vpop.permute.xlu0 %1047
        %1051 = vset.pattern.permute.xlu0 0
        %1052 = vperm.xlu0 %1051, %v826
        %v1053 = vpop.permute.xlu0 %1052
        %1056 = vset.pattern.permute.xlu0 0
        %1057 = vperm.xlu0 %1056, %v827
        %v1058 = vpop.permute.xlu0 %1057
        %1061 = vset.pattern.permute.xlu0 0
        %1062 = vperm.xlu0 %1061, %v828
        %v1063 = vpop.permute.xlu0 %1062
        %v1065 = vperm.slane %v577, 0
        %v1066 = vmul.f32 %v1048, %v1065
        %v1067 = vmul.f32 %v1053, %v1065
        %v1068 = vmul.f32 %v1058, %v1065
        %v1069 = vmul.f32 %v1063, %v1065
        %1070 = vset.pattern.permute.xlu0 1
        %1071 = vperm.xlu0 %1070, %v825
        %v1072 = vpop.permute.xlu0 %1071
        %1074 = vset.pattern.permute.xlu0 1
        %1075 = vperm.xlu0 %1074, %v826
        %v1076 = vpop.permute.xlu0 %1075
        %1078 = vset.pattern.permute.xlu0 1
        %1079 = vperm.xlu0 %1078, %v827
        %v1080 = vpop.permute.xlu0 %1079
        %1082 = vset.pattern.permute.xlu0 1
        %1083 = vperm.xlu0 %1082, %v828
        %v1084 = vpop.permute.xlu0 %1083
        %v1086 = vperm.slane %v577, 1
        %v1087 = vmul.f32 %v1072, %v1086
        %v1088 = vmul.f32 %v1076, %v1086
        %v1089 = vmul.f32 %v1080, %v1086
        %v1090 = vmul.f32 %v1084, %v1086
        %v1091 = vadd.f32 %v1066, %v1087
        %v1092 = vadd.f32 %v1067, %v1088
        %v1093 = vadd.f32 %v1068, %v1089
        %v1094 = vadd.f32 %v1069, %v1090
        %1095 = vset.pattern.permute.xlu0 2
        %1096 = vperm.xlu0 %1095, %v825
        %v1097 = vpop.permute.xlu0 %1096
        %1099 = vset.pattern.permute.xlu0 2
        %1100 = vperm.xlu0 %1099, %v826
        %v1101 = vpop.permute.xlu0 %1100
        %1103 = vset.pattern.permute.xlu0 2
        %1104 = vperm.xlu0 %1103, %v827
        %v1105 = vpop.permute.xlu0 %1104
        %1107 = vset.pattern.permute.xlu0 2
        %1108 = vperm.xlu0 %1107, %v828
        %v1109 = vpop.permute.xlu0 %1108
        %v1111 = vperm.slane %v577, 2
        %v1112 = vmul.f32 %v1097, %v1111
        %v1113 = vmul.f32 %v1101, %v1111
        %v1114 = vmul.f32 %v1105, %v1111
        %v1115 = vmul.f32 %v1109, %v1111
        %v1116 = vadd.f32 %v1091, %v1112
        %v1117 = vadd.f32 %v1092, %v1113
        %v1118 = vadd.f32 %v1093, %v1114
        %v1119 = vadd.f32 %v1094, %v1115
        %v1121 = vperm.slane %v578, 0
        %v1123 = vadd.f32 %v1116, %v1121
        %v1124 = vadd.f32 %v1117, %v1121
        %v1125 = vadd.f32 %v1118, %v1121
        %v1126 = vadd.f32 %v1119, %v1121
        %1128 = vset.pattern.permute.xlu0 0
        %1129 = vperm.xlu0 %1128, %v897
        %v1130 = vpop.permute.xlu0 %1129
        %1133 = vset.pattern.permute.xlu0 0
        %1134 = vperm.xlu0 %1133, %v898
        %v1135 = vpop.permute.xlu0 %1134
        %1138 = vset.pattern.permute.xlu0 0
        %1139 = vperm.xlu0 %1138, %v899
        %v1140 = vpop.permute.xlu0 %1139
        %1143 = vset.pattern.permute.xlu0 0
        %1144 = vperm.xlu0 %1143, %v900
        %v1145 = vpop.permute.xlu0 %1144
        %v1147 = vmul.f32 %v1130, %v1065
        %v1148 = vmul.f32 %v1135, %v1065
        %v1149 = vmul.f32 %v1140, %v1065
        %v1150 = vmul.f32 %v1145, %v1065
        %1151 = vset.pattern.permute.xlu0 1
        %1152 = vperm.xlu0 %1151, %v897
        %v1153 = vpop.permute.xlu0 %1152
        %1155 = vset.pattern.permute.xlu0 1
        %1156 = vperm.xlu0 %1155, %v898
        %v1157 = vpop.permute.xlu0 %1156
        %1159 = vset.pattern.permute.xlu0 1
        %1160 = vperm.xlu0 %1159, %v899
        %v1161 = vpop.permute.xlu0 %1160
        %1163 = vset.pattern.permute.xlu0 1
        %1164 = vperm.xlu0 %1163, %v900
        %v1165 = vpop.permute.xlu0 %1164
        %v1167 = vmul.f32 %v1153, %v1086
        %v1168 = vmul.f32 %v1157, %v1086
        %v1169 = vmul.f32 %v1161, %v1086
        %v1170 = vmul.f32 %v1165, %v1086
        %v1171 = vadd.f32 %v1147, %v1167
        %v1172 = vadd.f32 %v1148, %v1168
        %v1173 = vadd.f32 %v1149, %v1169
        %v1174 = vadd.f32 %v1150, %v1170
        %1175 = vset.pattern.permute.xlu0 2
        %1176 = vperm.xlu0 %1175, %v897
        %v1177 = vpop.permute.xlu0 %1176
        %1179 = vset.pattern.permute.xlu0 2
        %1180 = vperm.xlu0 %1179, %v898
        %v1181 = vpop.permute.xlu0 %1180
        %1183 = vset.pattern.permute.xlu0 2
        %1184 = vperm.xlu0 %1183, %v899
        %v1185 = vpop.permute.xlu0 %1184
        %1187 = vset.pattern.permute.xlu0 2
        %1188 = vperm.xlu0 %1187, %v900
        %v1189 = vpop.permute.xlu0 %1188
        %v1191 = vmul.f32 %v1177, %v1111
        %v1192 = vmul.f32 %v1181, %v1111
        %v1193 = vmul.f32 %v1185, %v1111
        %v1194 = vmul.f32 %v1189, %v1111
        %v1195 = vadd.f32 %v1171, %v1191
        %v1196 = vadd.f32 %v1172, %v1192
        %v1197 = vadd.f32 %v1173, %v1193
        %v1198 = vadd.f32 %v1174, %v1194
        %v1199 = vadd.f32 %v1195, %v1121
        %v1200 = vadd.f32 %v1196, %v1121
        %v1201 = vadd.f32 %v1197, %v1121
        %v1202 = vadd.f32 %v1198, %v1121
        %1204 = vset.pattern.permute.xlu0 0
        %1205 = vperm.xlu0 %1204, %v969
        %v1206 = vpop.permute.xlu0 %1205
        %1209 = vset.pattern.permute.xlu0 0
        %1210 = vperm.xlu0 %1209, %v970
        %v1211 = vpop.permute.xlu0 %1210
        %1214 = vset.pattern.permute.xlu0 0
        %1215 = vperm.xlu0 %1214, %v971
        %v1216 = vpop.permute.xlu0 %1215
        %1219 = vset.pattern.permute.xlu0 0
        %1220 = vperm.xlu0 %1219, %v972
        %v1221 = vpop.permute.xlu0 %1220
        %v1223 = vmul.f32 %v1206, %v1065
        %v1224 = vmul.f32 %v1211, %v1065
        %v1225 = vmul.f32 %v1216, %v1065
        %v1226 = vmul.f32 %v1221, %v1065
        %1227 = vset.pattern.permute.xlu0 1
        %1228 = vperm.xlu0 %1227, %v969
        %v1229 = vpop.permute.xlu0 %1228
        %1231 = vset.pattern.permute.xlu0 1
        %1232 = vperm.xlu0 %1231, %v970
        %v1233 = vpop.permute.xlu0 %1232
        %1235 = vset.pattern.permute.xlu0 1
        %1236 = vperm.xlu0 %1235, %v971
        %v1237 = vpop.permute.xlu0 %1236
        %1239 = vset.pattern.permute.xlu0 1
        %1240 = vperm.xlu0 %1239, %v972
        %v1241 = vpop.permute.xlu0 %1240
        %v1243 = vmul.f32 %v1229, %v1086
        %v1244 = vmul.f32 %v1233, %v1086
        %v1245 = vmul.f32 %v1237, %v1086
        %v1246 = vmul.f32 %v1241, %v1086
        %v1247 = vadd.f32 %v1223, %v1243
        %v1248 = vadd.f32 %v1224, %v1244
        %v1249 = vadd.f32 %v1225, %v1245
        %v1250 = vadd.f32 %v1226, %v1246
        %1251 = vset.pattern.permute.xlu0 2
        %1252 = vperm.xlu0 %1251, %v969
        %v1253 = vpop.permute.xlu0 %1252
        %1255 = vset.pattern.permute.xlu0 2
        %1256 = vperm.xlu0 %1255, %v970
        %v1257 = vpop.permute.xlu0 %1256
        %1259 = vset.pattern.permute.xlu0 2
        %1260 = vperm.xlu0 %1259, %v971
        %v1261 = vpop.permute.xlu0 %1260
        %1263 = vset.pattern.permute.xlu0 2
        %1264 = vperm.xlu0 %1263, %v972
        %v1265 = vpop.permute.xlu0 %1264
        %v1267 = vmul.f32 %v1253, %v1111
        %v1268 = vmul.f32 %v1257, %v1111
        %v1269 = vmul.f32 %v1261, %v1111
        %v1270 = vmul.f32 %v1265, %v1111
        %v1271 = vadd.f32 %v1247, %v1267
        %v1272 = vadd.f32 %v1248, %v1268
        %v1273 = vadd.f32 %v1249, %v1269
        %v1274 = vadd.f32 %v1250, %v1270
        %v1275 = vadd.f32 %v1271, %v1121
        %v1276 = vadd.f32 %v1272, %v1121
        %v1277 = vadd.f32 %v1273, %v1121
        %v1278 = vadd.f32 %v1274, %v1121
        %1280 = vset.pattern.permute.xlu0 0
        %1281 = vperm.xlu0 %1280, %v1041
        %v1282 = vpop.permute.xlu0 %1281
        %1285 = vset.pattern.permute.xlu0 0
        %1286 = vperm.xlu0 %1285, %v1042
        %v1287 = vpop.permute.xlu0 %1286
        %1290 = vset.pattern.permute.xlu0 0
        %1291 = vperm.xlu0 %1290, %v1043
        %v1292 = vpop.permute.xlu0 %1291
        %1295 = vset.pattern.permute.xlu0 0
        %1296 = vperm.xlu0 %1295, %v1044
        %v1297 = vpop.permute.xlu0 %1296
        %v1299 = vmul.f32 %v1282, %v1065
        %v1300 = vmul.f32 %v1287, %v1065
        %v1301 = vmul.f32 %v1292, %v1065
        %v1302 = vmul.f32 %v1297, %v1065
        %1303 = vset.pattern.permute.xlu0 1
        %1304 = vperm.xlu0 %1303, %v1041
        %v1305 = vpop.permute.xlu0 %1304
        %1307 = vset.pattern.permute.xlu0 1
        %1308 = vperm.xlu0 %1307, %v1042
        %v1309 = vpop.permute.xlu0 %1308
        %1311 = vset.pattern.permute.xlu0 1
        %1312 = vperm.xlu0 %1311, %v1043
        %v1313 = vpop.permute.xlu0 %1312
        %1315 = vset.pattern.permute.xlu0 1
        %1316 = vperm.xlu0 %1315, %v1044
        %v1317 = vpop.permute.xlu0 %1316
        %v1319 = vmul.f32 %v1305, %v1086
        %v1320 = vmul.f32 %v1309, %v1086
        %v1321 = vmul.f32 %v1313, %v1086
        %v1322 = vmul.f32 %v1317, %v1086
        %v1323 = vadd.f32 %v1299, %v1319
        %v1324 = vadd.f32 %v1300, %v1320
        %v1325 = vadd.f32 %v1301, %v1321
        %v1326 = vadd.f32 %v1302, %v1322
        %1327 = vset.pattern.permute.xlu0 2
        %1328 = vperm.xlu0 %1327, %v1041
        %v1329 = vpop.permute.xlu0 %1328
        %1331 = vset.pattern.permute.xlu0 2
        %1332 = vperm.xlu0 %1331, %v1042
        %v1333 = vpop.permute.xlu0 %1332
        %1335 = vset.pattern.permute.xlu0 2
        %1336 = vperm.xlu0 %1335, %v1043
        %v1337 = vpop.permute.xlu0 %1336
        %1339 = vset.pattern.permute.xlu0 2
        %1340 = vperm.xlu0 %1339, %v1044
        %v1341 = vpop.permute.xlu0 %1340
        %v1343 = vmul.f32 %v1329, %v1111
        %v1344 = vmul.f32 %v1333, %v1111
        %v1345 = vmul.f32 %v1337, %v1111
        %v1346 = vmul.f32 %v1341, %v1111
        %v1347 = vadd.f32 %v1323, %v1343
        %v1348 = vadd.f32 %v1324, %v1344
        %v1349 = vadd.f32 %v1325, %v1345
        %v1350 = vadd.f32 %v1326, %v1346
        %v1351 = vadd.f32 %v1347, %v1121
        %v1352 = vadd.f32 %v1348, %v1121
        %v1353 = vadd.f32 %v1349, %v1121
        %v1354 = vadd.f32 %v1350, %v1121
        %vm1355 = vcmask 523264
        %v1356 = vsel %vm1355, %v1123, 0.0
        %1357 = vadd.xlane.f32.xlu0 %v1356
        %v1358 = vpop.xlane.xlu0 %1357
        %v1359 = vsel %vm1355, %v1124, 0.0
        %1360 = vadd.xlane.f32.xlu0 %v1359
        %v1361 = vpop.xlane.xlu0 %1360
        %v1362 = vsel %vm1355, %v1125, 0.0
        %1363 = vadd.xlane.f32.xlu0 %v1362
        %v1364 = vpop.xlane.xlu0 %1363
        %v1365 = vsel %vm1355, %v1126, 0.0
        %1366 = vadd.xlane.f32.xlu0 %v1365
        %v1367 = vpop.xlane.xlu0 %1366
        %v1368 = vsel %vm1355, %v1199, 0.0
        %1369 = vadd.xlane.f32.xlu0 %v1368
        %v1370 = vpop.xlane.xlu0 %1369
        %v1371 = vsel %vm1355, %v1200, 0.0
        %1372 = vadd.xlane.f32.xlu0 %v1371
        %v1373 = vpop.xlane.xlu0 %1372
        %v1374 = vsel %vm1355, %v1201, 0.0
        %1375 = vadd.xlane.f32.xlu0 %v1374
        %v1376 = vpop.xlane.xlu0 %1375
        %v1377 = vsel %vm1355, %v1202, 0.0
        %1378 = vadd.xlane.f32.xlu0 %v1377
        %v1379 = vpop.xlane.xlu0 %1378
        %v1380 = vadd.f32 %v1358, %v1370
        %v1381 = vadd.f32 %v1361, %v1373
        %v1382 = vadd.f32 %v1364, %v1376
        %v1383 = vadd.f32 %v1367, %v1379
        %v1384 = vsel %vm1355, %v1275, 0.0
        %1385 = vadd.xlane.f32.xlu0 %v1384
        %v1386 = vpop.xlane.xlu0 %1385
        %v1387 = vsel %vm1355, %v1276, 0.0
        %1388 = vadd.xlane.f32.xlu0 %v1387
        %v1389 = vpop.xlane.xlu0 %1388
        %v1390 = vsel %vm1355, %v1277, 0.0
        %1391 = vadd.xlane.f32.xlu0 %v1390
        %v1392 = vpop.xlane.xlu0 %1391
        %v1393 = vsel %vm1355, %v1278, 0.0
        %1394 = vadd.xlane.f32.xlu0 %v1393
        %v1395 = vpop.xlane.xlu0 %1394
        %v1396 = vadd.f32 %v1380, %v1386
        %v1397 = vadd.f32 %v1381, %v1389
        %v1398 = vadd.f32 %v1382, %v1392
        %v1399 = vadd.f32 %v1383, %v1395
        %v1400 = vsel %vm1355, %v1351, 0.0
        %1401 = vadd.xlane.f32.xlu0 %v1400
        %v1402 = vpop.xlane.xlu0 %1401
        %v1403 = vsel %vm1355, %v1352, 0.0
        %1404 = vadd.xlane.f32.xlu0 %v1403
        %v1405 = vpop.xlane.xlu0 %1404
        %v1406 = vsel %vm1355, %v1353, 0.0
        %1407 = vadd.xlane.f32.xlu0 %v1406
        %v1408 = vpop.xlane.xlu0 %1407
        %v1409 = vsel %vm1355, %v1354, 0.0
        %1410 = vadd.xlane.f32.xlu0 %v1409
        %v1411 = vpop.xlane.xlu0 %1410
        %v1412 = vadd.f32 %v1396, %v1402
        %v1413 = vadd.f32 %v1397, %v1405
        %v1414 = vadd.f32 %v1398, %v1408
        %v1415 = vadd.f32 %v1399, %v1411
        %v1416 = vmul.f32 %v1412, 0.00390625
        %v1417 = vmul.f32 %v1413, 0.00390625
        %v1418 = vmul.f32 %v1414, 0.00390625
        %v1419 = vmul.f32 %v1415, 0.00390625
        %v1420 = vsub.f32 %v1123, %v1416
        %v1421 = vsub.f32 %v1124, %v1417
        %v1422 = vsub.f32 %v1125, %v1418
        %v1423 = vsub.f32 %v1126, %v1419
        %v1424 = vsub.f32 %v1199, %v1416
        %v1425 = vsub.f32 %v1200, %v1417
        %v1426 = vsub.f32 %v1201, %v1418
        %v1427 = vsub.f32 %v1202, %v1419
        %v1428 = vsub.f32 %v1275, %v1416
        %v1429 = vsub.f32 %v1276, %v1417
        %v1430 = vsub.f32 %v1277, %v1418
        %v1431 = vsub.f32 %v1278, %v1419
        %v1432 = vsub.f32 %v1351, %v1416
        %v1433 = vsub.f32 %v1352, %v1417
        %v1434 = vsub.f32 %v1353, %v1418
        %v1435 = vsub.f32 %v1354, %v1419
        %v1436 = vmul.f32 %v1420, %v1420
        %v1437 = vmul.f32 %v1421, %v1421
        %v1438 = vmul.f32 %v1422, %v1422
        %v1439 = vmul.f32 %v1423, %v1423
        %v1440 = vsel %vm1355, %v1436, 0.0
        %1441 = vadd.xlane.f32.xlu0 %v1440
        %v1442 = vpop.xlane.xlu0 %1441
        %v1443 = vsel %vm1355, %v1437, 0.0
        %1444 = vadd.xlane.f32.xlu0 %v1443
        %v1445 = vpop.xlane.xlu0 %1444
        %v1446 = vsel %vm1355, %v1438, 0.0
        %1447 = vadd.xlane.f32.xlu0 %v1446
        %v1448 = vpop.xlane.xlu0 %1447
        %v1449 = vsel %vm1355, %v1439, 0.0
        %1450 = vadd.xlane.f32.xlu0 %v1449
        %v1451 = vpop.xlane.xlu0 %1450
        %v1452 = vmul.f32 %v1424, %v1424
        %v1453 = vmul.f32 %v1425, %v1425
        %v1454 = vmul.f32 %v1426, %v1426
        %v1455 = vmul.f32 %v1427, %v1427
        %v1456 = vsel %vm1355, %v1452, 0.0
        %1457 = vadd.xlane.f32.xlu0 %v1456
        %v1458 = vpop.xlane.xlu0 %1457
        %v1459 = vsel %vm1355, %v1453, 0.0
        %1460 = vadd.xlane.f32.xlu0 %v1459
        %v1461 = vpop.xlane.xlu0 %1460
        %v1462 = vsel %vm1355, %v1454, 0.0
        %1463 = vadd.xlane.f32.xlu0 %v1462
        %v1464 = vpop.xlane.xlu0 %1463
        %v1465 = vsel %vm1355, %v1455, 0.0
        %1466 = vadd.xlane.f32.xlu0 %v1465
        %v1467 = vpop.xlane.xlu0 %1466
        %v1468 = vadd.f32 %v1442, %v1458
        %v1469 = vadd.f32 %v1445, %v1461
        %v1470 = vadd.f32 %v1448, %v1464
        %v1471 = vadd.f32 %v1451, %v1467
        %v1472 = vmul.f32 %v1428, %v1428
        %v1473 = vmul.f32 %v1429, %v1429
        %v1474 = vmul.f32 %v1430, %v1430
        %v1475 = vmul.f32 %v1431, %v1431
        %v1476 = vsel %vm1355, %v1472, 0.0
        %1477 = vadd.xlane.f32.xlu0 %v1476
        %v1478 = vpop.xlane.xlu0 %1477
        %v1479 = vsel %vm1355, %v1473, 0.0
        %1480 = vadd.xlane.f32.xlu0 %v1479
        %v1481 = vpop.xlane.xlu0 %1480
        %v1482 = vsel %vm1355, %v1474, 0.0
        %1483 = vadd.xlane.f32.xlu0 %v1482
        %v1484 = vpop.xlane.xlu0 %1483
        %v1485 = vsel %vm1355, %v1475, 0.0
        %1486 = vadd.xlane.f32.xlu0 %v1485
        %v1487 = vpop.xlane.xlu0 %1486
        %v1488 = vadd.f32 %v1468, %v1478
        %v1489 = vadd.f32 %v1469, %v1481
        %v1490 = vadd.f32 %v1470, %v1484
        %v1491 = vadd.f32 %v1471, %v1487
        %v1492 = vmul.f32 %v1432, %v1432
        %v1493 = vmul.f32 %v1433, %v1433
        %v1494 = vmul.f32 %v1434, %v1434
        %v1495 = vmul.f32 %v1435, %v1435
        %v1496 = vsel %vm1355, %v1492, 0.0
        %1497 = vadd.xlane.f32.xlu0 %v1496
        %v1498 = vpop.xlane.xlu0 %1497
        %v1499 = vsel %vm1355, %v1493, 0.0
        %1500 = vadd.xlane.f32.xlu0 %v1499
        %v1501 = vpop.xlane.xlu0 %1500
        %v1502 = vsel %vm1355, %v1494, 0.0
        %1503 = vadd.xlane.f32.xlu0 %v1502
        %v1504 = vpop.xlane.xlu0 %1503
        %v1505 = vsel %vm1355, %v1495, 0.0
        %1506 = vadd.xlane.f32.xlu0 %v1505
        %v1507 = vpop.xlane.xlu0 %1506
        %v1508 = vadd.f32 %v1488, %v1498
        %v1509 = vadd.f32 %v1489, %v1501
        %v1510 = vadd.f32 %v1490, %v1504
        %v1511 = vadd.f32 %v1491, %v1507
        %v1512 = vmul.f32 %v1508, 0.00390625
        %v1513 = vmul.f32 %v1509, 0.00390625
        %v1514 = vmul.f32 %v1510, 0.00390625
        %v1515 = vmul.f32 %v1511, 0.00390625
        %v1516 = vadd.f32 %v1512, 1e-05
        %v1517 = vadd.f32 %v1513, 1e-05
        %v1518 = vadd.f32 %v1514, 1e-05
        %v1519 = vadd.f32 %v1515, 1e-05
        %v1520 = vrsqrt.pop %v1516
        %v1521 = vmul.f32 %v1520, %v1516
        %v1522 = vmul.f32 %v1521, %v1520
        %v1523 = vmul.f32 0.5, %v1522
        %v1524 = vsub.f32 1.5, %v1523
        %v1525 = vmul.f32 %v1520, %v1524
        %vm1526 = vweird.f32 %v1516
        %vm1527 = vweird.f32 %v1520
        %vm1528 = vmor %vm1526, %vm1527
        %v1529 = vsel %vm1528, %v1520, %v1525
        %v1530 = vrsqrt.pop %v1517
        %v1531 = vmul.f32 %v1530, %v1517
        %v1532 = vmul.f32 %v1531, %v1530
        %v1533 = vmul.f32 0.5, %v1532
        %v1534 = vsub.f32 1.5, %v1533
        %v1535 = vmul.f32 %v1530, %v1534
        %vm1536 = vweird.f32 %v1517
        %vm1537 = vweird.f32 %v1530
        %vm1538 = vmor %vm1536, %vm1537
        %v1539 = vsel %vm1538, %v1530, %v1535
        %v1540 = vrsqrt.pop %v1518
        %v1541 = vmul.f32 %v1540, %v1518
        %v1542 = vmul.f32 %v1541, %v1540
        %v1543 = vmul.f32 0.5, %v1542
        %v1544 = vsub.f32 1.5, %v1543
        %v1545 = vmul.f32 %v1540, %v1544
        %vm1546 = vweird.f32 %v1518
        %vm1547 = vweird.f32 %v1540
        %vm1548 = vmor %vm1546, %vm1547
        %v1549 = vsel %vm1548, %v1540, %v1545
        %v1550 = vrsqrt.pop %v1519
        %v1551 = vmul.f32 %v1550, %v1519
        %v1552 = vmul.f32 %v1551, %v1550
        %v1553 = vmul.f32 0.5, %v1552
        %v1554 = vsub.f32 1.5, %v1553
        %v1555 = vmul.f32 %v1550, %v1554
        %vm1556 = vweird.f32 %v1519
        %vm1557 = vweird.f32 %v1550
        %vm1558 = vmor %vm1556, %vm1557
        %v1559 = vsel %vm1558, %v1550, %v1555
        %v1560 = vmul.f32 %v1420, %v1529
        %v1561 = vmul.f32 %v1421, %v1539
        %v1562 = vmul.f32 %v1422, %v1549
        %v1563 = vmul.f32 %v1423, %v1559
        %v1564 = vmax.f32 %v1560, 0.0
        %v1565 = vmax.f32 %v1561, 0.0
        %v1566 = vmax.f32 %v1562, 0.0
        %v1567 = vmax.f32 %v1563, 0.0
        %v1568 = vmul.f32 %v1424, %v1529
        %v1569 = vmul.f32 %v1425, %v1539
        %v1570 = vmul.f32 %v1426, %v1549
        %v1571 = vmul.f32 %v1427, %v1559
        %v1572 = vmax.f32 %v1568, 0.0
        %v1573 = vmax.f32 %v1569, 0.0
        %v1574 = vmax.f32 %v1570, 0.0
        %v1575 = vmax.f32 %v1571, 0.0
        %v1576 = vmul.f32 %v1428, %v1529
        %v1577 = vmul.f32 %v1429, %v1539
        %v1578 = vmul.f32 %v1430, %v1549
        %v1579 = vmul.f32 %v1431, %v1559
        %v1580 = vmax.f32 %v1576, 0.0
        %v1581 = vmax.f32 %v1577, 0.0
        %v1582 = vmax.f32 %v1578, 0.0
        %v1583 = vmax.f32 %v1579, 0.0
        %v1584 = vmul.f32 %v1432, %v1529
        %v1585 = vmul.f32 %v1433, %v1539
        %v1586 = vmul.f32 %v1434, %v1549
        %v1587 = vmul.f32 %v1435, %v1559
        %v1588 = vmax.f32 %v1584, 0.0
        %v1589 = vmax.f32 %v1585, 0.0
        %v1590 = vmax.f32 %v1586, 0.0
        %v1591 = vmax.f32 %v1587, 0.0
        %v1593 = vperm.slane %v587, 0
        %v1596 = vsel %vm1355, %v1564, 0
        %v1599 = vsel %vm1355, %v1565, 0
        %v1602 = vsel %vm1355, %v1566, 0
        %v1605 = vsel %vm1355, %v1567, 0
        %1607 = vmatpush.msra.mxu0 0.0
        %1608 = vmatpush.msra.mxu0 0.0
        %1609 = vmatpush.msra.mxu0 0.0
        %1610 = vmatpush.msra.mxu0 0.0
        %1611 = vmatpush.msra.mxu0 0.0
        %1612 = vmatpush.msra.mxu0 0.0
        %1613 = vmatpush.msra.mxu0 0.0
        %1614 = vmatpush.msra.mxu0 0.0
        %1615 = vmatpush.msra.mxu0 %v586
        %1616 = vmatpush.msra.mxu0 %v585
        %1617 = vmatpush.msra.mxu0 %v584
        %1618 = vmatpush.msra.mxu0 %v583
        %1619 = vmatpush.msra.mxu0 %v582
        %1620 = vmatpush.msra.mxu0 %v581
        %1621 = vmatpush.msra.mxu0 %v580
        %1622 = vmatpush.msra.mxu0 %v579
        %1623 = vmatmul.f32.gmra.mxu0 %v1596
        %v1624 = vpop.f32.mrf.mxu0
        %v1625 = vadd.f32 %v1593, %v1624
        %1626 = vmatmul.f32.gmra.mxu0 %v1599
        %v1627 = vpop.f32.mrf.mxu0
        %v1628 = vadd.f32 %v1593, %v1627
        %1629 = vmatmul.f32.gmra.mxu0 %v1602
        %v1630 = vpop.f32.mrf.mxu0
        %v1631 = vadd.f32 %v1593, %v1630
        %1632 = vmatmul.f32.gmra.mxu0 %v1605
        %v1633 = vpop.f32.mrf.mxu0
        %v1634 = vadd.f32 %v1593, %v1633
        %1635 = vdwg.mxu0
        %v1637 = vsel %vm1355, %v1572, 0
        %v1640 = vsel %vm1355, %v1573, 0
        %v1643 = vsel %vm1355, %v1574, 0
        %v1646 = vsel %vm1355, %v1575, 0
        %1648 = vmatpush.msra.mxu0 0.0
        %1649 = vmatpush.msra.mxu0 0.0
        %1650 = vmatpush.msra.mxu0 0.0
        %1651 = vmatpush.msra.mxu0 0.0
        %1652 = vmatpush.msra.mxu0 0.0
        %1653 = vmatpush.msra.mxu0 0.0
        %1654 = vmatpush.msra.mxu0 0.0
        %1655 = vmatpush.msra.mxu0 0.0
        %1656 = vmatpush.msra.mxu0 %v586
        %1657 = vmatpush.msra.mxu0 %v585
        %1658 = vmatpush.msra.mxu0 %v584
        %1659 = vmatpush.msra.mxu0 %v583
        %1660 = vmatpush.msra.mxu0 %v582
        %1661 = vmatpush.msra.mxu0 %v581
        %1662 = vmatpush.msra.mxu0 %v580
        %1663 = vmatpush.msra.mxu0 %v579
        %1664 = vmatmul.f32.gmra.mxu0 %v1637
        %v1665 = vpop.f32.mrf.mxu0
        %v1666 = vadd.f32 %v1593, %v1665
        %1667 = vmatmul.f32.gmra.mxu0 %v1640
        %v1668 = vpop.f32.mrf.mxu0
        %v1669 = vadd.f32 %v1593, %v1668
        %1670 = vmatmul.f32.gmra.mxu0 %v1643
        %v1671 = vpop.f32.mrf.mxu0
        %v1672 = vadd.f32 %v1593, %v1671
        %1673 = vmatmul.f32.gmra.mxu0 %v1646
        %v1674 = vpop.f32.mrf.mxu0
        %v1675 = vadd.f32 %v1593, %v1674
        %1676 = vdwg.mxu0
        %v1678 = vsel %vm1355, %v1580, 0
        %v1681 = vsel %vm1355, %v1581, 0
        %v1684 = vsel %vm1355, %v1582, 0
        %v1687 = vsel %vm1355, %v1583, 0
        %1689 = vmatpush.msra.mxu0 0.0
        %1690 = vmatpush.msra.mxu0 0.0
        %1691 = vmatpush.msra.mxu0 0.0
        %1692 = vmatpush.msra.mxu0 0.0
        %1693 = vmatpush.msra.mxu0 0.0
        %1694 = vmatpush.msra.mxu0 0.0
        %1695 = vmatpush.msra.mxu0 0.0
        %1696 = vmatpush.msra.mxu0 0.0
        %1697 = vmatpush.msra.mxu0 %v586
        %1698 = vmatpush.msra.mxu0 %v585
        %1699 = vmatpush.msra.mxu0 %v584
        %1700 = vmatpush.msra.mxu0 %v583
        %1701 = vmatpush.msra.mxu0 %v582
        %1702 = vmatpush.msra.mxu0 %v581
        %1703 = vmatpush.msra.mxu0 %v580
        %1704 = vmatpush.msra.mxu0 %v579
        %1705 = vmatmul.f32.gmra.mxu0 %v1678
        %v1706 = vpop.f32.mrf.mxu0
        %v1707 = vadd.f32 %v1593, %v1706
        %1708 = vmatmul.f32.gmra.mxu0 %v1681
        %v1709 = vpop.f32.mrf.mxu0
        %v1710 = vadd.f32 %v1593, %v1709
        %1711 = vmatmul.f32.gmra.mxu0 %v1684
        %v1712 = vpop.f32.mrf.mxu0
        %v1713 = vadd.f32 %v1593, %v1712
        %1714 = vmatmul.f32.gmra.mxu0 %v1687
        %v1715 = vpop.f32.mrf.mxu0
        %v1716 = vadd.f32 %v1593, %v1715
        %1717 = vdwg.mxu0
        %v1719 = vsel %vm1355, %v1588, 0
        %v1722 = vsel %vm1355, %v1589, 0
        %v1725 = vsel %vm1355, %v1590, 0
        %v1728 = vsel %vm1355, %v1591, 0
        %1730 = vmatpush.msra.mxu0 0.0
        %1731 = vmatpush.msra.mxu0 0.0
        %1732 = vmatpush.msra.mxu0 0.0
        %1733 = vmatpush.msra.mxu0 0.0
        %1734 = vmatpush.msra.mxu0 0.0
        %1735 = vmatpush.msra.mxu0 0.0
        %1736 = vmatpush.msra.mxu0 0.0
        %1737 = vmatpush.msra.mxu0 0.0
        %1738 = vmatpush.msra.mxu0 %v586
        %1739 = vmatpush.msra.mxu0 %v585
        %1740 = vmatpush.msra.mxu0 %v584
        %1741 = vmatpush.msra.mxu0 %v583
        %1742 = vmatpush.msra.mxu0 %v582
        %1743 = vmatpush.msra.mxu0 %v581
        %1744 = vmatpush.msra.mxu0 %v580
        %1745 = vmatpush.msra.mxu0 %v579
        %1746 = vmatmul.f32.gmra.mxu0 %v1719
        %v1747 = vpop.f32.mrf.mxu0
        %v1748 = vadd.f32 %v1593, %v1747
        %1749 = vmatmul.f32.gmra.mxu0 %v1722
        %v1750 = vpop.f32.mrf.mxu0
        %v1751 = vadd.f32 %v1593, %v1750
        %1752 = vmatmul.f32.gmra.mxu0 %v1725
        %v1753 = vpop.f32.mrf.mxu0
        %v1754 = vadd.f32 %v1593, %v1753
        %1755 = vmatmul.f32.gmra.mxu0 %v1728
        %v1756 = vpop.f32.mrf.mxu0
        %v1757 = vadd.f32 %v1593, %v1756
        %1758 = vdwg.mxu0
        %v1759 = vsel %vm1355, %v1625, 0.0
        %1760 = vadd.xlane.f32.xlu0 %v1759
        %v1761 = vpop.xlane.xlu0 %1760
        %v1762 = vsel %vm1355, %v1628, 0.0
        %1763 = vadd.xlane.f32.xlu0 %v1762
        %v1764 = vpop.xlane.xlu0 %1763
        %v1765 = vsel %vm1355, %v1631, 0.0
        %1766 = vadd.xlane.f32.xlu0 %v1765
        %v1767 = vpop.xlane.xlu0 %1766
        %v1768 = vsel %vm1355, %v1634, 0.0
        %1769 = vadd.xlane.f32.xlu0 %v1768
        %v1770 = vpop.xlane.xlu0 %1769
        %v1771 = vsel %vm1355, %v1666, 0.0
        %1772 = vadd.xlane.f32.xlu0 %v1771
        %v1773 = vpop.xlane.xlu0 %1772
        %v1774 = vsel %vm1355, %v1669, 0.0
        %1775 = vadd.xlane.f32.xlu0 %v1774
        %v1776 = vpop.xlane.xlu0 %1775
        %v1777 = vsel %vm1355, %v1672, 0.0
        %1778 = vadd.xlane.f32.xlu0 %v1777
        %v1779 = vpop.xlane.xlu0 %1778
        %v1780 = vsel %vm1355, %v1675, 0.0
        %1781 = vadd.xlane.f32.xlu0 %v1780
        %v1782 = vpop.xlane.xlu0 %1781
        %v1783 = vadd.f32 %v1761, %v1773
        %v1784 = vadd.f32 %v1764, %v1776
        %v1785 = vadd.f32 %v1767, %v1779
        %v1786 = vadd.f32 %v1770, %v1782
        %v1787 = vsel %vm1355, %v1707, 0.0
        %1788 = vadd.xlane.f32.xlu0 %v1787
        %v1789 = vpop.xlane.xlu0 %1788
        %v1790 = vsel %vm1355, %v1710, 0.0
        %1791 = vadd.xlane.f32.xlu0 %v1790
        %v1792 = vpop.xlane.xlu0 %1791
        %v1793 = vsel %vm1355, %v1713, 0.0
        %1794 = vadd.xlane.f32.xlu0 %v1793
        %v1795 = vpop.xlane.xlu0 %1794
        %v1796 = vsel %vm1355, %v1716, 0.0
        %1797 = vadd.xlane.f32.xlu0 %v1796
        %v1798 = vpop.xlane.xlu0 %1797
        %v1799 = vadd.f32 %v1783, %v1789
        %v1800 = vadd.f32 %v1784, %v1792
        %v1801 = vadd.f32 %v1785, %v1795
        %v1802 = vadd.f32 %v1786, %v1798
        %v1803 = vsel %vm1355, %v1748, 0.0
        %1804 = vadd.xlane.f32.xlu0 %v1803
        %v1805 = vpop.xlane.xlu0 %1804
        %v1806 = vsel %vm1355, %v1751, 0.0
        %1807 = vadd.xlane.f32.xlu0 %v1806
        %v1808 = vpop.xlane.xlu0 %1807
        %v1809 = vsel %vm1355, %v1754, 0.0
        %1810 = vadd.xlane.f32.xlu0 %v1809
        %v1811 = vpop.xlane.xlu0 %1810
        %v1812 = vsel %vm1355, %v1757, 0.0
        %1813 = vadd.xlane.f32.xlu0 %v1812
        %v1814 = vpop.xlane.xlu0 %1813
        %v1815 = vadd.f32 %v1799, %v1805
        %v1816 = vadd.f32 %v1800, %v1808
        %v1817 = vadd.f32 %v1801, %v1811
        %v1818 = vadd.f32 %v1802, %v1814
        %v1819 = vmul.f32 %v1815, 0.00390625
        %v1820 = vmul.f32 %v1816, 0.00390625
        %v1821 = vmul.f32 %v1817, 0.00390625
        %v1822 = vmul.f32 %v1818, 0.00390625
        %v1823 = vsub.f32 %v1625, %v1819
        %v1824 = vsub.f32 %v1628, %v1820
        %v1825 = vsub.f32 %v1631, %v1821
        %v1826 = vsub.f32 %v1634, %v1822
        %v1827 = vsub.f32 %v1666, %v1819
        %v1828 = vsub.f32 %v1669, %v1820
        %v1829 = vsub.f32 %v1672, %v1821
        %v1830 = vsub.f32 %v1675, %v1822
        %v1831 = vsub.f32 %v1707, %v1819
        %v1832 = vsub.f32 %v1710, %v1820
        %v1833 = vsub.f32 %v1713, %v1821
        %v1834 = vsub.f32 %v1716, %v1822
        %v1835 = vsub.f32 %v1748, %v1819
        %v1836 = vsub.f32 %v1751, %v1820
        %v1837 = vsub.f32 %v1754, %v1821
        %v1838 = vsub.f32 %v1757, %v1822
        %v1839 = vmul.f32 %v1823, %v1823
        %v1840 = vmul.f32 %v1824, %v1824
        %v1841 = vmul.f32 %v1825, %v1825
        %v1842 = vmul.f32 %v1826, %v1826
        %v1843 = vsel %vm1355, %v1839, 0.0
        %1844 = vadd.xlane.f32.xlu0 %v1843
        %v1845 = vpop.xlane.xlu0 %1844
        %v1846 = vsel %vm1355, %v1840, 0.0
        %1847 = vadd.xlane.f32.xlu0 %v1846
        %v1848 = vpop.xlane.xlu0 %1847
        %v1849 = vsel %vm1355, %v1841, 0.0
        %1850 = vadd.xlane.f32.xlu0 %v1849
        %v1851 = vpop.xlane.xlu0 %1850
        %v1852 = vsel %vm1355, %v1842, 0.0
        %1853 = vadd.xlane.f32.xlu0 %v1852
        %v1854 = vpop.xlane.xlu0 %1853
        %v1855 = vmul.f32 %v1827, %v1827
        %v1856 = vmul.f32 %v1828, %v1828
        %v1857 = vmul.f32 %v1829, %v1829
        %v1858 = vmul.f32 %v1830, %v1830
        %v1859 = vsel %vm1355, %v1855, 0.0
        %1860 = vadd.xlane.f32.xlu0 %v1859
        %v1861 = vpop.xlane.xlu0 %1860
        %v1862 = vsel %vm1355, %v1856, 0.0
        %1863 = vadd.xlane.f32.xlu0 %v1862
        %v1864 = vpop.xlane.xlu0 %1863
        %v1865 = vsel %vm1355, %v1857, 0.0
        %1866 = vadd.xlane.f32.xlu0 %v1865
        %v1867 = vpop.xlane.xlu0 %1866
        %v1868 = vsel %vm1355, %v1858, 0.0
        %1869 = vadd.xlane.f32.xlu0 %v1868
        %v1870 = vpop.xlane.xlu0 %1869
        %v1871 = vadd.f32 %v1845, %v1861
        %v1872 = vadd.f32 %v1848, %v1864
        %v1873 = vadd.f32 %v1851, %v1867
        %v1874 = vadd.f32 %v1854, %v1870
        %v1875 = vmul.f32 %v1831, %v1831
        %v1876 = vmul.f32 %v1832, %v1832
        %v1877 = vmul.f32 %v1833, %v1833
        %v1878 = vmul.f32 %v1834, %v1834
        %v1879 = vsel %vm1355, %v1875, 0.0
        %1880 = vadd.xlane.f32.xlu0 %v1879
        %v1881 = vpop.xlane.xlu0 %1880
        %v1882 = vsel %vm1355, %v1876, 0.0
        %1883 = vadd.xlane.f32.xlu0 %v1882
        %v1884 = vpop.xlane.xlu0 %1883
        %v1885 = vsel %vm1355, %v1877, 0.0
        %1886 = vadd.xlane.f32.xlu0 %v1885
        %v1887 = vpop.xlane.xlu0 %1886
        %v1888 = vsel %vm1355, %v1878, 0.0
        %1889 = vadd.xlane.f32.xlu0 %v1888
        %v1890 = vpop.xlane.xlu0 %1889
        %v1891 = vadd.f32 %v1871, %v1881
        %v1892 = vadd.f32 %v1872, %v1884
        %v1893 = vadd.f32 %v1873, %v1887
        %v1894 = vadd.f32 %v1874, %v1890
        %v1895 = vmul.f32 %v1835, %v1835
        %v1896 = vmul.f32 %v1836, %v1836
        %v1897 = vmul.f32 %v1837, %v1837
        %v1898 = vmul.f32 %v1838, %v1838
        %v1899 = vsel %vm1355, %v1895, 0.0
        %1900 = vadd.xlane.f32.xlu0 %v1899
        %v1901 = vpop.xlane.xlu0 %1900
        %v1902 = vsel %vm1355, %v1896, 0.0
        %1903 = vadd.xlane.f32.xlu0 %v1902
        %v1904 = vpop.xlane.xlu0 %1903
        %v1905 = vsel %vm1355, %v1897, 0.0
        %1906 = vadd.xlane.f32.xlu0 %v1905
        %v1907 = vpop.xlane.xlu0 %1906
        %v1908 = vsel %vm1355, %v1898, 0.0
        %1909 = vadd.xlane.f32.xlu0 %v1908
        %v1910 = vpop.xlane.xlu0 %1909
        %v1911 = vadd.f32 %v1891, %v1901
        %v1912 = vadd.f32 %v1892, %v1904
        %v1913 = vadd.f32 %v1893, %v1907
        %v1914 = vadd.f32 %v1894, %v1910
        %v1915 = vmul.f32 %v1911, 0.00390625
        %v1916 = vmul.f32 %v1912, 0.00390625
        %v1917 = vmul.f32 %v1913, 0.00390625
        %v1918 = vmul.f32 %v1914, 0.00390625
        %v1919 = vadd.f32 %v1915, 1e-05
        %v1920 = vadd.f32 %v1916, 1e-05
        %v1921 = vadd.f32 %v1917, 1e-05
        %v1922 = vadd.f32 %v1918, 1e-05
        %v1923 = vrsqrt.pop %v1919
        %v1924 = vmul.f32 %v1923, %v1919
        %v1925 = vmul.f32 %v1924, %v1923
        %v1926 = vmul.f32 0.5, %v1925
        %v1927 = vsub.f32 1.5, %v1926
        %v1928 = vmul.f32 %v1923, %v1927
        %vm1929 = vweird.f32 %v1919
        %vm1930 = vweird.f32 %v1923
        %vm1931 = vmor %vm1929, %vm1930
        %v1932 = vsel %vm1931, %v1923, %v1928
        %v1933 = vrsqrt.pop %v1920
        %v1934 = vmul.f32 %v1933, %v1920
        %v1935 = vmul.f32 %v1934, %v1933
        %v1936 = vmul.f32 0.5, %v1935
        %v1937 = vsub.f32 1.5, %v1936
        %v1938 = vmul.f32 %v1933, %v1937
        %vm1939 = vweird.f32 %v1920
        %vm1940 = vweird.f32 %v1933
        %vm1941 = vmor %vm1939, %vm1940
        %v1942 = vsel %vm1941, %v1933, %v1938
        %v1943 = vrsqrt.pop %v1921
        %v1944 = vmul.f32 %v1943, %v1921
        %v1945 = vmul.f32 %v1944, %v1943
        %v1946 = vmul.f32 0.5, %v1945
        %v1947 = vsub.f32 1.5, %v1946
        %v1948 = vmul.f32 %v1943, %v1947
        %vm1949 = vweird.f32 %v1921
        %vm1950 = vweird.f32 %v1943
        %vm1951 = vmor %vm1949, %vm1950
        %v1952 = vsel %vm1951, %v1943, %v1948
        %v1953 = vrsqrt.pop %v1922
        %v1954 = vmul.f32 %v1953, %v1922
        %v1955 = vmul.f32 %v1954, %v1953
        %v1956 = vmul.f32 0.5, %v1955
        %v1957 = vsub.f32 1.5, %v1956
        %v1958 = vmul.f32 %v1953, %v1957
        %vm1959 = vweird.f32 %v1922
        %vm1960 = vweird.f32 %v1953
        %vm1961 = vmor %vm1959, %vm1960
        %v1962 = vsel %vm1961, %v1953, %v1958
        %v1963 = vmul.f32 %v1823, %v1932
        %v1964 = vmul.f32 %v1824, %v1942
        %v1965 = vmul.f32 %v1825, %v1952
        %v1966 = vmul.f32 %v1826, %v1962
        %v1967 = vmax.f32 %v1963, 0.0
        %v1968 = vmax.f32 %v1964, 0.0
        %v1969 = vmax.f32 %v1965, 0.0
        %v1970 = vmax.f32 %v1966, 0.0
        %v1971 = vmul.f32 %v1827, %v1932
        %v1972 = vmul.f32 %v1828, %v1942
        %v1973 = vmul.f32 %v1829, %v1952
        %v1974 = vmul.f32 %v1830, %v1962
        %v1975 = vmax.f32 %v1971, 0.0
        %v1976 = vmax.f32 %v1972, 0.0
        %v1977 = vmax.f32 %v1973, 0.0
        %v1978 = vmax.f32 %v1974, 0.0
        %v1979 = vmul.f32 %v1831, %v1932
        %v1980 = vmul.f32 %v1832, %v1942
        %v1981 = vmul.f32 %v1833, %v1952
        %v1982 = vmul.f32 %v1834, %v1962
        %v1983 = vmax.f32 %v1979, 0.0
        %v1984 = vmax.f32 %v1980, 0.0
        %v1985 = vmax.f32 %v1981, 0.0
        %v1986 = vmax.f32 %v1982, 0.0
        %v1987 = vmul.f32 %v1835, %v1932
        %v1988 = vmul.f32 %v1836, %v1942
        %v1989 = vmul.f32 %v1837, %v1952
        %v1990 = vmul.f32 %v1838, %v1962
        %v1991 = vmax.f32 %v1987, 0.0
        %v1992 = vmax.f32 %v1988, 0.0
        %v1993 = vmax.f32 %v1989, 0.0
        %v1994 = vmax.f32 %v1990, 0.0
        %v1996 = vsel %vm1355, %v1967, 0
        %v1999 = vsel %vm1355, %v1968, 0
        %v2002 = vsel %vm1355, %v1969, 0
        %v2005 = vsel %vm1355, %v1970, 0
        %2007 = vmatpush.msra.mxu0 0.0
        %2008 = vmatpush.msra.mxu0 0.0
        %2009 = vmatpush.msra.mxu0 0.0
        %2010 = vmatpush.msra.mxu0 0.0
        %2011 = vmatpush.msra.mxu0 0.0
        %2012 = vmatpush.msra.mxu0 0.0
        %2013 = vmatpush.msra.mxu0 0.0
        %2014 = vmatpush.msra.mxu0 0.0
        %2015 = vmatpush.msra.mxu0 %v576
        %2016 = vmatpush.msra.mxu0 %v575
        %2017 = vmatpush.msra.mxu0 %v574
        %2018 = vmatpush.msra.mxu0 %v573
        %2019 = vmatpush.msra.mxu0 %v572
        %2020 = vmatpush.msra.mxu0 %v571
        %2021 = vmatpush.msra.mxu0 %v570
        %2022 = vmatpush.msra.mxu0 %v569
        %2023 = vmatmul.f32.gmra.mxu0 %v1996
        %v2024 = vpop.f32.mrf.mxu0
        %v2025 = vadd.f32 0.0, %v2024
        %2026 = vmatmul.f32.gmra.mxu0 %v1999
        %v2027 = vpop.f32.mrf.mxu0
        %v2028 = vadd.f32 0.0, %v2027
        %2029 = vmatmul.f32.gmra.mxu0 %v2002
        %v2030 = vpop.f32.mrf.mxu0
        %v2031 = vadd.f32 0.0, %v2030
        %2032 = vmatmul.f32.gmra.mxu0 %v2005
        %v2033 = vpop.f32.mrf.mxu0
        %v2034 = vadd.f32 0.0, %v2033
        %2035 = vdwg.mxu0
        %v2037 = vsel %vm1355, %v1975, 0
        %v2040 = vsel %vm1355, %v1976, 0
        %v2043 = vsel %vm1355, %v1977, 0
        %v2046 = vsel %vm1355, %v1978, 0
        %2048 = vmatpush.msra.mxu0 0.0
        %2049 = vmatpush.msra.mxu0 0.0
        %2050 = vmatpush.msra.mxu0 0.0
        %2051 = vmatpush.msra.mxu0 0.0
        %2052 = vmatpush.msra.mxu0 0.0
        %2053 = vmatpush.msra.mxu0 0.0
        %2054 = vmatpush.msra.mxu0 0.0
        %2055 = vmatpush.msra.mxu0 0.0
        %2056 = vmatpush.msra.mxu0 %v576
        %2057 = vmatpush.msra.mxu0 %v575
        %2058 = vmatpush.msra.mxu0 %v574
        %2059 = vmatpush.msra.mxu0 %v573
        %2060 = vmatpush.msra.mxu0 %v572
        %2061 = vmatpush.msra.mxu0 %v571
        %2062 = vmatpush.msra.mxu0 %v570
        %2063 = vmatpush.msra.mxu0 %v569
        %2064 = vmatmul.f32.gmra.mxu0 %v2037
        %v2065 = vpop.f32.mrf.mxu0
        %v2066 = vadd.f32 0.0, %v2065
        %2067 = vmatmul.f32.gmra.mxu0 %v2040
        %v2068 = vpop.f32.mrf.mxu0
        %v2069 = vadd.f32 0.0, %v2068
        %2070 = vmatmul.f32.gmra.mxu0 %v2043
        %v2071 = vpop.f32.mrf.mxu0
        %v2072 = vadd.f32 0.0, %v2071
        %2073 = vmatmul.f32.gmra.mxu0 %v2046
        %v2074 = vpop.f32.mrf.mxu0
        %v2075 = vadd.f32 0.0, %v2074
        %2076 = vdwg.mxu0
        %v2078 = vsel %vm1355, %v1983, 0
        %v2081 = vsel %vm1355, %v1984, 0
        %v2084 = vsel %vm1355, %v1985, 0
        %v2087 = vsel %vm1355, %v1986, 0
        %2089 = vmatpush.msra.mxu0 0.0
        %2090 = vmatpush.msra.mxu0 0.0
        %2091 = vmatpush.msra.mxu0 0.0
        %2092 = vmatpush.msra.mxu0 0.0
        %2093 = vmatpush.msra.mxu0 0.0
        %2094 = vmatpush.msra.mxu0 0.0
        %2095 = vmatpush.msra.mxu0 0.0
        %2096 = vmatpush.msra.mxu0 0.0
        %2097 = vmatpush.msra.mxu0 %v576
        %2098 = vmatpush.msra.mxu0 %v575
        %2099 = vmatpush.msra.mxu0 %v574
        %2100 = vmatpush.msra.mxu0 %v573
        %2101 = vmatpush.msra.mxu0 %v572
        %2102 = vmatpush.msra.mxu0 %v571
        %2103 = vmatpush.msra.mxu0 %v570
        %2104 = vmatpush.msra.mxu0 %v569
        %2105 = vmatmul.f32.gmra.mxu0 %v2078
        %v2106 = vpop.f32.mrf.mxu0
        %v2107 = vadd.f32 0.0, %v2106
        %2108 = vmatmul.f32.gmra.mxu0 %v2081
        %v2109 = vpop.f32.mrf.mxu0
        %v2110 = vadd.f32 0.0, %v2109
        %2111 = vmatmul.f32.gmra.mxu0 %v2084
        %v2112 = vpop.f32.mrf.mxu0
        %v2113 = vadd.f32 0.0, %v2112
        %2114 = vmatmul.f32.gmra.mxu0 %v2087
        %v2115 = vpop.f32.mrf.mxu0
        %v2116 = vadd.f32 0.0, %v2115
        %2117 = vdwg.mxu0
        %v2119 = vsel %vm1355, %v1991, 0
        %v2122 = vsel %vm1355, %v1992, 0
        %v2125 = vsel %vm1355, %v1993, 0
        %v2128 = vsel %vm1355, %v1994, 0
        %2130 = vmatpush.msra.mxu0 0.0
        %2131 = vmatpush.msra.mxu0 0.0
        %2132 = vmatpush.msra.mxu0 0.0
        %2133 = vmatpush.msra.mxu0 0.0
        %2134 = vmatpush.msra.mxu0 0.0
        %2135 = vmatpush.msra.mxu0 0.0
        %2136 = vmatpush.msra.mxu0 0.0
        %2137 = vmatpush.msra.mxu0 0.0
        %2138 = vmatpush.msra.mxu0 %v576
        %2139 = vmatpush.msra.mxu0 %v575
        %2140 = vmatpush.msra.mxu0 %v574
        %2141 = vmatpush.msra.mxu0 %v573
        %2142 = vmatpush.msra.mxu0 %v572
        %2143 = vmatpush.msra.mxu0 %v571
        %2144 = vmatpush.msra.mxu0 %v570
        %2145 = vmatpush.msra.mxu0 %v569
        %2146 = vmatmul.f32.gmra.mxu0 %v2119
        %v2147 = vpop.f32.mrf.mxu0
        %v2148 = vadd.f32 0.0, %v2147
        %2149 = vmatmul.f32.gmra.mxu0 %v2122
        %v2150 = vpop.f32.mrf.mxu0
        %v2151 = vadd.f32 0.0, %v2150
        %2152 = vmatmul.f32.gmra.mxu0 %v2125
        %v2153 = vpop.f32.mrf.mxu0
        %v2154 = vadd.f32 0.0, %v2153
        %2155 = vmatmul.f32.gmra.mxu0 %v2128
        %v2156 = vpop.f32.mrf.mxu0
        %v2157 = vadd.f32 0.0, %v2156
        %2158 = vdwg.mxu0
        %v2160 = vperm.slane %v596, 0
        %v2163 = vsel %vm1355, %v2025, 0
        %v2166 = vsel %vm1355, %v2028, 0
        %v2169 = vsel %vm1355, %v2031, 0
        %v2172 = vsel %vm1355, %v2034, 0
        %2174 = vmatpush.msra.mxu0 0.0
        %2175 = vmatpush.msra.mxu0 0.0
        %2176 = vmatpush.msra.mxu0 0.0
        %2177 = vmatpush.msra.mxu0 0.0
        %2178 = vmatpush.msra.mxu0 0.0
        %2179 = vmatpush.msra.mxu0 0.0
        %2180 = vmatpush.msra.mxu0 0.0
        %2181 = vmatpush.msra.mxu0 0.0
        %2182 = vmatpush.msra.mxu0 %v595
        %2183 = vmatpush.msra.mxu0 %v594
        %2184 = vmatpush.msra.mxu0 %v593
        %2185 = vmatpush.msra.mxu0 %v592
        %2186 = vmatpush.msra.mxu0 %v591
        %2187 = vmatpush.msra.mxu0 %v590
        %2188 = vmatpush.msra.mxu0 %v589
        %2189 = vmatpush.msra.mxu0 %v588
        %2190 = vmatmul.f32.gmra.mxu0 %v2163
        %v2191 = vpop.f32.mrf.mxu0
        %v2192 = vadd.f32 %v2160, %v2191
        %2193 = vmatmul.f32.gmra.mxu0 %v2166
        %v2194 = vpop.f32.mrf.mxu0
        %v2195 = vadd.f32 %v2160, %v2194
        %2196 = vmatmul.f32.gmra.mxu0 %v2169
        %v2197 = vpop.f32.mrf.mxu0
        %v2198 = vadd.f32 %v2160, %v2197
        %2199 = vmatmul.f32.gmra.mxu0 %v2172
        %v2200 = vpop.f32.mrf.mxu0
        %v2201 = vadd.f32 %v2160, %v2200
        %2202 = vdwg.mxu0
        %v2204 = vsel %vm1355, %v2066, 0
        %v2207 = vsel %vm1355, %v2069, 0
        %v2210 = vsel %vm1355, %v2072, 0
        %v2213 = vsel %vm1355, %v2075, 0
        %2215 = vmatpush.msra.mxu0 0.0
        %2216 = vmatpush.msra.mxu0 0.0
        %2217 = vmatpush.msra.mxu0 0.0
        %2218 = vmatpush.msra.mxu0 0.0
        %2219 = vmatpush.msra.mxu0 0.0
        %2220 = vmatpush.msra.mxu0 0.0
        %2221 = vmatpush.msra.mxu0 0.0
        %2222 = vmatpush.msra.mxu0 0.0
        %2223 = vmatpush.msra.mxu0 %v595
        %2224 = vmatpush.msra.mxu0 %v594
        %2225 = vmatpush.msra.mxu0 %v593
        %2226 = vmatpush.msra.mxu0 %v592
        %2227 = vmatpush.msra.mxu0 %v591
        %2228 = vmatpush.msra.mxu0 %v590
        %2229 = vmatpush.msra.mxu0 %v589
        %2230 = vmatpush.msra.mxu0 %v588
        %2231 = vmatmul.f32.gmra.mxu0 %v2204
        %v2232 = vpop.f32.mrf.mxu0
        %v2233 = vadd.f32 %v2160, %v2232
        %2234 = vmatmul.f32.gmra.mxu0 %v2207
        %v2235 = vpop.f32.mrf.mxu0
        %v2236 = vadd.f32 %v2160, %v2235
        %2237 = vmatmul.f32.gmra.mxu0 %v2210
        %v2238 = vpop.f32.mrf.mxu0
        %v2239 = vadd.f32 %v2160, %v2238
        %2240 = vmatmul.f32.gmra.mxu0 %v2213
        %v2241 = vpop.f32.mrf.mxu0
        %v2242 = vadd.f32 %v2160, %v2241
        %2243 = vdwg.mxu0
        %v2245 = vsel %vm1355, %v2107, 0
        %v2248 = vsel %vm1355, %v2110, 0
        %v2251 = vsel %vm1355, %v2113, 0
        %v2254 = vsel %vm1355, %v2116, 0
        %2256 = vmatpush.msra.mxu0 0.0
        %2257 = vmatpush.msra.mxu0 0.0
        %2258 = vmatpush.msra.mxu0 0.0
        %2259 = vmatpush.msra.mxu0 0.0
        %2260 = vmatpush.msra.mxu0 0.0
        %2261 = vmatpush.msra.mxu0 0.0
        %2262 = vmatpush.msra.mxu0 0.0
        %2263 = vmatpush.msra.mxu0 0.0
        %2264 = vmatpush.msra.mxu0 %v595
        %2265 = vmatpush.msra.mxu0 %v594
        %2266 = vmatpush.msra.mxu0 %v593
        %2267 = vmatpush.msra.mxu0 %v592
        %2268 = vmatpush.msra.mxu0 %v591
        %2269 = vmatpush.msra.mxu0 %v590
        %2270 = vmatpush.msra.mxu0 %v589
        %2271 = vmatpush.msra.mxu0 %v588
        %2272 = vmatmul.f32.gmra.mxu0 %v2245
        %v2273 = vpop.f32.mrf.mxu0
        %v2274 = vadd.f32 %v2160, %v2273
        %2275 = vmatmul.f32.gmra.mxu0 %v2248
        %v2276 = vpop.f32.mrf.mxu0
        %v2277 = vadd.f32 %v2160, %v2276
        %2278 = vmatmul.f32.gmra.mxu0 %v2251
        %v2279 = vpop.f32.mrf.mxu0
        %v2280 = vadd.f32 %v2160, %v2279
        %2281 = vmatmul.f32.gmra.mxu0 %v2254
        %v2282 = vpop.f32.mrf.mxu0
        %v2283 = vadd.f32 %v2160, %v2282
        %2284 = vdwg.mxu0
        %v2286 = vsel %vm1355, %v2148, 0
        %v2289 = vsel %vm1355, %v2151, 0
        %v2292 = vsel %vm1355, %v2154, 0
        %v2295 = vsel %vm1355, %v2157, 0
        %2297 = vmatpush.msra.mxu0 0.0
        %2298 = vmatpush.msra.mxu0 0.0
        %2299 = vmatpush.msra.mxu0 0.0
        %2300 = vmatpush.msra.mxu0 0.0
        %2301 = vmatpush.msra.mxu0 0.0
        %2302 = vmatpush.msra.mxu0 0.0
        %2303 = vmatpush.msra.mxu0 0.0
        %2304 = vmatpush.msra.mxu0 0.0
        %2305 = vmatpush.msra.mxu0 %v595
        %2306 = vmatpush.msra.mxu0 %v594
        %2307 = vmatpush.msra.mxu0 %v593
        %2308 = vmatpush.msra.mxu0 %v592
        %2309 = vmatpush.msra.mxu0 %v591
        %2310 = vmatpush.msra.mxu0 %v590
        %2311 = vmatpush.msra.mxu0 %v589
        %2312 = vmatpush.msra.mxu0 %v588
        %2313 = vmatmul.f32.gmra.mxu0 %v2286
        %v2314 = vpop.f32.mrf.mxu0
        %v2315 = vadd.f32 %v2160, %v2314
        %2316 = vmatmul.f32.gmra.mxu0 %v2289
        %v2317 = vpop.f32.mrf.mxu0
        %v2318 = vadd.f32 %v2160, %v2317
        %2319 = vmatmul.f32.gmra.mxu0 %v2292
        %v2320 = vpop.f32.mrf.mxu0
        %v2321 = vadd.f32 %v2160, %v2320
        %2322 = vmatmul.f32.gmra.mxu0 %v2295
        %v2323 = vpop.f32.mrf.mxu0
        %v2324 = vadd.f32 %v2160, %v2323
        %2325 = vdwg.mxu0
        %v2326 = vsel %vm1355, %v2192, 0.0
        %2327 = vadd.xlane.f32.xlu0 %v2326
        %v2328 = vpop.xlane.xlu0 %2327
        %v2329 = vsel %vm1355, %v2195, 0.0
        %2330 = vadd.xlane.f32.xlu0 %v2329
        %v2331 = vpop.xlane.xlu0 %2330
        %v2332 = vsel %vm1355, %v2198, 0.0
        %2333 = vadd.xlane.f32.xlu0 %v2332
        %v2334 = vpop.xlane.xlu0 %2333
        %v2335 = vsel %vm1355, %v2201, 0.0
        %2336 = vadd.xlane.f32.xlu0 %v2335
        %v2337 = vpop.xlane.xlu0 %2336
        %v2338 = vsel %vm1355, %v2233, 0.0
        %2339 = vadd.xlane.f32.xlu0 %v2338
        %v2340 = vpop.xlane.xlu0 %2339
        %v2341 = vsel %vm1355, %v2236, 0.0
        %2342 = vadd.xlane.f32.xlu0 %v2341
        %v2343 = vpop.xlane.xlu0 %2342
        %v2344 = vsel %vm1355, %v2239, 0.0
        %2345 = vadd.xlane.f32.xlu0 %v2344
        %v2346 = vpop.xlane.xlu0 %2345
        %v2347 = vsel %vm1355, %v2242, 0.0
        %2348 = vadd.xlane.f32.xlu0 %v2347
        %v2349 = vpop.xlane.xlu0 %2348
        %v2350 = vadd.f32 %v2328, %v2340
        %v2351 = vadd.f32 %v2331, %v2343
        %v2352 = vadd.f32 %v2334, %v2346
        %v2353 = vadd.f32 %v2337, %v2349
        %v2354 = vsel %vm1355, %v2274, 0.0
        %2355 = vadd.xlane.f32.xlu0 %v2354
        %v2356 = vpop.xlane.xlu0 %2355
        %v2357 = vsel %vm1355, %v2277, 0.0
        %2358 = vadd.xlane.f32.xlu0 %v2357
        %v2359 = vpop.xlane.xlu0 %2358
        %v2360 = vsel %vm1355, %v2280, 0.0
        %2361 = vadd.xlane.f32.xlu0 %v2360
        %v2362 = vpop.xlane.xlu0 %2361
        %v2363 = vsel %vm1355, %v2283, 0.0
        %2364 = vadd.xlane.f32.xlu0 %v2363
        %v2365 = vpop.xlane.xlu0 %2364
        %v2366 = vadd.f32 %v2350, %v2356
        %v2367 = vadd.f32 %v2351, %v2359
        %v2368 = vadd.f32 %v2352, %v2362
        %v2369 = vadd.f32 %v2353, %v2365
        %v2370 = vsel %vm1355, %v2315, 0.0
        %2371 = vadd.xlane.f32.xlu0 %v2370
        %v2372 = vpop.xlane.xlu0 %2371
        %v2373 = vsel %vm1355, %v2318, 0.0
        %2374 = vadd.xlane.f32.xlu0 %v2373
        %v2375 = vpop.xlane.xlu0 %2374
        %v2376 = vsel %vm1355, %v2321, 0.0
        %2377 = vadd.xlane.f32.xlu0 %v2376
        %v2378 = vpop.xlane.xlu0 %2377
        %v2379 = vsel %vm1355, %v2324, 0.0
        %2380 = vadd.xlane.f32.xlu0 %v2379
        %v2381 = vpop.xlane.xlu0 %2380
        %v2382 = vadd.f32 %v2366, %v2372
        %v2383 = vadd.f32 %v2367, %v2375
        %v2384 = vadd.f32 %v2368, %v2378
        %v2385 = vadd.f32 %v2369, %v2381
        %v2386 = vmul.f32 %v2382, 0.00390625
        %v2387 = vmul.f32 %v2383, 0.00390625
        %v2388 = vmul.f32 %v2384, 0.00390625
        %v2389 = vmul.f32 %v2385, 0.00390625
        %v2390 = vsub.f32 %v2192, %v2386
        %v2391 = vsub.f32 %v2195, %v2387
        %v2392 = vsub.f32 %v2198, %v2388
        %v2393 = vsub.f32 %v2201, %v2389
        %v2394 = vsub.f32 %v2233, %v2386
        %v2395 = vsub.f32 %v2236, %v2387
        %v2396 = vsub.f32 %v2239, %v2388
        %v2397 = vsub.f32 %v2242, %v2389
        %v2398 = vsub.f32 %v2274, %v2386
        %v2399 = vsub.f32 %v2277, %v2387
        %v2400 = vsub.f32 %v2280, %v2388
        %v2401 = vsub.f32 %v2283, %v2389
        %v2402 = vsub.f32 %v2315, %v2386
        %v2403 = vsub.f32 %v2318, %v2387
        %v2404 = vsub.f32 %v2321, %v2388
        %v2405 = vsub.f32 %v2324, %v2389
        %v2406 = vmul.f32 %v2390, %v2390
        %v2407 = vmul.f32 %v2391, %v2391
        %v2408 = vmul.f32 %v2392, %v2392
        %v2409 = vmul.f32 %v2393, %v2393
        %v2410 = vsel %vm1355, %v2406, 0.0
        %2411 = vadd.xlane.f32.xlu0 %v2410
        %v2412 = vpop.xlane.xlu0 %2411
        %v2413 = vsel %vm1355, %v2407, 0.0
        %2414 = vadd.xlane.f32.xlu0 %v2413
        %v2415 = vpop.xlane.xlu0 %2414
        %v2416 = vsel %vm1355, %v2408, 0.0
        %2417 = vadd.xlane.f32.xlu0 %v2416
        %v2418 = vpop.xlane.xlu0 %2417
        %v2419 = vsel %vm1355, %v2409, 0.0
        %2420 = vadd.xlane.f32.xlu0 %v2419
        %v2421 = vpop.xlane.xlu0 %2420
        %v2422 = vmul.f32 %v2394, %v2394
        %v2423 = vmul.f32 %v2395, %v2395
        %v2424 = vmul.f32 %v2396, %v2396
        %v2425 = vmul.f32 %v2397, %v2397
        %v2426 = vsel %vm1355, %v2422, 0.0
        %2427 = vadd.xlane.f32.xlu0 %v2426
        %v2428 = vpop.xlane.xlu0 %2427
        %v2429 = vsel %vm1355, %v2423, 0.0
        %2430 = vadd.xlane.f32.xlu0 %v2429
        %v2431 = vpop.xlane.xlu0 %2430
        %v2432 = vsel %vm1355, %v2424, 0.0
        %2433 = vadd.xlane.f32.xlu0 %v2432
        %v2434 = vpop.xlane.xlu0 %2433
        %v2435 = vsel %vm1355, %v2425, 0.0
        %2436 = vadd.xlane.f32.xlu0 %v2435
        %v2437 = vpop.xlane.xlu0 %2436
        %v2438 = vadd.f32 %v2412, %v2428
        %v2439 = vadd.f32 %v2415, %v2431
        %v2440 = vadd.f32 %v2418, %v2434
        %v2441 = vadd.f32 %v2421, %v2437
        %v2442 = vmul.f32 %v2398, %v2398
        %v2443 = vmul.f32 %v2399, %v2399
        %v2444 = vmul.f32 %v2400, %v2400
        %v2445 = vmul.f32 %v2401, %v2401
        %v2446 = vsel %vm1355, %v2442, 0.0
        %2447 = vadd.xlane.f32.xlu0 %v2446
        %v2448 = vpop.xlane.xlu0 %2447
        %v2449 = vsel %vm1355, %v2443, 0.0
        %2450 = vadd.xlane.f32.xlu0 %v2449
        %v2451 = vpop.xlane.xlu0 %2450
        %v2452 = vsel %vm1355, %v2444, 0.0
        %2453 = vadd.xlane.f32.xlu0 %v2452
        %v2454 = vpop.xlane.xlu0 %2453
        %v2455 = vsel %vm1355, %v2445, 0.0
        %2456 = vadd.xlane.f32.xlu0 %v2455
        %v2457 = vpop.xlane.xlu0 %2456
        %v2458 = vadd.f32 %v2438, %v2448
        %v2459 = vadd.f32 %v2439, %v2451
        %v2460 = vadd.f32 %v2440, %v2454
        %v2461 = vadd.f32 %v2441, %v2457
        %v2462 = vmul.f32 %v2402, %v2402
        %v2463 = vmul.f32 %v2403, %v2403
        %v2464 = vmul.f32 %v2404, %v2404
        %v2465 = vmul.f32 %v2405, %v2405
        %v2466 = vsel %vm1355, %v2462, 0.0
        %2467 = vadd.xlane.f32.xlu0 %v2466
        %v2468 = vpop.xlane.xlu0 %2467
        %v2469 = vsel %vm1355, %v2463, 0.0
        %2470 = vadd.xlane.f32.xlu0 %v2469
        %v2471 = vpop.xlane.xlu0 %2470
        %v2472 = vsel %vm1355, %v2464, 0.0
        %2473 = vadd.xlane.f32.xlu0 %v2472
        %v2474 = vpop.xlane.xlu0 %2473
        %v2475 = vsel %vm1355, %v2465, 0.0
        %2476 = vadd.xlane.f32.xlu0 %v2475
        %v2477 = vpop.xlane.xlu0 %2476
        %v2478 = vadd.f32 %v2458, %v2468
        %v2479 = vadd.f32 %v2459, %v2471
        %v2480 = vadd.f32 %v2460, %v2474
        %v2481 = vadd.f32 %v2461, %v2477
        %v2482 = vmul.f32 %v2478, 0.00390625
        %v2483 = vmul.f32 %v2479, 0.00390625
        %v2484 = vmul.f32 %v2480, 0.00390625
        %v2485 = vmul.f32 %v2481, 0.00390625
        %v2486 = vadd.f32 %v2482, 1e-05
        %v2487 = vadd.f32 %v2483, 1e-05
        %v2488 = vadd.f32 %v2484, 1e-05
        %v2489 = vadd.f32 %v2485, 1e-05
        %v2490 = vrsqrt.pop %v2486
        %v2491 = vmul.f32 %v2490, %v2486
        %v2492 = vmul.f32 %v2491, %v2490
        %v2493 = vmul.f32 0.5, %v2492
        %v2494 = vsub.f32 1.5, %v2493
        %v2495 = vmul.f32 %v2490, %v2494
        %vm2496 = vweird.f32 %v2486
        %vm2497 = vweird.f32 %v2490
        %vm2498 = vmor %vm2496, %vm2497
        %v2499 = vsel %vm2498, %v2490, %v2495
        %v2500 = vrsqrt.pop %v2487
        %v2501 = vmul.f32 %v2500, %v2487
        %v2502 = vmul.f32 %v2501, %v2500
        %v2503 = vmul.f32 0.5, %v2502
        %v2504 = vsub.f32 1.5, %v2503
        %v2505 = vmul.f32 %v2500, %v2504
        %vm2506 = vweird.f32 %v2487
        %vm2507 = vweird.f32 %v2500
        %vm2508 = vmor %vm2506, %vm2507
        %v2509 = vsel %vm2508, %v2500, %v2505
        %v2510 = vrsqrt.pop %v2488
        %v2511 = vmul.f32 %v2510, %v2488
        %v2512 = vmul.f32 %v2511, %v2510
        %v2513 = vmul.f32 0.5, %v2512
        %v2514 = vsub.f32 1.5, %v2513
        %v2515 = vmul.f32 %v2510, %v2514
        %vm2516 = vweird.f32 %v2488
        %vm2517 = vweird.f32 %v2510
        %vm2518 = vmor %vm2516, %vm2517
        %v2519 = vsel %vm2518, %v2510, %v2515
        %v2520 = vrsqrt.pop %v2489
        %v2521 = vmul.f32 %v2520, %v2489
        %v2522 = vmul.f32 %v2521, %v2520
        %v2523 = vmul.f32 0.5, %v2522
        %v2524 = vsub.f32 1.5, %v2523
        %v2525 = vmul.f32 %v2520, %v2524
        %vm2526 = vweird.f32 %v2489
        %vm2527 = vweird.f32 %v2520
        %vm2528 = vmor %vm2526, %vm2527
        %v2529 = vsel %vm2528, %v2520, %v2525
        %v2530 = vmul.f32 %v2390, %v2499
        %v2531 = vmul.f32 %v2391, %v2509
        %v2532 = vmul.f32 %v2392, %v2519
        %v2533 = vmul.f32 %v2393, %v2529
        %v2534 = vmax.f32 %v2530, 0.0
        %v2535 = vmax.f32 %v2531, 0.0
        %v2536 = vmax.f32 %v2532, 0.0
        %v2537 = vmax.f32 %v2533, 0.0
        %v2538 = vmul.f32 %v2394, %v2499
        %v2539 = vmul.f32 %v2395, %v2509
        %v2540 = vmul.f32 %v2396, %v2519
        %v2541 = vmul.f32 %v2397, %v2529
        %v2542 = vmax.f32 %v2538, 0.0
        %v2543 = vmax.f32 %v2539, 0.0
        %v2544 = vmax.f32 %v2540, 0.0
        %v2545 = vmax.f32 %v2541, 0.0
        %v2546 = vmul.f32 %v2398, %v2499
        %v2547 = vmul.f32 %v2399, %v2509
        %v2548 = vmul.f32 %v2400, %v2519
        %v2549 = vmul.f32 %v2401, %v2529
        %v2550 = vmax.f32 %v2546, 0.0
        %v2551 = vmax.f32 %v2547, 0.0
        %v2552 = vmax.f32 %v2548, 0.0
        %v2553 = vmax.f32 %v2549, 0.0
        %v2554 = vmul.f32 %v2402, %v2499
        %v2555 = vmul.f32 %v2403, %v2509
        %v2556 = vmul.f32 %v2404, %v2519
        %v2557 = vmul.f32 %v2405, %v2529
        %v2558 = vmax.f32 %v2554, 0.0
        %v2559 = vmax.f32 %v2555, 0.0
        %v2560 = vmax.f32 %v2556, 0.0
        %v2561 = vmax.f32 %v2557, 0.0
        %v2563 = vperm.slane %v605, 0
        %v2566 = vsel %vm1355, %v2534, 0
        %v2569 = vsel %vm1355, %v2535, 0
        %v2572 = vsel %vm1355, %v2536, 0
        %v2575 = vsel %vm1355, %v2537, 0
        %2577 = vmatpush.msra.mxu0 0.0
        %2578 = vmatpush.msra.mxu0 0.0
        %2579 = vmatpush.msra.mxu0 0.0
        %2580 = vmatpush.msra.mxu0 0.0
        %2581 = vmatpush.msra.mxu0 0.0
        %2582 = vmatpush.msra.mxu0 0.0
        %2583 = vmatpush.msra.mxu0 0.0
        %2584 = vmatpush.msra.mxu0 0.0
        %2585 = vmatpush.msra.mxu0 %v604
        %2586 = vmatpush.msra.mxu0 %v603
        %2587 = vmatpush.msra.mxu0 %v602
        %2588 = vmatpush.msra.mxu0 %v601
        %2589 = vmatpush.msra.mxu0 %v600
        %2590 = vmatpush.msra.mxu0 %v599
        %2591 = vmatpush.msra.mxu0 %v598
        %2592 = vmatpush.msra.mxu0 %v597
        %2593 = vmatmul.f32.gmra.mxu0 %v2566
        %v2594 = vpop.f32.mrf.mxu0
        %v2595 = vadd.f32 %v2563, %v2594
        %2596 = vmatmul.f32.gmra.mxu0 %v2569
        %v2597 = vpop.f32.mrf.mxu0
        %v2598 = vadd.f32 %v2563, %v2597
        %2599 = vmatmul.f32.gmra.mxu0 %v2572
        %v2600 = vpop.f32.mrf.mxu0
        %v2601 = vadd.f32 %v2563, %v2600
        %2602 = vmatmul.f32.gmra.mxu0 %v2575
        %v2603 = vpop.f32.mrf.mxu0
        %v2604 = vadd.f32 %v2563, %v2603
        %2605 = vdwg.mxu0
        %v2607 = vsel %vm1355, %v2542, 0
        %v2610 = vsel %vm1355, %v2543, 0
        %v2613 = vsel %vm1355, %v2544, 0
        %v2616 = vsel %vm1355, %v2545, 0
        %2618 = vmatpush.msra.mxu0 0.0
        %2619 = vmatpush.msra.mxu0 0.0
        %2620 = vmatpush.msra.mxu0 0.0
        %2621 = vmatpush.msra.mxu0 0.0
        %2622 = vmatpush.msra.mxu0 0.0
        %2623 = vmatpush.msra.mxu0 0.0
        %2624 = vmatpush.msra.mxu0 0.0
        %2625 = vmatpush.msra.mxu0 0.0
        %2626 = vmatpush.msra.mxu0 %v604
        %2627 = vmatpush.msra.mxu0 %v603
        %2628 = vmatpush.msra.mxu0 %v602
        %2629 = vmatpush.msra.mxu0 %v601
        %2630 = vmatpush.msra.mxu0 %v600
        %2631 = vmatpush.msra.mxu0 %v599
        %2632 = vmatpush.msra.mxu0 %v598
        %2633 = vmatpush.msra.mxu0 %v597
        %2634 = vmatmul.f32.gmra.mxu0 %v2607
        %v2635 = vpop.f32.mrf.mxu0
        %v2636 = vadd.f32 %v2563, %v2635
        %2637 = vmatmul.f32.gmra.mxu0 %v2610
        %v2638 = vpop.f32.mrf.mxu0
        %v2639 = vadd.f32 %v2563, %v2638
        %2640 = vmatmul.f32.gmra.mxu0 %v2613
        %v2641 = vpop.f32.mrf.mxu0
        %v2642 = vadd.f32 %v2563, %v2641
        %2643 = vmatmul.f32.gmra.mxu0 %v2616
        %v2644 = vpop.f32.mrf.mxu0
        %v2645 = vadd.f32 %v2563, %v2644
        %2646 = vdwg.mxu0
        %v2648 = vsel %vm1355, %v2550, 0
        %v2651 = vsel %vm1355, %v2551, 0
        %v2654 = vsel %vm1355, %v2552, 0
        %v2657 = vsel %vm1355, %v2553, 0
        %2659 = vmatpush.msra.mxu0 0.0
        %2660 = vmatpush.msra.mxu0 0.0
        %2661 = vmatpush.msra.mxu0 0.0
        %2662 = vmatpush.msra.mxu0 0.0
        %2663 = vmatpush.msra.mxu0 0.0
        %2664 = vmatpush.msra.mxu0 0.0
        %2665 = vmatpush.msra.mxu0 0.0
        %2666 = vmatpush.msra.mxu0 0.0
        %2667 = vmatpush.msra.mxu0 %v604
        %2668 = vmatpush.msra.mxu0 %v603
        %2669 = vmatpush.msra.mxu0 %v602
        %2670 = vmatpush.msra.mxu0 %v601
        %2671 = vmatpush.msra.mxu0 %v600
        %2672 = vmatpush.msra.mxu0 %v599
        %2673 = vmatpush.msra.mxu0 %v598
        %2674 = vmatpush.msra.mxu0 %v597
        %2675 = vmatmul.f32.gmra.mxu0 %v2648
        %v2676 = vpop.f32.mrf.mxu0
        %v2677 = vadd.f32 %v2563, %v2676
        %2678 = vmatmul.f32.gmra.mxu0 %v2651
        %v2679 = vpop.f32.mrf.mxu0
        %v2680 = vadd.f32 %v2563, %v2679
        %2681 = vmatmul.f32.gmra.mxu0 %v2654
        %v2682 = vpop.f32.mrf.mxu0
        %v2683 = vadd.f32 %v2563, %v2682
        %2684 = vmatmul.f32.gmra.mxu0 %v2657
        %v2685 = vpop.f32.mrf.mxu0
        %v2686 = vadd.f32 %v2563, %v2685
        %2687 = vdwg.mxu0
        %v2689 = vsel %vm1355, %v2558, 0
        %v2692 = vsel %vm1355, %v2559, 0
        %v2695 = vsel %vm1355, %v2560, 0
        %v2698 = vsel %vm1355, %v2561, 0
        %2700 = vmatpush.msra.mxu0 0.0
        %2701 = vmatpush.msra.mxu0 0.0
        %2702 = vmatpush.msra.mxu0 0.0
        %2703 = vmatpush.msra.mxu0 0.0
        %2704 = vmatpush.msra.mxu0 0.0
        %2705 = vmatpush.msra.mxu0 0.0
        %2706 = vmatpush.msra.mxu0 0.0
        %2707 = vmatpush.msra.mxu0 0.0
        %2708 = vmatpush.msra.mxu0 %v604
        %2709 = vmatpush.msra.mxu0 %v603
        %2710 = vmatpush.msra.mxu0 %v602
        %2711 = vmatpush.msra.mxu0 %v601
        %2712 = vmatpush.msra.mxu0 %v600
        %2713 = vmatpush.msra.mxu0 %v599
        %2714 = vmatpush.msra.mxu0 %v598
        %2715 = vmatpush.msra.mxu0 %v597
        %2716 = vmatmul.f32.gmra.mxu0 %v2689
        %v2717 = vpop.f32.mrf.mxu0
        %v2718 = vadd.f32 %v2563, %v2717
        %2719 = vmatmul.f32.gmra.mxu0 %v2692
        %v2720 = vpop.f32.mrf.mxu0
        %v2721 = vadd.f32 %v2563, %v2720
        %2722 = vmatmul.f32.gmra.mxu0 %v2695
        %v2723 = vpop.f32.mrf.mxu0
        %v2724 = vadd.f32 %v2563, %v2723
        %2725 = vmatmul.f32.gmra.mxu0 %v2698
        %v2726 = vpop.f32.mrf.mxu0
        %v2727 = vadd.f32 %v2563, %v2726
        %2728 = vdwg.mxu0
        %2729 = vadd.xlane.f32.xlu0 %v2595
        %v2730 = vpop.xlane.xlu0 %2729
        %2731 = vadd.xlane.f32.xlu0 %v2598
        %v2732 = vpop.xlane.xlu0 %2731
        %2733 = vadd.xlane.f32.xlu0 %v2601
        %v2734 = vpop.xlane.xlu0 %2733
        %2735 = vadd.xlane.f32.xlu0 %v2604
        %v2736 = vpop.xlane.xlu0 %2735
        %2737 = vadd.xlane.f32.xlu0 %v2636
        %v2738 = vpop.xlane.xlu0 %2737
        %2739 = vadd.xlane.f32.xlu0 %v2639
        %v2740 = vpop.xlane.xlu0 %2739
        %2741 = vadd.xlane.f32.xlu0 %v2642
        %v2742 = vpop.xlane.xlu0 %2741
        %2743 = vadd.xlane.f32.xlu0 %v2645
        %v2744 = vpop.xlane.xlu0 %2743
        %v2745 = vadd.f32 %v2730, %v2738
        %v2746 = vadd.f32 %v2732, %v2740
        %v2747 = vadd.f32 %v2734, %v2742
        %v2748 = vadd.f32 %v2736, %v2744
        %2749 = vadd.xlane.f32.xlu0 %v2677
        %v2750 = vpop.xlane.xlu0 %2749
        %2751 = vadd.xlane.f32.xlu0 %v2680
        %v2752 = vpop.xlane.xlu0 %2751
        %2753 = vadd.xlane.f32.xlu0 %v2683
        %v2754 = vpop.xlane.xlu0 %2753
        %2755 = vadd.xlane.f32.xlu0 %v2686
        %v2756 = vpop.xlane.xlu0 %2755
        %v2757 = vadd.f32 %v2745, %v2750
        %v2758 = vadd.f32 %v2746, %v2752
        %v2759 = vadd.f32 %v2747, %v2754
        %v2760 = vadd.f32 %v2748, %v2756
        %2761 = vadd.xlane.f32.xlu0 %v2718
        %v2762 = vpop.xlane.xlu0 %2761
        %2763 = vadd.xlane.f32.xlu0 %v2721
        %v2764 = vpop.xlane.xlu0 %2763
        %2765 = vadd.xlane.f32.xlu0 %v2724
        %v2766 = vpop.xlane.xlu0 %2765
        %2767 = vadd.xlane.f32.xlu0 %v2727
        %v2768 = vpop.xlane.xlu0 %2767
        %v2769 = vadd.f32 %v2757, %v2762
        %v2770 = vadd.f32 %v2758, %v2764
        %v2771 = vadd.f32 %v2759, %v2766
        %v2772 = vadd.f32 %v2760, %v2768
        %v2773 = vmul.f32 %v2769, 0.001953125
        %v2774 = vmul.f32 %v2770, 0.001953125
        %v2775 = vmul.f32 %v2771, 0.001953125
        %v2776 = vmul.f32 %v2772, 0.001953125
        %v2777 = vsub.f32 %v2595, %v2773
        %v2778 = vsub.f32 %v2598, %v2774
        %v2779 = vsub.f32 %v2601, %v2775
        %v2780 = vsub.f32 %v2604, %v2776
        %v2781 = vsub.f32 %v2636, %v2773
        %v2782 = vsub.f32 %v2639, %v2774
        %v2783 = vsub.f32 %v2642, %v2775
        %v2784 = vsub.f32 %v2645, %v2776
        %v2785 = vsub.f32 %v2677, %v2773
        %v2786 = vsub.f32 %v2680, %v2774
        %v2787 = vsub.f32 %v2683, %v2775
        %v2788 = vsub.f32 %v2686, %v2776
        %v2789 = vsub.f32 %v2718, %v2773
        %v2790 = vsub.f32 %v2721, %v2774
        %v2791 = vsub.f32 %v2724, %v2775
        %v2792 = vsub.f32 %v2727, %v2776
        %v2793 = vmul.f32 %v2777, %v2777
        %v2794 = vmul.f32 %v2778, %v2778
        %v2795 = vmul.f32 %v2779, %v2779
        %v2796 = vmul.f32 %v2780, %v2780
        %2797 = vadd.xlane.f32.xlu0 %v2793
        %v2798 = vpop.xlane.xlu0 %2797
        %2799 = vadd.xlane.f32.xlu0 %v2794
        %v2800 = vpop.xlane.xlu0 %2799
        %2801 = vadd.xlane.f32.xlu0 %v2795
        %v2802 = vpop.xlane.xlu0 %2801
        %2803 = vadd.xlane.f32.xlu0 %v2796
        %v2804 = vpop.xlane.xlu0 %2803
        %v2805 = vmul.f32 %v2781, %v2781
        %v2806 = vmul.f32 %v2782, %v2782
        %v2807 = vmul.f32 %v2783, %v2783
        %v2808 = vmul.f32 %v2784, %v2784
        %2809 = vadd.xlane.f32.xlu0 %v2805
        %v2810 = vpop.xlane.xlu0 %2809
        %2811 = vadd.xlane.f32.xlu0 %v2806
        %v2812 = vpop.xlane.xlu0 %2811
        %2813 = vadd.xlane.f32.xlu0 %v2807
        %v2814 = vpop.xlane.xlu0 %2813
        %2815 = vadd.xlane.f32.xlu0 %v2808
        %v2816 = vpop.xlane.xlu0 %2815
        %v2817 = vadd.f32 %v2798, %v2810
        %v2818 = vadd.f32 %v2800, %v2812
        %v2819 = vadd.f32 %v2802, %v2814
        %v2820 = vadd.f32 %v2804, %v2816
        %v2821 = vmul.f32 %v2785, %v2785
        %v2822 = vmul.f32 %v2786, %v2786
        %v2823 = vmul.f32 %v2787, %v2787
        %v2824 = vmul.f32 %v2788, %v2788
        %2825 = vadd.xlane.f32.xlu0 %v2821
        %v2826 = vpop.xlane.xlu0 %2825
        %2827 = vadd.xlane.f32.xlu0 %v2822
        %v2828 = vpop.xlane.xlu0 %2827
        %2829 = vadd.xlane.f32.xlu0 %v2823
        %v2830 = vpop.xlane.xlu0 %2829
        %2831 = vadd.xlane.f32.xlu0 %v2824
        %v2832 = vpop.xlane.xlu0 %2831
        %v2833 = vadd.f32 %v2817, %v2826
        %v2834 = vadd.f32 %v2818, %v2828
        %v2835 = vadd.f32 %v2819, %v2830
        %v2836 = vadd.f32 %v2820, %v2832
        %v2837 = vmul.f32 %v2789, %v2789
        %v2838 = vmul.f32 %v2790, %v2790
        %v2839 = vmul.f32 %v2791, %v2791
        %v2840 = vmul.f32 %v2792, %v2792
        %2841 = vadd.xlane.f32.xlu0 %v2837
        %v2842 = vpop.xlane.xlu0 %2841
        %2843 = vadd.xlane.f32.xlu0 %v2838
        %v2844 = vpop.xlane.xlu0 %2843
        %2845 = vadd.xlane.f32.xlu0 %v2839
        %v2846 = vpop.xlane.xlu0 %2845
        %2847 = vadd.xlane.f32.xlu0 %v2840
        %v2848 = vpop.xlane.xlu0 %2847
        %v2849 = vadd.f32 %v2833, %v2842
        %v2850 = vadd.f32 %v2834, %v2844
        %v2851 = vadd.f32 %v2835, %v2846
        %v2852 = vadd.f32 %v2836, %v2848
        %v2853 = vmul.f32 %v2849, 0.001953125
        %v2854 = vmul.f32 %v2850, 0.001953125
        %v2855 = vmul.f32 %v2851, 0.001953125
        %v2856 = vmul.f32 %v2852, 0.001953125
        %v2857 = vadd.f32 %v2853, 1e-05
        %v2858 = vadd.f32 %v2854, 1e-05
        %v2859 = vadd.f32 %v2855, 1e-05
        %v2860 = vadd.f32 %v2856, 1e-05
        %v2861 = vrsqrt.pop %v2857
        %v2862 = vmul.f32 %v2861, %v2857
        %v2863 = vmul.f32 %v2862, %v2861
        %v2864 = vmul.f32 0.5, %v2863
        %v2865 = vsub.f32 1.5, %v2864
        %v2866 = vmul.f32 %v2861, %v2865
        %vm2867 = vweird.f32 %v2857
        %vm2868 = vweird.f32 %v2861
        %vm2869 = vmor %vm2867, %vm2868
        %v2870 = vsel %vm2869, %v2861, %v2866
        %v2871 = vrsqrt.pop %v2858
        %v2872 = vmul.f32 %v2871, %v2858
        %v2873 = vmul.f32 %v2872, %v2871
        %v2874 = vmul.f32 0.5, %v2873
        %v2875 = vsub.f32 1.5, %v2874
        %v2876 = vmul.f32 %v2871, %v2875
        %vm2877 = vweird.f32 %v2858
        %vm2878 = vweird.f32 %v2871
        %vm2879 = vmor %vm2877, %vm2878
        %v2880 = vsel %vm2879, %v2871, %v2876
        %v2881 = vrsqrt.pop %v2859
        %v2882 = vmul.f32 %v2881, %v2859
        %v2883 = vmul.f32 %v2882, %v2881
        %v2884 = vmul.f32 0.5, %v2883
        %v2885 = vsub.f32 1.5, %v2884
        %v2886 = vmul.f32 %v2881, %v2885
        %vm2887 = vweird.f32 %v2859
        %vm2888 = vweird.f32 %v2881
        %vm2889 = vmor %vm2887, %vm2888
        %v2890 = vsel %vm2889, %v2881, %v2886
        %v2891 = vrsqrt.pop %v2860
        %v2892 = vmul.f32 %v2891, %v2860
        %v2893 = vmul.f32 %v2892, %v2891
        %v2894 = vmul.f32 0.5, %v2893
        %v2895 = vsub.f32 1.5, %v2894
        %v2896 = vmul.f32 %v2891, %v2895
        %vm2897 = vweird.f32 %v2860
        %vm2898 = vweird.f32 %v2891
        %vm2899 = vmor %vm2897, %vm2898
        %v2900 = vsel %vm2899, %v2891, %v2896
        %v2901 = vmul.f32 %v2777, %v2870
        %v2902 = vmul.f32 %v2778, %v2880
        %v2903 = vmul.f32 %v2779, %v2890
        %v2904 = vmul.f32 %v2780, %v2900
        %v2905 = vmax.f32 %v2901, 0.0
        %v2906 = vmax.f32 %v2902, 0.0
        %v2907 = vmax.f32 %v2903, 0.0
        %v2908 = vmax.f32 %v2904, 0.0
        %v2909 = vmul.f32 %v2781, %v2870
        %v2910 = vmul.f32 %v2782, %v2880
        %v2911 = vmul.f32 %v2783, %v2890
        %v2912 = vmul.f32 %v2784, %v2900
        %v2913 = vmax.f32 %v2909, 0.0
        %v2914 = vmax.f32 %v2910, 0.0
        %v2915 = vmax.f32 %v2911, 0.0
        %v2916 = vmax.f32 %v2912, 0.0
        %v2917 = vmul.f32 %v2785, %v2870
        %v2918 = vmul.f32 %v2786, %v2880
        %v2919 = vmul.f32 %v2787, %v2890
        %v2920 = vmul.f32 %v2788, %v2900
        %v2921 = vmax.f32 %v2917, 0.0
        %v2922 = vmax.f32 %v2918, 0.0
        %v2923 = vmax.f32 %v2919, 0.0
        %v2924 = vmax.f32 %v2920, 0.0
        %v2925 = vmul.f32 %v2789, %v2870
        %v2926 = vmul.f32 %v2790, %v2880
        %v2927 = vmul.f32 %v2791, %v2890
        %v2928 = vmul.f32 %v2792, %v2900
        %v2929 = vmax.f32 %v2925, 0.0
        %v2930 = vmax.f32 %v2926, 0.0
        %v2931 = vmax.f32 %v2927, 0.0
        %v2932 = vmax.f32 %v2928, 0.0
        %v2934 = vperm.slane %v734, 0
        %v2935 = vperm.slane %v734, 1
        %v2936 = vperm.slane %v734, 2
        %v2937 = vperm.slane %v734, 3
        %v2938 = vperm.slane %v734, 4
        %v2939 = vperm.slane %v734, 5
        %v2940 = vperm.slane %v734, 6
        %v2941 = vperm.slane %v734, 7
        %2950 = vmatpush.msra.mxu0 %v726
        %2951 = vmatpush.msra.mxu0 %v718
        %2952 = vmatpush.msra.mxu0 %v710
        %2953 = vmatpush.msra.mxu0 %v702
        %2954 = vmatpush.msra.mxu0 %v694
        %2955 = vmatpush.msra.mxu0 %v686
        %2956 = vmatpush.msra.mxu0 %v678
        %2957 = vmatpush.msra.mxu0 %v670
        %2958 = vmatpush.msra.mxu0 %v662
        %2959 = vmatpush.msra.mxu0 %v654
        %2960 = vmatpush.msra.mxu0 %v646
        %2961 = vmatpush.msra.mxu0 %v638
        %2962 = vmatpush.msra.mxu0 %v630
        %2963 = vmatpush.msra.mxu0 %v622
        %2964 = vmatpush.msra.mxu0 %v614
        %2965 = vmatpush.msra.mxu0 %v606
        %2966 = vmatmul.f32.gmra.mxu0 %v2905
        %v2967 = vpop.f32.mrf.mxu0
        %v2968 = vadd.f32 %v2934, %v2967
        %2969 = vmatmul.f32.gmra.mxu0 %v2906
        %v2970 = vpop.f32.mrf.mxu0
        %v2971 = vadd.f32 %v2934, %v2970
        %2972 = vmatmul.f32.gmra.mxu0 %v2907
        %v2973 = vpop.f32.mrf.mxu0
        %v2974 = vadd.f32 %v2934, %v2973
        %2975 = vmatmul.f32.gmra.mxu0 %v2908
        %v2976 = vpop.f32.mrf.mxu0
        %v2977 = vadd.f32 %v2934, %v2976
        %2978 = vdwg.mxu0
        %2979 = vmatpush.msra.mxu0 %v727
        %2980 = vmatpush.msra.mxu0 %v719
        %2981 = vmatpush.msra.mxu0 %v711
        %2982 = vmatpush.msra.mxu0 %v703
        %2983 = vmatpush.msra.mxu0 %v695
        %2984 = vmatpush.msra.mxu0 %v687
        %2985 = vmatpush.msra.mxu0 %v679
        %2986 = vmatpush.msra.mxu0 %v671
        %2987 = vmatpush.msra.mxu0 %v663
        %2988 = vmatpush.msra.mxu0 %v655
        %2989 = vmatpush.msra.mxu0 %v647
        %2990 = vmatpush.msra.mxu0 %v639
        %2991 = vmatpush.msra.mxu0 %v631
        %2992 = vmatpush.msra.mxu0 %v623
        %2993 = vmatpush.msra.mxu0 %v615
        %2994 = vmatpush.msra.mxu0 %v607
        %2995 = vmatmul.f32.gmra.mxu0 %v2905
        %v2996 = vpop.f32.mrf.mxu0
        %v2997 = vadd.f32 %v2935, %v2996
        %2998 = vmatmul.f32.gmra.mxu0 %v2906
        %v2999 = vpop.f32.mrf.mxu0
        %v3000 = vadd.f32 %v2935, %v2999
        %3001 = vmatmul.f32.gmra.mxu0 %v2907
        %v3002 = vpop.f32.mrf.mxu0
        %v3003 = vadd.f32 %v2935, %v3002
        %3004 = vmatmul.f32.gmra.mxu0 %v2908
        %v3005 = vpop.f32.mrf.mxu0
        %v3006 = vadd.f32 %v2935, %v3005
        %3007 = vdwg.mxu0
        %3008 = vmatpush.msra.mxu0 %v728
        %3009 = vmatpush.msra.mxu0 %v720
        %3010 = vmatpush.msra.mxu0 %v712
        %3011 = vmatpush.msra.mxu0 %v704
        %3012 = vmatpush.msra.mxu0 %v696
        %3013 = vmatpush.msra.mxu0 %v688
        %3014 = vmatpush.msra.mxu0 %v680
        %3015 = vmatpush.msra.mxu0 %v672
        %3016 = vmatpush.msra.mxu0 %v664
        %3017 = vmatpush.msra.mxu0 %v656
        %3018 = vmatpush.msra.mxu0 %v648
        %3019 = vmatpush.msra.mxu0 %v640
        %3020 = vmatpush.msra.mxu0 %v632
        %3021 = vmatpush.msra.mxu0 %v624
        %3022 = vmatpush.msra.mxu0 %v616
        %3023 = vmatpush.msra.mxu0 %v608
        %3024 = vmatmul.f32.gmra.mxu0 %v2905
        %v3025 = vpop.f32.mrf.mxu0
        %v3026 = vadd.f32 %v2936, %v3025
        %3027 = vmatmul.f32.gmra.mxu0 %v2906
        %v3028 = vpop.f32.mrf.mxu0
        %v3029 = vadd.f32 %v2936, %v3028
        %3030 = vmatmul.f32.gmra.mxu0 %v2907
        %v3031 = vpop.f32.mrf.mxu0
        %v3032 = vadd.f32 %v2936, %v3031
        %3033 = vmatmul.f32.gmra.mxu0 %v2908
        %v3034 = vpop.f32.mrf.mxu0
        %v3035 = vadd.f32 %v2936, %v3034
        %3036 = vdwg.mxu0
        %3037 = vmatpush.msra.mxu0 %v729
        %3038 = vmatpush.msra.mxu0 %v721
        %3039 = vmatpush.msra.mxu0 %v713
        %3040 = vmatpush.msra.mxu0 %v705
        %3041 = vmatpush.msra.mxu0 %v697
        %3042 = vmatpush.msra.mxu0 %v689
        %3043 = vmatpush.msra.mxu0 %v681
        %3044 = vmatpush.msra.mxu0 %v673
        %3045 = vmatpush.msra.mxu0 %v665
        %3046 = vmatpush.msra.mxu0 %v657
        %3047 = vmatpush.msra.mxu0 %v649
        %3048 = vmatpush.msra.mxu0 %v641
        %3049 = vmatpush.msra.mxu0 %v633
        %3050 = vmatpush.msra.mxu0 %v625
        %3051 = vmatpush.msra.mxu0 %v617
        %3052 = vmatpush.msra.mxu0 %v609
        %3053 = vmatmul.f32.gmra.mxu0 %v2905
        %v3054 = vpop.f32.mrf.mxu0
        %v3055 = vadd.f32 %v2937, %v3054
        %3056 = vmatmul.f32.gmra.mxu0 %v2906
        %v3057 = vpop.f32.mrf.mxu0
        %v3058 = vadd.f32 %v2937, %v3057
        %3059 = vmatmul.f32.gmra.mxu0 %v2907
        %v3060 = vpop.f32.mrf.mxu0
        %v3061 = vadd.f32 %v2937, %v3060
        %3062 = vmatmul.f32.gmra.mxu0 %v2908
        %v3063 = vpop.f32.mrf.mxu0
        %v3064 = vadd.f32 %v2937, %v3063
        %3065 = vdwg.mxu0
        %3066 = vmatpush.msra.mxu0 %v730
        %3067 = vmatpush.msra.mxu0 %v722
        %3068 = vmatpush.msra.mxu0 %v714
        %3069 = vmatpush.msra.mxu0 %v706
        %3070 = vmatpush.msra.mxu0 %v698
        %3071 = vmatpush.msra.mxu0 %v690
        %3072 = vmatpush.msra.mxu0 %v682
        %3073 = vmatpush.msra.mxu0 %v674
        %3074 = vmatpush.msra.mxu0 %v666
        %3075 = vmatpush.msra.mxu0 %v658
        %3076 = vmatpush.msra.mxu0 %v650
        %3077 = vmatpush.msra.mxu0 %v642
        %3078 = vmatpush.msra.mxu0 %v634
        %3079 = vmatpush.msra.mxu0 %v626
        %3080 = vmatpush.msra.mxu0 %v618
        %3081 = vmatpush.msra.mxu0 %v610
        %3082 = vmatmul.f32.gmra.mxu0 %v2905
        %v3083 = vpop.f32.mrf.mxu0
        %v3084 = vadd.f32 %v2938, %v3083
        %3085 = vmatmul.f32.gmra.mxu0 %v2906
        %v3086 = vpop.f32.mrf.mxu0
        %v3087 = vadd.f32 %v2938, %v3086
        %3088 = vmatmul.f32.gmra.mxu0 %v2907
        %v3089 = vpop.f32.mrf.mxu0
        %v3090 = vadd.f32 %v2938, %v3089
        %3091 = vmatmul.f32.gmra.mxu0 %v2908
        %v3092 = vpop.f32.mrf.mxu0
        %v3093 = vadd.f32 %v2938, %v3092
        %3094 = vdwg.mxu0
        %3095 = vmatpush.msra.mxu0 %v731
        %3096 = vmatpush.msra.mxu0 %v723
        %3097 = vmatpush.msra.mxu0 %v715
        %3098 = vmatpush.msra.mxu0 %v707
        %3099 = vmatpush.msra.mxu0 %v699
        %3100 = vmatpush.msra.mxu0 %v691
        %3101 = vmatpush.msra.mxu0 %v683
        %3102 = vmatpush.msra.mxu0 %v675
        %3103 = vmatpush.msra.mxu0 %v667
        %3104 = vmatpush.msra.mxu0 %v659
        %3105 = vmatpush.msra.mxu0 %v651
        %3106 = vmatpush.msra.mxu0 %v643
        %3107 = vmatpush.msra.mxu0 %v635
        %3108 = vmatpush.msra.mxu0 %v627
        %3109 = vmatpush.msra.mxu0 %v619
        %3110 = vmatpush.msra.mxu0 %v611
        %3111 = vmatmul.f32.gmra.mxu0 %v2905
        %v3112 = vpop.f32.mrf.mxu0
        %v3113 = vadd.f32 %v2939, %v3112
        %3114 = vmatmul.f32.gmra.mxu0 %v2906
        %v3115 = vpop.f32.mrf.mxu0
        %v3116 = vadd.f32 %v2939, %v3115
        %3117 = vmatmul.f32.gmra.mxu0 %v2907
        %v3118 = vpop.f32.mrf.mxu0
        %v3119 = vadd.f32 %v2939, %v3118
        %3120 = vmatmul.f32.gmra.mxu0 %v2908
        %v3121 = vpop.f32.mrf.mxu0
        %v3122 = vadd.f32 %v2939, %v3121
        %3123 = vdwg.mxu0
        %3124 = vmatpush.msra.mxu0 %v732
        %3125 = vmatpush.msra.mxu0 %v724
        %3126 = vmatpush.msra.mxu0 %v716
        %3127 = vmatpush.msra.mxu0 %v708
        %3128 = vmatpush.msra.mxu0 %v700
        %3129 = vmatpush.msra.mxu0 %v692
        %3130 = vmatpush.msra.mxu0 %v684
        %3131 = vmatpush.msra.mxu0 %v676
        %3132 = vmatpush.msra.mxu0 %v668
        %3133 = vmatpush.msra.mxu0 %v660
        %3134 = vmatpush.msra.mxu0 %v652
        %3135 = vmatpush.msra.mxu0 %v644
        %3136 = vmatpush.msra.mxu0 %v636
        %3137 = vmatpush.msra.mxu0 %v628
        %3138 = vmatpush.msra.mxu0 %v620
        %3139 = vmatpush.msra.mxu0 %v612
        %3140 = vmatmul.f32.gmra.mxu0 %v2905
        %v3141 = vpop.f32.mrf.mxu0
        %v3142 = vadd.f32 %v2940, %v3141
        %3143 = vmatmul.f32.gmra.mxu0 %v2906
        %v3144 = vpop.f32.mrf.mxu0
        %v3145 = vadd.f32 %v2940, %v3144
        %3146 = vmatmul.f32.gmra.mxu0 %v2907
        %v3147 = vpop.f32.mrf.mxu0
        %v3148 = vadd.f32 %v2940, %v3147
        %3149 = vmatmul.f32.gmra.mxu0 %v2908
        %v3150 = vpop.f32.mrf.mxu0
        %v3151 = vadd.f32 %v2940, %v3150
        %3152 = vdwg.mxu0
        %3153 = vmatpush.msra.mxu0 %v733
        %3154 = vmatpush.msra.mxu0 %v725
        %3155 = vmatpush.msra.mxu0 %v717
        %3156 = vmatpush.msra.mxu0 %v709
        %3157 = vmatpush.msra.mxu0 %v701
        %3158 = vmatpush.msra.mxu0 %v693
        %3159 = vmatpush.msra.mxu0 %v685
        %3160 = vmatpush.msra.mxu0 %v677
        %3161 = vmatpush.msra.mxu0 %v669
        %3162 = vmatpush.msra.mxu0 %v661
        %3163 = vmatpush.msra.mxu0 %v653
        %3164 = vmatpush.msra.mxu0 %v645
        %3165 = vmatpush.msra.mxu0 %v637
        %3166 = vmatpush.msra.mxu0 %v629
        %3167 = vmatpush.msra.mxu0 %v621
        %3168 = vmatpush.msra.mxu0 %v613
        %3169 = vmatmul.f32.gmra.mxu0 %v2905
        %v3170 = vpop.f32.mrf.mxu0
        %v3171 = vadd.f32 %v2941, %v3170
        %3172 = vmatmul.f32.gmra.mxu0 %v2906
        %v3173 = vpop.f32.mrf.mxu0
        %v3174 = vadd.f32 %v2941, %v3173
        %3175 = vmatmul.f32.gmra.mxu0 %v2907
        %v3176 = vpop.f32.mrf.mxu0
        %v3177 = vadd.f32 %v2941, %v3176
        %3178 = vmatmul.f32.gmra.mxu0 %v2908
        %v3179 = vpop.f32.mrf.mxu0
        %v3180 = vadd.f32 %v2941, %v3179
        %3181 = vdwg.mxu0
        %3182 = vmatpush.msra.mxu0 %v726
        %3183 = vmatpush.msra.mxu0 %v718
        %3184 = vmatpush.msra.mxu0 %v710
        %3185 = vmatpush.msra.mxu0 %v702
        %3186 = vmatpush.msra.mxu0 %v694
        %3187 = vmatpush.msra.mxu0 %v686
        %3188 = vmatpush.msra.mxu0 %v678
        %3189 = vmatpush.msra.mxu0 %v670
        %3190 = vmatpush.msra.mxu0 %v662
        %3191 = vmatpush.msra.mxu0 %v654
        %3192 = vmatpush.msra.mxu0 %v646
        %3193 = vmatpush.msra.mxu0 %v638
        %3194 = vmatpush.msra.mxu0 %v630
        %3195 = vmatpush.msra.mxu0 %v622
        %3196 = vmatpush.msra.mxu0 %v614
        %3197 = vmatpush.msra.mxu0 %v606
        %3198 = vmatmul.f32.gmra.mxu0 %v2913
        %v3199 = vpop.f32.mrf.mxu0
        %v3200 = vadd.f32 %v2934, %v3199
        %3201 = vmatmul.f32.gmra.mxu0 %v2914
        %v3202 = vpop.f32.mrf.mxu0
        %v3203 = vadd.f32 %v2934, %v3202
        %3204 = vmatmul.f32.gmra.mxu0 %v2915
        %v3205 = vpop.f32.mrf.mxu0
        %v3206 = vadd.f32 %v2934, %v3205
        %3207 = vmatmul.f32.gmra.mxu0 %v2916
        %v3208 = vpop.f32.mrf.mxu0
        %v3209 = vadd.f32 %v2934, %v3208
        %3210 = vdwg.mxu0
        %3211 = vmatpush.msra.mxu0 %v727
        %3212 = vmatpush.msra.mxu0 %v719
        %3213 = vmatpush.msra.mxu0 %v711
        %3214 = vmatpush.msra.mxu0 %v703
        %3215 = vmatpush.msra.mxu0 %v695
        %3216 = vmatpush.msra.mxu0 %v687
        %3217 = vmatpush.msra.mxu0 %v679
        %3218 = vmatpush.msra.mxu0 %v671
        %3219 = vmatpush.msra.mxu0 %v663
        %3220 = vmatpush.msra.mxu0 %v655
        %3221 = vmatpush.msra.mxu0 %v647
        %3222 = vmatpush.msra.mxu0 %v639
        %3223 = vmatpush.msra.mxu0 %v631
        %3224 = vmatpush.msra.mxu0 %v623
        %3225 = vmatpush.msra.mxu0 %v615
        %3226 = vmatpush.msra.mxu0 %v607
        %3227 = vmatmul.f32.gmra.mxu0 %v2913
        %v3228 = vpop.f32.mrf.mxu0
        %v3229 = vadd.f32 %v2935, %v3228
        %3230 = vmatmul.f32.gmra.mxu0 %v2914
        %v3231 = vpop.f32.mrf.mxu0
        %v3232 = vadd.f32 %v2935, %v3231
        %3233 = vmatmul.f32.gmra.mxu0 %v2915
        %v3234 = vpop.f32.mrf.mxu0
        %v3235 = vadd.f32 %v2935, %v3234
        %3236 = vmatmul.f32.gmra.mxu0 %v2916
        %v3237 = vpop.f32.mrf.mxu0
        %v3238 = vadd.f32 %v2935, %v3237
        %3239 = vdwg.mxu0
        %3240 = vmatpush.msra.mxu0 %v728
        %3241 = vmatpush.msra.mxu0 %v720
        %3242 = vmatpush.msra.mxu0 %v712
        %3243 = vmatpush.msra.mxu0 %v704
        %3244 = vmatpush.msra.mxu0 %v696
        %3245 = vmatpush.msra.mxu0 %v688
        %3246 = vmatpush.msra.mxu0 %v680
        %3247 = vmatpush.msra.mxu0 %v672
        %3248 = vmatpush.msra.mxu0 %v664
        %3249 = vmatpush.msra.mxu0 %v656
        %3250 = vmatpush.msra.mxu0 %v648
        %3251 = vmatpush.msra.mxu0 %v640
        %3252 = vmatpush.msra.mxu0 %v632
        %3253 = vmatpush.msra.mxu0 %v624
        %3254 = vmatpush.msra.mxu0 %v616
        %3255 = vmatpush.msra.mxu0 %v608
        %3256 = vmatmul.f32.gmra.mxu0 %v2913
        %v3257 = vpop.f32.mrf.mxu0
        %v3258 = vadd.f32 %v2936, %v3257
        %3259 = vmatmul.f32.gmra.mxu0 %v2914
        %v3260 = vpop.f32.mrf.mxu0
        %v3261 = vadd.f32 %v2936, %v3260
        %3262 = vmatmul.f32.gmra.mxu0 %v2915
        %v3263 = vpop.f32.mrf.mxu0
        %v3264 = vadd.f32 %v2936, %v3263
        %3265 = vmatmul.f32.gmra.mxu0 %v2916
        %v3266 = vpop.f32.mrf.mxu0
        %v3267 = vadd.f32 %v2936, %v3266
        %3268 = vdwg.mxu0
        %3269 = vmatpush.msra.mxu0 %v729
        %3270 = vmatpush.msra.mxu0 %v721
        %3271 = vmatpush.msra.mxu0 %v713
        %3272 = vmatpush.msra.mxu0 %v705
        %3273 = vmatpush.msra.mxu0 %v697
        %3274 = vmatpush.msra.mxu0 %v689
        %3275 = vmatpush.msra.mxu0 %v681
        %3276 = vmatpush.msra.mxu0 %v673
        %3277 = vmatpush.msra.mxu0 %v665
        %3278 = vmatpush.msra.mxu0 %v657
        %3279 = vmatpush.msra.mxu0 %v649
        %3280 = vmatpush.msra.mxu0 %v641
        %3281 = vmatpush.msra.mxu0 %v633
        %3282 = vmatpush.msra.mxu0 %v625
        %3283 = vmatpush.msra.mxu0 %v617
        %3284 = vmatpush.msra.mxu0 %v609
        %3285 = vmatmul.f32.gmra.mxu0 %v2913
        %v3286 = vpop.f32.mrf.mxu0
        %v3287 = vadd.f32 %v2937, %v3286
        %3288 = vmatmul.f32.gmra.mxu0 %v2914
        %v3289 = vpop.f32.mrf.mxu0
        %v3290 = vadd.f32 %v2937, %v3289
        %3291 = vmatmul.f32.gmra.mxu0 %v2915
        %v3292 = vpop.f32.mrf.mxu0
        %v3293 = vadd.f32 %v2937, %v3292
        %3294 = vmatmul.f32.gmra.mxu0 %v2916
        %v3295 = vpop.f32.mrf.mxu0
        %v3296 = vadd.f32 %v2937, %v3295
        %3297 = vdwg.mxu0
        %3298 = vmatpush.msra.mxu0 %v730
        %3299 = vmatpush.msra.mxu0 %v722
        %3300 = vmatpush.msra.mxu0 %v714
        %3301 = vmatpush.msra.mxu0 %v706
        %3302 = vmatpush.msra.mxu0 %v698
        %3303 = vmatpush.msra.mxu0 %v690
        %3304 = vmatpush.msra.mxu0 %v682
        %3305 = vmatpush.msra.mxu0 %v674
        %3306 = vmatpush.msra.mxu0 %v666
        %3307 = vmatpush.msra.mxu0 %v658
        %3308 = vmatpush.msra.mxu0 %v650
        %3309 = vmatpush.msra.mxu0 %v642
        %3310 = vmatpush.msra.mxu0 %v634
        %3311 = vmatpush.msra.mxu0 %v626
        %3312 = vmatpush.msra.mxu0 %v618
        %3313 = vmatpush.msra.mxu0 %v610
        %3314 = vmatmul.f32.gmra.mxu0 %v2913
        %v3315 = vpop.f32.mrf.mxu0
        %v3316 = vadd.f32 %v2938, %v3315
        %3317 = vmatmul.f32.gmra.mxu0 %v2914
        %v3318 = vpop.f32.mrf.mxu0
        %v3319 = vadd.f32 %v2938, %v3318
        %3320 = vmatmul.f32.gmra.mxu0 %v2915
        %v3321 = vpop.f32.mrf.mxu0
        %v3322 = vadd.f32 %v2938, %v3321
        %3323 = vmatmul.f32.gmra.mxu0 %v2916
        %v3324 = vpop.f32.mrf.mxu0
        %v3325 = vadd.f32 %v2938, %v3324
        %3326 = vdwg.mxu0
        %3327 = vmatpush.msra.mxu0 %v731
        %3328 = vmatpush.msra.mxu0 %v723
        %3329 = vmatpush.msra.mxu0 %v715
        %3330 = vmatpush.msra.mxu0 %v707
        %3331 = vmatpush.msra.mxu0 %v699
        %3332 = vmatpush.msra.mxu0 %v691
        %3333 = vmatpush.msra.mxu0 %v683
        %3334 = vmatpush.msra.mxu0 %v675
        %3335 = vmatpush.msra.mxu0 %v667
        %3336 = vmatpush.msra.mxu0 %v659
        %3337 = vmatpush.msra.mxu0 %v651
        %3338 = vmatpush.msra.mxu0 %v643
        %3339 = vmatpush.msra.mxu0 %v635
        %3340 = vmatpush.msra.mxu0 %v627
        %3341 = vmatpush.msra.mxu0 %v619
        %3342 = vmatpush.msra.mxu0 %v611
        %3343 = vmatmul.f32.gmra.mxu0 %v2913
        %v3344 = vpop.f32.mrf.mxu0
        %v3345 = vadd.f32 %v2939, %v3344
        %3346 = vmatmul.f32.gmra.mxu0 %v2914
        %v3347 = vpop.f32.mrf.mxu0
        %v3348 = vadd.f32 %v2939, %v3347
        %3349 = vmatmul.f32.gmra.mxu0 %v2915
        %v3350 = vpop.f32.mrf.mxu0
        %v3351 = vadd.f32 %v2939, %v3350
        %3352 = vmatmul.f32.gmra.mxu0 %v2916
        %v3353 = vpop.f32.mrf.mxu0
        %v3354 = vadd.f32 %v2939, %v3353
        %3355 = vdwg.mxu0
        %3356 = vmatpush.msra.mxu0 %v732
        %3357 = vmatpush.msra.mxu0 %v724
        %3358 = vmatpush.msra.mxu0 %v716
        %3359 = vmatpush.msra.mxu0 %v708
        %3360 = vmatpush.msra.mxu0 %v700
        %3361 = vmatpush.msra.mxu0 %v692
        %3362 = vmatpush.msra.mxu0 %v684
        %3363 = vmatpush.msra.mxu0 %v676
        %3364 = vmatpush.msra.mxu0 %v668
        %3365 = vmatpush.msra.mxu0 %v660
        %3366 = vmatpush.msra.mxu0 %v652
        %3367 = vmatpush.msra.mxu0 %v644
        %3368 = vmatpush.msra.mxu0 %v636
        %3369 = vmatpush.msra.mxu0 %v628
        %3370 = vmatpush.msra.mxu0 %v620
        %3371 = vmatpush.msra.mxu0 %v612
        %3372 = vmatmul.f32.gmra.mxu0 %v2913
        %v3373 = vpop.f32.mrf.mxu0
        %v3374 = vadd.f32 %v2940, %v3373
        %3375 = vmatmul.f32.gmra.mxu0 %v2914
        %v3376 = vpop.f32.mrf.mxu0
        %v3377 = vadd.f32 %v2940, %v3376
        %3378 = vmatmul.f32.gmra.mxu0 %v2915
        %v3379 = vpop.f32.mrf.mxu0
        %v3380 = vadd.f32 %v2940, %v3379
        %3381 = vmatmul.f32.gmra.mxu0 %v2916
        %v3382 = vpop.f32.mrf.mxu0
        %v3383 = vadd.f32 %v2940, %v3382
        %3384 = vdwg.mxu0
        %3385 = vmatpush.msra.mxu0 %v733
        %3386 = vmatpush.msra.mxu0 %v725
        %3387 = vmatpush.msra.mxu0 %v717
        %3388 = vmatpush.msra.mxu0 %v709
        %3389 = vmatpush.msra.mxu0 %v701
        %3390 = vmatpush.msra.mxu0 %v693
        %3391 = vmatpush.msra.mxu0 %v685
        %3392 = vmatpush.msra.mxu0 %v677
        %3393 = vmatpush.msra.mxu0 %v669
        %3394 = vmatpush.msra.mxu0 %v661
        %3395 = vmatpush.msra.mxu0 %v653
        %3396 = vmatpush.msra.mxu0 %v645
        %3397 = vmatpush.msra.mxu0 %v637
        %3398 = vmatpush.msra.mxu0 %v629
        %3399 = vmatpush.msra.mxu0 %v621
        %3400 = vmatpush.msra.mxu0 %v613
        %3401 = vmatmul.f32.gmra.mxu0 %v2913
        %v3402 = vpop.f32.mrf.mxu0
        %v3403 = vadd.f32 %v2941, %v3402
        %3404 = vmatmul.f32.gmra.mxu0 %v2914
        %v3405 = vpop.f32.mrf.mxu0
        %v3406 = vadd.f32 %v2941, %v3405
        %3407 = vmatmul.f32.gmra.mxu0 %v2915
        %v3408 = vpop.f32.mrf.mxu0
        %v3409 = vadd.f32 %v2941, %v3408
        %3410 = vmatmul.f32.gmra.mxu0 %v2916
        %v3411 = vpop.f32.mrf.mxu0
        %v3412 = vadd.f32 %v2941, %v3411
        %3413 = vdwg.mxu0
        %3414 = vmatpush.msra.mxu0 %v726
        %3415 = vmatpush.msra.mxu0 %v718
        %3416 = vmatpush.msra.mxu0 %v710
        %3417 = vmatpush.msra.mxu0 %v702
        %3418 = vmatpush.msra.mxu0 %v694
        %3419 = vmatpush.msra.mxu0 %v686
        %3420 = vmatpush.msra.mxu0 %v678
        %3421 = vmatpush.msra.mxu0 %v670
        %3422 = vmatpush.msra.mxu0 %v662
        %3423 = vmatpush.msra.mxu0 %v654
        %3424 = vmatpush.msra.mxu0 %v646
        %3425 = vmatpush.msra.mxu0 %v638
        %3426 = vmatpush.msra.mxu0 %v630
        %3427 = vmatpush.msra.mxu0 %v622
        %3428 = vmatpush.msra.mxu0 %v614
        %3429 = vmatpush.msra.mxu0 %v606
        %3430 = vmatmul.f32.gmra.mxu0 %v2921
        %v3431 = vpop.f32.mrf.mxu0
        %v3432 = vadd.f32 %v2934, %v3431
        %3433 = vmatmul.f32.gmra.mxu0 %v2922
        %v3434 = vpop.f32.mrf.mxu0
        %v3435 = vadd.f32 %v2934, %v3434
        %3436 = vmatmul.f32.gmra.mxu0 %v2923
        %v3437 = vpop.f32.mrf.mxu0
        %v3438 = vadd.f32 %v2934, %v3437
        %3439 = vmatmul.f32.gmra.mxu0 %v2924
        %v3440 = vpop.f32.mrf.mxu0
        %v3441 = vadd.f32 %v2934, %v3440
        %3442 = vdwg.mxu0
        %3443 = vmatpush.msra.mxu0 %v727
        %3444 = vmatpush.msra.mxu0 %v719
        %3445 = vmatpush.msra.mxu0 %v711
        %3446 = vmatpush.msra.mxu0 %v703
        %3447 = vmatpush.msra.mxu0 %v695
        %3448 = vmatpush.msra.mxu0 %v687
        %3449 = vmatpush.msra.mxu0 %v679
        %3450 = vmatpush.msra.mxu0 %v671
        %3451 = vmatpush.msra.mxu0 %v663
        %3452 = vmatpush.msra.mxu0 %v655
        %3453 = vmatpush.msra.mxu0 %v647
        %3454 = vmatpush.msra.mxu0 %v639
        %3455 = vmatpush.msra.mxu0 %v631
        %3456 = vmatpush.msra.mxu0 %v623
        %3457 = vmatpush.msra.mxu0 %v615
        %3458 = vmatpush.msra.mxu0 %v607
        %3459 = vmatmul.f32.gmra.mxu0 %v2921
        %v3460 = vpop.f32.mrf.mxu0
        %v3461 = vadd.f32 %v2935, %v3460
        %3462 = vmatmul.f32.gmra.mxu0 %v2922
        %v3463 = vpop.f32.mrf.mxu0
        %v3464 = vadd.f32 %v2935, %v3463
        %3465 = vmatmul.f32.gmra.mxu0 %v2923
        %v3466 = vpop.f32.mrf.mxu0
        %v3467 = vadd.f32 %v2935, %v3466
        %3468 = vmatmul.f32.gmra.mxu0 %v2924
        %v3469 = vpop.f32.mrf.mxu0
        %v3470 = vadd.f32 %v2935, %v3469
        %3471 = vdwg.mxu0
        %3472 = vmatpush.msra.mxu0 %v728
        %3473 = vmatpush.msra.mxu0 %v720
        %3474 = vmatpush.msra.mxu0 %v712
        %3475 = vmatpush.msra.mxu0 %v704
        %3476 = vmatpush.msra.mxu0 %v696
        %3477 = vmatpush.msra.mxu0 %v688
        %3478 = vmatpush.msra.mxu0 %v680
        %3479 = vmatpush.msra.mxu0 %v672
        %3480 = vmatpush.msra.mxu0 %v664
        %3481 = vmatpush.msra.mxu0 %v656
        %3482 = vmatpush.msra.mxu0 %v648
        %3483 = vmatpush.msra.mxu0 %v640
        %3484 = vmatpush.msra.mxu0 %v632
        %3485 = vmatpush.msra.mxu0 %v624
        %3486 = vmatpush.msra.mxu0 %v616
        %3487 = vmatpush.msra.mxu0 %v608
        %3488 = vmatmul.f32.gmra.mxu0 %v2921
        %v3489 = vpop.f32.mrf.mxu0
        %v3490 = vadd.f32 %v2936, %v3489
        %3491 = vmatmul.f32.gmra.mxu0 %v2922
        %v3492 = vpop.f32.mrf.mxu0
        %v3493 = vadd.f32 %v2936, %v3492
        %3494 = vmatmul.f32.gmra.mxu0 %v2923
        %v3495 = vpop.f32.mrf.mxu0
        %v3496 = vadd.f32 %v2936, %v3495
        %3497 = vmatmul.f32.gmra.mxu0 %v2924
        %v3498 = vpop.f32.mrf.mxu0
        %v3499 = vadd.f32 %v2936, %v3498
        %3500 = vdwg.mxu0
        %3501 = vmatpush.msra.mxu0 %v729
        %3502 = vmatpush.msra.mxu0 %v721
        %3503 = vmatpush.msra.mxu0 %v713
        %3504 = vmatpush.msra.mxu0 %v705
        %3505 = vmatpush.msra.mxu0 %v697
        %3506 = vmatpush.msra.mxu0 %v689
        %3507 = vmatpush.msra.mxu0 %v681
        %3508 = vmatpush.msra.mxu0 %v673
        %3509 = vmatpush.msra.mxu0 %v665
        %3510 = vmatpush.msra.mxu0 %v657
        %3511 = vmatpush.msra.mxu0 %v649
        %3512 = vmatpush.msra.mxu0 %v641
        %3513 = vmatpush.msra.mxu0 %v633
        %3514 = vmatpush.msra.mxu0 %v625
        %3515 = vmatpush.msra.mxu0 %v617
        %3516 = vmatpush.msra.mxu0 %v609
        %3517 = vmatmul.f32.gmra.mxu0 %v2921
        %v3518 = vpop.f32.mrf.mxu0
        %v3519 = vadd.f32 %v2937, %v3518
        %3520 = vmatmul.f32.gmra.mxu0 %v2922
        %v3521 = vpop.f32.mrf.mxu0
        %v3522 = vadd.f32 %v2937, %v3521
        %3523 = vmatmul.f32.gmra.mxu0 %v2923
        %v3524 = vpop.f32.mrf.mxu0
        %v3525 = vadd.f32 %v2937, %v3524
        %3526 = vmatmul.f32.gmra.mxu0 %v2924
        %v3527 = vpop.f32.mrf.mxu0
        %v3528 = vadd.f32 %v2937, %v3527
        %3529 = vdwg.mxu0
        %3530 = vmatpush.msra.mxu0 %v730
        %3531 = vmatpush.msra.mxu0 %v722
        %3532 = vmatpush.msra.mxu0 %v714
        %3533 = vmatpush.msra.mxu0 %v706
        %3534 = vmatpush.msra.mxu0 %v698
        %3535 = vmatpush.msra.mxu0 %v690
        %3536 = vmatpush.msra.mxu0 %v682
        %3537 = vmatpush.msra.mxu0 %v674
        %3538 = vmatpush.msra.mxu0 %v666
        %3539 = vmatpush.msra.mxu0 %v658
        %3540 = vmatpush.msra.mxu0 %v650
        %3541 = vmatpush.msra.mxu0 %v642
        %3542 = vmatpush.msra.mxu0 %v634
        %3543 = vmatpush.msra.mxu0 %v626
        %3544 = vmatpush.msra.mxu0 %v618
        %3545 = vmatpush.msra.mxu0 %v610
        %3546 = vmatmul.f32.gmra.mxu0 %v2921
        %v3547 = vpop.f32.mrf.mxu0
        %v3548 = vadd.f32 %v2938, %v3547
        %3549 = vmatmul.f32.gmra.mxu0 %v2922
        %v3550 = vpop.f32.mrf.mxu0
        %v3551 = vadd.f32 %v2938, %v3550
        %3552 = vmatmul.f32.gmra.mxu0 %v2923
        %v3553 = vpop.f32.mrf.mxu0
        %v3554 = vadd.f32 %v2938, %v3553
        %3555 = vmatmul.f32.gmra.mxu0 %v2924
        %v3556 = vpop.f32.mrf.mxu0
        %v3557 = vadd.f32 %v2938, %v3556
        %3558 = vdwg.mxu0
        %3559 = vmatpush.msra.mxu0 %v731
        %3560 = vmatpush.msra.mxu0 %v723
        %3561 = vmatpush.msra.mxu0 %v715
        %3562 = vmatpush.msra.mxu0 %v707
        %3563 = vmatpush.msra.mxu0 %v699
        %3564 = vmatpush.msra.mxu0 %v691
        %3565 = vmatpush.msra.mxu0 %v683
        %3566 = vmatpush.msra.mxu0 %v675
        %3567 = vmatpush.msra.mxu0 %v667
        %3568 = vmatpush.msra.mxu0 %v659
        %3569 = vmatpush.msra.mxu0 %v651
        %3570 = vmatpush.msra.mxu0 %v643
        %3571 = vmatpush.msra.mxu0 %v635
        %3572 = vmatpush.msra.mxu0 %v627
        %3573 = vmatpush.msra.mxu0 %v619
        %3574 = vmatpush.msra.mxu0 %v611
        %3575 = vmatmul.f32.gmra.mxu0 %v2921
        %v3576 = vpop.f32.mrf.mxu0
        %v3577 = vadd.f32 %v2939, %v3576
        %3578 = vmatmul.f32.gmra.mxu0 %v2922
        %v3579 = vpop.f32.mrf.mxu0
        %v3580 = vadd.f32 %v2939, %v3579
        %3581 = vmatmul.f32.gmra.mxu0 %v2923
        %v3582 = vpop.f32.mrf.mxu0
        %v3583 = vadd.f32 %v2939, %v3582
        %3584 = vmatmul.f32.gmra.mxu0 %v2924
        %v3585 = vpop.f32.mrf.mxu0
        %v3586 = vadd.f32 %v2939, %v3585
        %3587 = vdwg.mxu0
        %3588 = vmatpush.msra.mxu0 %v732
        %3589 = vmatpush.msra.mxu0 %v724
        %3590 = vmatpush.msra.mxu0 %v716
        %3591 = vmatpush.msra.mxu0 %v708
        %3592 = vmatpush.msra.mxu0 %v700
        %3593 = vmatpush.msra.mxu0 %v692
        %3594 = vmatpush.msra.mxu0 %v684
        %3595 = vmatpush.msra.mxu0 %v676
        %3596 = vmatpush.msra.mxu0 %v668
        %3597 = vmatpush.msra.mxu0 %v660
        %3598 = vmatpush.msra.mxu0 %v652
        %3599 = vmatpush.msra.mxu0 %v644
        %3600 = vmatpush.msra.mxu0 %v636
        %3601 = vmatpush.msra.mxu0 %v628
        %3602 = vmatpush.msra.mxu0 %v620
        %3603 = vmatpush.msra.mxu0 %v612
        %3604 = vmatmul.f32.gmra.mxu0 %v2921
        %v3605 = vpop.f32.mrf.mxu0
        %v3606 = vadd.f32 %v2940, %v3605
        %3607 = vmatmul.f32.gmra.mxu0 %v2922
        %v3608 = vpop.f32.mrf.mxu0
        %v3609 = vadd.f32 %v2940, %v3608
        %3610 = vmatmul.f32.gmra.mxu0 %v2923
        %v3611 = vpop.f32.mrf.mxu0
        %v3612 = vadd.f32 %v2940, %v3611
        %3613 = vmatmul.f32.gmra.mxu0 %v2924
        %v3614 = vpop.f32.mrf.mxu0
        %v3615 = vadd.f32 %v2940, %v3614
        %3616 = vdwg.mxu0
        %3617 = vmatpush.msra.mxu0 %v733
        %3618 = vmatpush.msra.mxu0 %v725
        %3619 = vmatpush.msra.mxu0 %v717
        %3620 = vmatpush.msra.mxu0 %v709
        %3621 = vmatpush.msra.mxu0 %v701
        %3622 = vmatpush.msra.mxu0 %v693
        %3623 = vmatpush.msra.mxu0 %v685
        %3624 = vmatpush.msra.mxu0 %v677
        %3625 = vmatpush.msra.mxu0 %v669
        %3626 = vmatpush.msra.mxu0 %v661
        %3627 = vmatpush.msra.mxu0 %v653
        %3628 = vmatpush.msra.mxu0 %v645
        %3629 = vmatpush.msra.mxu0 %v637
        %3630 = vmatpush.msra.mxu0 %v629
        %3631 = vmatpush.msra.mxu0 %v621
        %3632 = vmatpush.msra.mxu0 %v613
        %3633 = vmatmul.f32.gmra.mxu0 %v2921
        %v3634 = vpop.f32.mrf.mxu0
        %v3635 = vadd.f32 %v2941, %v3634
        %3636 = vmatmul.f32.gmra.mxu0 %v2922
        %v3637 = vpop.f32.mrf.mxu0
        %v3638 = vadd.f32 %v2941, %v3637
        %3639 = vmatmul.f32.gmra.mxu0 %v2923
        %v3640 = vpop.f32.mrf.mxu0
        %v3641 = vadd.f32 %v2941, %v3640
        %3642 = vmatmul.f32.gmra.mxu0 %v2924
        %v3643 = vpop.f32.mrf.mxu0
        %v3644 = vadd.f32 %v2941, %v3643
        %3645 = vdwg.mxu0
        %3646 = vmatpush.msra.mxu0 %v726
        %3647 = vmatpush.msra.mxu0 %v718
        %3648 = vmatpush.msra.mxu0 %v710
        %3649 = vmatpush.msra.mxu0 %v702
        %3650 = vmatpush.msra.mxu0 %v694
        %3651 = vmatpush.msra.mxu0 %v686
        %3652 = vmatpush.msra.mxu0 %v678
        %3653 = vmatpush.msra.mxu0 %v670
        %3654 = vmatpush.msra.mxu0 %v662
        %3655 = vmatpush.msra.mxu0 %v654
        %3656 = vmatpush.msra.mxu0 %v646
        %3657 = vmatpush.msra.mxu0 %v638
        %3658 = vmatpush.msra.mxu0 %v630
        %3659 = vmatpush.msra.mxu0 %v622
        %3660 = vmatpush.msra.mxu0 %v614
        %3661 = vmatpush.msra.mxu0 %v606
        %3662 = vmatmul.f32.gmra.mxu0 %v2929
        %v3663 = vpop.f32.mrf.mxu0
        %v3664 = vadd.f32 %v2934, %v3663
        %3665 = vmatmul.f32.gmra.mxu0 %v2930
        %v3666 = vpop.f32.mrf.mxu0
        %v3667 = vadd.f32 %v2934, %v3666
        %3668 = vmatmul.f32.gmra.mxu0 %v2931
        %v3669 = vpop.f32.mrf.mxu0
        %v3670 = vadd.f32 %v2934, %v3669
        %3671 = vmatmul.f32.gmra.mxu0 %v2932
        %v3672 = vpop.f32.mrf.mxu0
        %v3673 = vadd.f32 %v2934, %v3672
        %3674 = vdwg.mxu0
        %3675 = vmatpush.msra.mxu0 %v727
        %3676 = vmatpush.msra.mxu0 %v719
        %3677 = vmatpush.msra.mxu0 %v711
        %3678 = vmatpush.msra.mxu0 %v703
        %3679 = vmatpush.msra.mxu0 %v695
        %3680 = vmatpush.msra.mxu0 %v687
        %3681 = vmatpush.msra.mxu0 %v679
        %3682 = vmatpush.msra.mxu0 %v671
        %3683 = vmatpush.msra.mxu0 %v663
        %3684 = vmatpush.msra.mxu0 %v655
        %3685 = vmatpush.msra.mxu0 %v647
        %3686 = vmatpush.msra.mxu0 %v639
        %3687 = vmatpush.msra.mxu0 %v631
        %3688 = vmatpush.msra.mxu0 %v623
        %3689 = vmatpush.msra.mxu0 %v615
        %3690 = vmatpush.msra.mxu0 %v607
        %3691 = vmatmul.f32.gmra.mxu0 %v2929
        %v3692 = vpop.f32.mrf.mxu0
        %v3693 = vadd.f32 %v2935, %v3692
        %3694 = vmatmul.f32.gmra.mxu0 %v2930
        %v3695 = vpop.f32.mrf.mxu0
        %v3696 = vadd.f32 %v2935, %v3695
        %3697 = vmatmul.f32.gmra.mxu0 %v2931
        %v3698 = vpop.f32.mrf.mxu0
        %v3699 = vadd.f32 %v2935, %v3698
        %3700 = vmatmul.f32.gmra.mxu0 %v2932
        %v3701 = vpop.f32.mrf.mxu0
        %v3702 = vadd.f32 %v2935, %v3701
        %3703 = vdwg.mxu0
        %3704 = vmatpush.msra.mxu0 %v728
        %3705 = vmatpush.msra.mxu0 %v720
        %3706 = vmatpush.msra.mxu0 %v712
        %3707 = vmatpush.msra.mxu0 %v704
        %3708 = vmatpush.msra.mxu0 %v696
        %3709 = vmatpush.msra.mxu0 %v688
        %3710 = vmatpush.msra.mxu0 %v680
        %3711 = vmatpush.msra.mxu0 %v672
        %3712 = vmatpush.msra.mxu0 %v664
        %3713 = vmatpush.msra.mxu0 %v656
        %3714 = vmatpush.msra.mxu0 %v648
        %3715 = vmatpush.msra.mxu0 %v640
        %3716 = vmatpush.msra.mxu0 %v632
        %3717 = vmatpush.msra.mxu0 %v624
        %3718 = vmatpush.msra.mxu0 %v616
        %3719 = vmatpush.msra.mxu0 %v608
        %3720 = vmatmul.f32.gmra.mxu0 %v2929
        %v3721 = vpop.f32.mrf.mxu0
        %v3722 = vadd.f32 %v2936, %v3721
        %3723 = vmatmul.f32.gmra.mxu0 %v2930
        %v3724 = vpop.f32.mrf.mxu0
        %v3725 = vadd.f32 %v2936, %v3724
        %3726 = vmatmul.f32.gmra.mxu0 %v2931
        %v3727 = vpop.f32.mrf.mxu0
        %v3728 = vadd.f32 %v2936, %v3727
        %3729 = vmatmul.f32.gmra.mxu0 %v2932
        %v3730 = vpop.f32.mrf.mxu0
        %v3731 = vadd.f32 %v2936, %v3730
        %3732 = vdwg.mxu0
        %3733 = vmatpush.msra.mxu0 %v729
        %3734 = vmatpush.msra.mxu0 %v721
        %3735 = vmatpush.msra.mxu0 %v713
        %3736 = vmatpush.msra.mxu0 %v705
        %3737 = vmatpush.msra.mxu0 %v697
        %3738 = vmatpush.msra.mxu0 %v689
        %3739 = vmatpush.msra.mxu0 %v681
        %3740 = vmatpush.msra.mxu0 %v673
        %3741 = vmatpush.msra.mxu0 %v665
        %3742 = vmatpush.msra.mxu0 %v657
        %3743 = vmatpush.msra.mxu0 %v649
        %3744 = vmatpush.msra.mxu0 %v641
        %3745 = vmatpush.msra.mxu0 %v633
        %3746 = vmatpush.msra.mxu0 %v625
        %3747 = vmatpush.msra.mxu0 %v617
        %3748 = vmatpush.msra.mxu0 %v609
        %3749 = vmatmul.f32.gmra.mxu0 %v2929
        %v3750 = vpop.f32.mrf.mxu0
        %v3751 = vadd.f32 %v2937, %v3750
        %3752 = vmatmul.f32.gmra.mxu0 %v2930
        %v3753 = vpop.f32.mrf.mxu0
        %v3754 = vadd.f32 %v2937, %v3753
        %3755 = vmatmul.f32.gmra.mxu0 %v2931
        %v3756 = vpop.f32.mrf.mxu0
        %v3757 = vadd.f32 %v2937, %v3756
        %3758 = vmatmul.f32.gmra.mxu0 %v2932
        %v3759 = vpop.f32.mrf.mxu0
        %v3760 = vadd.f32 %v2937, %v3759
        %3761 = vdwg.mxu0
        %3762 = vmatpush.msra.mxu0 %v730
        %3763 = vmatpush.msra.mxu0 %v722
        %3764 = vmatpush.msra.mxu0 %v714
        %3765 = vmatpush.msra.mxu0 %v706
        %3766 = vmatpush.msra.mxu0 %v698
        %3767 = vmatpush.msra.mxu0 %v690
        %3768 = vmatpush.msra.mxu0 %v682
        %3769 = vmatpush.msra.mxu0 %v674
        %3770 = vmatpush.msra.mxu0 %v666
        %3771 = vmatpush.msra.mxu0 %v658
        %3772 = vmatpush.msra.mxu0 %v650
        %3773 = vmatpush.msra.mxu0 %v642
        %3774 = vmatpush.msra.mxu0 %v634
        %3775 = vmatpush.msra.mxu0 %v626
        %3776 = vmatpush.msra.mxu0 %v618
        %3777 = vmatpush.msra.mxu0 %v610
        %3778 = vmatmul.f32.gmra.mxu0 %v2929
        %v3779 = vpop.f32.mrf.mxu0
        %v3780 = vadd.f32 %v2938, %v3779
        %3781 = vmatmul.f32.gmra.mxu0 %v2930
        %v3782 = vpop.f32.mrf.mxu0
        %v3783 = vadd.f32 %v2938, %v3782
        %3784 = vmatmul.f32.gmra.mxu0 %v2931
        %v3785 = vpop.f32.mrf.mxu0
        %v3786 = vadd.f32 %v2938, %v3785
        %3787 = vmatmul.f32.gmra.mxu0 %v2932
        %v3788 = vpop.f32.mrf.mxu0
        %v3789 = vadd.f32 %v2938, %v3788
        %3790 = vdwg.mxu0
        %3791 = vmatpush.msra.mxu0 %v731
        %3792 = vmatpush.msra.mxu0 %v723
        %3793 = vmatpush.msra.mxu0 %v715
        %3794 = vmatpush.msra.mxu0 %v707
        %3795 = vmatpush.msra.mxu0 %v699
        %3796 = vmatpush.msra.mxu0 %v691
        %3797 = vmatpush.msra.mxu0 %v683
        %3798 = vmatpush.msra.mxu0 %v675
        %3799 = vmatpush.msra.mxu0 %v667
        %3800 = vmatpush.msra.mxu0 %v659
        %3801 = vmatpush.msra.mxu0 %v651
        %3802 = vmatpush.msra.mxu0 %v643
        %3803 = vmatpush.msra.mxu0 %v635
        %3804 = vmatpush.msra.mxu0 %v627
        %3805 = vmatpush.msra.mxu0 %v619
        %3806 = vmatpush.msra.mxu0 %v611
        %3807 = vmatmul.f32.gmra.mxu0 %v2929
        %v3808 = vpop.f32.mrf.mxu0
        %v3809 = vadd.f32 %v2939, %v3808
        %3810 = vmatmul.f32.gmra.mxu0 %v2930
        %v3811 = vpop.f32.mrf.mxu0
        %v3812 = vadd.f32 %v2939, %v3811
        %3813 = vmatmul.f32.gmra.mxu0 %v2931
        %v3814 = vpop.f32.mrf.mxu0
        %v3815 = vadd.f32 %v2939, %v3814
        %3816 = vmatmul.f32.gmra.mxu0 %v2932
        %v3817 = vpop.f32.mrf.mxu0
        %v3818 = vadd.f32 %v2939, %v3817
        %3819 = vdwg.mxu0
        %3820 = vmatpush.msra.mxu0 %v732
        %3821 = vmatpush.msra.mxu0 %v724
        %3822 = vmatpush.msra.mxu0 %v716
        %3823 = vmatpush.msra.mxu0 %v708
        %3824 = vmatpush.msra.mxu0 %v700
        %3825 = vmatpush.msra.mxu0 %v692
        %3826 = vmatpush.msra.mxu0 %v684
        %3827 = vmatpush.msra.mxu0 %v676
        %3828 = vmatpush.msra.mxu0 %v668
        %3829 = vmatpush.msra.mxu0 %v660
        %3830 = vmatpush.msra.mxu0 %v652
        %3831 = vmatpush.msra.mxu0 %v644
        %3832 = vmatpush.msra.mxu0 %v636
        %3833 = vmatpush.msra.mxu0 %v628
        %3834 = vmatpush.msra.mxu0 %v620
        %3835 = vmatpush.msra.mxu0 %v612
        %3836 = vmatmul.f32.gmra.mxu0 %v2929
        %v3837 = vpop.f32.mrf.mxu0
        %v3838 = vadd.f32 %v2940, %v3837
        %3839 = vmatmul.f32.gmra.mxu0 %v2930
        %v3840 = vpop.f32.mrf.mxu0
        %v3841 = vadd.f32 %v2940, %v3840
        %3842 = vmatmul.f32.gmra.mxu0 %v2931
        %v3843 = vpop.f32.mrf.mxu0
        %v3844 = vadd.f32 %v2940, %v3843
        %3845 = vmatmul.f32.gmra.mxu0 %v2932
        %v3846 = vpop.f32.mrf.mxu0
        %v3847 = vadd.f32 %v2940, %v3846
        %3848 = vdwg.mxu0
        %3849 = vmatpush.msra.mxu0 %v733
        %3850 = vmatpush.msra.mxu0 %v725
        %3851 = vmatpush.msra.mxu0 %v717
        %3852 = vmatpush.msra.mxu0 %v709
        %3853 = vmatpush.msra.mxu0 %v701
        %3854 = vmatpush.msra.mxu0 %v693
        %3855 = vmatpush.msra.mxu0 %v685
        %3856 = vmatpush.msra.mxu0 %v677
        %3857 = vmatpush.msra.mxu0 %v669
        %3858 = vmatpush.msra.mxu0 %v661
        %3859 = vmatpush.msra.mxu0 %v653
        %3860 = vmatpush.msra.mxu0 %v645
        %3861 = vmatpush.msra.mxu0 %v637
        %3862 = vmatpush.msra.mxu0 %v629
        %3863 = vmatpush.msra.mxu0 %v621
        %3864 = vmatpush.msra.mxu0 %v613
        %3865 = vmatmul.f32.gmra.mxu0 %v2929
        %v3866 = vpop.f32.mrf.mxu0
        %v3867 = vadd.f32 %v2941, %v3866
        %3868 = vmatmul.f32.gmra.mxu0 %v2930
        %v3869 = vpop.f32.mrf.mxu0
        %v3870 = vadd.f32 %v2941, %v3869
        %3871 = vmatmul.f32.gmra.mxu0 %v2931
        %v3872 = vpop.f32.mrf.mxu0
        %v3873 = vadd.f32 %v2941, %v3872
        %3874 = vmatmul.f32.gmra.mxu0 %v2932
        %v3875 = vpop.f32.mrf.mxu0
        %v3876 = vadd.f32 %v2941, %v3875
        %3877 = vdwg.mxu0
        %v3878 = vadd.f32 %v2968, %v2997
        %v3879 = vadd.f32 %v3878, %v3026
        %v3880 = vadd.f32 %v3879, %v3055
        %v3881 = vadd.f32 %v3880, %v3084
        %v3882 = vadd.f32 %v3881, %v3113
        %v3883 = vadd.f32 %v3882, %v3142
        %v3884 = vadd.f32 %v3883, %v3171
        %3885 = vadd.xlane.f32.xlu0 %v3884
        %v3886 = vpop.xlane.xlu0 %3885
        %v3887 = vadd.f32 %v2971, %v3000
        %v3888 = vadd.f32 %v3887, %v3029
        %v3889 = vadd.f32 %v3888, %v3058
        %v3890 = vadd.f32 %v3889, %v3087
        %v3891 = vadd.f32 %v3890, %v3116
        %v3892 = vadd.f32 %v3891, %v3145
        %v3893 = vadd.f32 %v3892, %v3174
        %3894 = vadd.xlane.f32.xlu0 %v3893
        %v3895 = vpop.xlane.xlu0 %3894
        %v3896 = vadd.f32 %v2974, %v3003
        %v3897 = vadd.f32 %v3896, %v3032
        %v3898 = vadd.f32 %v3897, %v3061
        %v3899 = vadd.f32 %v3898, %v3090
        %v3900 = vadd.f32 %v3899, %v3119
        %v3901 = vadd.f32 %v3900, %v3148
        %v3902 = vadd.f32 %v3901, %v3177
        %3903 = vadd.xlane.f32.xlu0 %v3902
        %v3904 = vpop.xlane.xlu0 %3903
        %v3905 = vadd.f32 %v2977, %v3006
        %v3906 = vadd.f32 %v3905, %v3035
        %v3907 = vadd.f32 %v3906, %v3064
        %v3908 = vadd.f32 %v3907, %v3093
        %v3909 = vadd.f32 %v3908, %v3122
        %v3910 = vadd.f32 %v3909, %v3151
        %v3911 = vadd.f32 %v3910, %v3180
        %3912 = vadd.xlane.f32.xlu0 %v3911
        %v3913 = vpop.xlane.xlu0 %3912
        %v3914 = vadd.f32 %v3200, %v3229
        %v3915 = vadd.f32 %v3914, %v3258
        %v3916 = vadd.f32 %v3915, %v3287
        %v3917 = vadd.f32 %v3916, %v3316
        %v3918 = vadd.f32 %v3917, %v3345
        %v3919 = vadd.f32 %v3918, %v3374
        %v3920 = vadd.f32 %v3919, %v3403
        %3921 = vadd.xlane.f32.xlu0 %v3920
        %v3922 = vpop.xlane.xlu0 %3921
        %v3923 = vadd.f32 %v3203, %v3232
        %v3924 = vadd.f32 %v3923, %v3261
        %v3925 = vadd.f32 %v3924, %v3290
        %v3926 = vadd.f32 %v3925, %v3319
        %v3927 = vadd.f32 %v3926, %v3348
        %v3928 = vadd.f32 %v3927, %v3377
        %v3929 = vadd.f32 %v3928, %v3406
        %3930 = vadd.xlane.f32.xlu0 %v3929
        %v3931 = vpop.xlane.xlu0 %3930
        %v3932 = vadd.f32 %v3206, %v3235
        %v3933 = vadd.f32 %v3932, %v3264
        %v3934 = vadd.f32 %v3933, %v3293
        %v3935 = vadd.f32 %v3934, %v3322
        %v3936 = vadd.f32 %v3935, %v3351
        %v3937 = vadd.f32 %v3936, %v3380
        %v3938 = vadd.f32 %v3937, %v3409
        %3939 = vadd.xlane.f32.xlu0 %v3938
        %v3940 = vpop.xlane.xlu0 %3939
        %v3941 = vadd.f32 %v3209, %v3238
        %v3942 = vadd.f32 %v3941, %v3267
        %v3943 = vadd.f32 %v3942, %v3296
        %v3944 = vadd.f32 %v3943, %v3325
        %v3945 = vadd.f32 %v3944, %v3354
        %v3946 = vadd.f32 %v3945, %v3383
        %v3947 = vadd.f32 %v3946, %v3412
        %3948 = vadd.xlane.f32.xlu0 %v3947
        %v3949 = vpop.xlane.xlu0 %3948
        %v3950 = vadd.f32 %v3886, %v3922
        %v3951 = vadd.f32 %v3895, %v3931
        %v3952 = vadd.f32 %v3904, %v3940
        %v3953 = vadd.f32 %v3913, %v3949
        %v3954 = vadd.f32 %v3432, %v3461
        %v3955 = vadd.f32 %v3954, %v3490
        %v3956 = vadd.f32 %v3955, %v3519
        %v3957 = vadd.f32 %v3956, %v3548
        %v3958 = vadd.f32 %v3957, %v3577
        %v3959 = vadd.f32 %v3958, %v3606
        %v3960 = vadd.f32 %v3959, %v3635
        %3961 = vadd.xlane.f32.xlu0 %v3960
        %v3962 = vpop.xlane.xlu0 %3961
        %v3963 = vadd.f32 %v3435, %v3464
        %v3964 = vadd.f32 %v3963, %v3493
        %v3965 = vadd.f32 %v3964, %v3522
        %v3966 = vadd.f32 %v3965, %v3551
        %v3967 = vadd.f32 %v3966, %v3580
        %v3968 = vadd.f32 %v3967, %v3609
        %v3969 = vadd.f32 %v3968, %v3638
        %3970 = vadd.xlane.f32.xlu0 %v3969
        %v3971 = vpop.xlane.xlu0 %3970
        %v3972 = vadd.f32 %v3438, %v3467
        %v3973 = vadd.f32 %v3972, %v3496
        %v3974 = vadd.f32 %v3973, %v3525
        %v3975 = vadd.f32 %v3974, %v3554
        %v3976 = vadd.f32 %v3975, %v3583
        %v3977 = vadd.f32 %v3976, %v3612
        %v3978 = vadd.f32 %v3977, %v3641
        %3979 = vadd.xlane.f32.xlu0 %v3978
        %v3980 = vpop.xlane.xlu0 %3979
        %v3981 = vadd.f32 %v3441, %v3470
        %v3982 = vadd.f32 %v3981, %v3499
        %v3983 = vadd.f32 %v3982, %v3528
        %v3984 = vadd.f32 %v3983, %v3557
        %v3985 = vadd.f32 %v3984, %v3586
        %v3986 = vadd.f32 %v3985, %v3615
        %v3987 = vadd.f32 %v3986, %v3644
        %3988 = vadd.xlane.f32.xlu0 %v3987
        %v3989 = vpop.xlane.xlu0 %3988
        %v3990 = vadd.f32 %v3950, %v3962
        %v3991 = vadd.f32 %v3951, %v3971
        %v3992 = vadd.f32 %v3952, %v3980
        %v3993 = vadd.f32 %v3953, %v3989
        %v3994 = vadd.f32 %v3664, %v3693
        %v3995 = vadd.f32 %v3994, %v3722
        %v3996 = vadd.f32 %v3995, %v3751
        %v3997 = vadd.f32 %v3996, %v3780
        %v3998 = vadd.f32 %v3997, %v3809
        %v3999 = vadd.f32 %v3998, %v3838
        %v4000 = vadd.f32 %v3999, %v3867
        %4001 = vadd.xlane.f32.xlu0 %v4000
        %v4002 = vpop.xlane.xlu0 %4001
        %v4003 = vadd.f32 %v3667, %v3696
        %v4004 = vadd.f32 %v4003, %v3725
        %v4005 = vadd.f32 %v4004, %v3754
        %v4006 = vadd.f32 %v4005, %v3783
        %v4007 = vadd.f32 %v4006, %v3812
        %v4008 = vadd.f32 %v4007, %v3841
        %v4009 = vadd.f32 %v4008, %v3870
        %4010 = vadd.xlane.f32.xlu0 %v4009
        %v4011 = vpop.xlane.xlu0 %4010
        %v4012 = vadd.f32 %v3670, %v3699
        %v4013 = vadd.f32 %v4012, %v3728
        %v4014 = vadd.f32 %v4013, %v3757
        %v4015 = vadd.f32 %v4014, %v3786
        %v4016 = vadd.f32 %v4015, %v3815
        %v4017 = vadd.f32 %v4016, %v3844
        %v4018 = vadd.f32 %v4017, %v3873
        %4019 = vadd.xlane.f32.xlu0 %v4018
        %v4020 = vpop.xlane.xlu0 %4019
        %v4021 = vadd.f32 %v3673, %v3702
        %v4022 = vadd.f32 %v4021, %v3731
        %v4023 = vadd.f32 %v4022, %v3760
        %v4024 = vadd.f32 %v4023, %v3789
        %v4025 = vadd.f32 %v4024, %v3818
        %v4026 = vadd.f32 %v4025, %v3847
        %v4027 = vadd.f32 %v4026, %v3876
        %4028 = vadd.xlane.f32.xlu0 %v4027
        %v4029 = vpop.xlane.xlu0 %4028
        %v4030 = vadd.f32 %v3990, %v4002
        %v4031 = vadd.f32 %v3991, %v4011
        %v4032 = vadd.f32 %v3992, %v4020
        %v4033 = vadd.f32 %v3993, %v4029
        %v4034 = vmul.f32 %v4030, 0.00024414063
        %v4035 = vmul.f32 %v4031, 0.00024414063
        %v4036 = vmul.f32 %v4032, 0.00024414063
        %v4037 = vmul.f32 %v4033, 0.00024414063
        %v4038 = vsub.f32 %v2968, %v4034
        %v4039 = vsub.f32 %v2997, %v4034
        %v4040 = vsub.f32 %v3026, %v4034
        %v4041 = vsub.f32 %v3055, %v4034
        %v4042 = vsub.f32 %v3084, %v4034
        %v4043 = vsub.f32 %v3113, %v4034
        %v4044 = vsub.f32 %v3142, %v4034
        %v4045 = vsub.f32 %v3171, %v4034
        %v4046 = vsub.f32 %v2971, %v4035
        %v4047 = vsub.f32 %v3000, %v4035
        %v4048 = vsub.f32 %v3029, %v4035
        %v4049 = vsub.f32 %v3058, %v4035
        %v4050 = vsub.f32 %v3087, %v4035
        %v4051 = vsub.f32 %v3116, %v4035
        %v4052 = vsub.f32 %v3145, %v4035
        %v4053 = vsub.f32 %v3174, %v4035
        %v4054 = vsub.f32 %v2974, %v4036
        %v4055 = vsub.f32 %v3003, %v4036
        %v4056 = vsub.f32 %v3032, %v4036
        %v4057 = vsub.f32 %v3061, %v4036
        %v4058 = vsub.f32 %v3090, %v4036
        %v4059 = vsub.f32 %v3119, %v4036
        %v4060 = vsub.f32 %v3148, %v4036
        %v4061 = vsub.f32 %v3177, %v4036
        %v4062 = vsub.f32 %v2977, %v4037
        %v4063 = vsub.f32 %v3006, %v4037
        %v4064 = vsub.f32 %v3035, %v4037
        %v4065 = vsub.f32 %v3064, %v4037
        %v4066 = vsub.f32 %v3093, %v4037
        %v4067 = vsub.f32 %v3122, %v4037
        %v4068 = vsub.f32 %v3151, %v4037
        %v4069 = vsub.f32 %v3180, %v4037
        %v4070 = vsub.f32 %v3200, %v4034
        %v4071 = vsub.f32 %v3229, %v4034
        %v4072 = vsub.f32 %v3258, %v4034
        %v4073 = vsub.f32 %v3287, %v4034
        %v4074 = vsub.f32 %v3316, %v4034
        %v4075 = vsub.f32 %v3345, %v4034
        %v4076 = vsub.f32 %v3374, %v4034
        %v4077 = vsub.f32 %v3403, %v4034
        %v4078 = vsub.f32 %v3203, %v4035
        %v4079 = vsub.f32 %v3232, %v4035
        %v4080 = vsub.f32 %v3261, %v4035
        %v4081 = vsub.f32 %v3290, %v4035
        %v4082 = vsub.f32 %v3319, %v4035
        %v4083 = vsub.f32 %v3348, %v4035
        %v4084 = vsub.f32 %v3377, %v4035
        %v4085 = vsub.f32 %v3406, %v4035
        %v4086 = vsub.f32 %v3206, %v4036
        %v4087 = vsub.f32 %v3235, %v4036
        %v4088 = vsub.f32 %v3264, %v4036
        %v4089 = vsub.f32 %v3293, %v4036
        %v4090 = vsub.f32 %v3322, %v4036
        %v4091 = vsub.f32 %v3351, %v4036
        %v4092 = vsub.f32 %v3380, %v4036
        %v4093 = vsub.f32 %v3409, %v4036
        %v4094 = vsub.f32 %v3209, %v4037
        %v4095 = vsub.f32 %v3238, %v4037
        %v4096 = vsub.f32 %v3267, %v4037
        %v4097 = vsub.f32 %v3296, %v4037
        %v4098 = vsub.f32 %v3325, %v4037
        %v4099 = vsub.f32 %v3354, %v4037
        %v4100 = vsub.f32 %v3383, %v4037
        %v4101 = vsub.f32 %v3412, %v4037
        %v4102 = vsub.f32 %v3432, %v4034
        %v4103 = vsub.f32 %v3461, %v4034
        %v4104 = vsub.f32 %v3490, %v4034
        %v4105 = vsub.f32 %v3519, %v4034
        %v4106 = vsub.f32 %v3548, %v4034
        %v4107 = vsub.f32 %v3577, %v4034
        %v4108 = vsub.f32 %v3606, %v4034
        %v4109 = vsub.f32 %v3635, %v4034
        %v4110 = vsub.f32 %v3435, %v4035
        %v4111 = vsub.f32 %v3464, %v4035
        %v4112 = vsub.f32 %v3493, %v4035
        %v4113 = vsub.f32 %v3522, %v4035
        %v4114 = vsub.f32 %v3551, %v4035
        %v4115 = vsub.f32 %v3580, %v4035
        %v4116 = vsub.f32 %v3609, %v4035
        %v4117 = vsub.f32 %v3638, %v4035
        %v4118 = vsub.f32 %v3438, %v4036
        %v4119 = vsub.f32 %v3467, %v4036
        %v4120 = vsub.f32 %v3496, %v4036
        %v4121 = vsub.f32 %v3525, %v4036
        %v4122 = vsub.f32 %v3554, %v4036
        %v4123 = vsub.f32 %v3583, %v4036
        %v4124 = vsub.f32 %v3612, %v4036
        %v4125 = vsub.f32 %v3641, %v4036
        %v4126 = vsub.f32 %v3441, %v4037
        %v4127 = vsub.f32 %v3470, %v4037
        %v4128 = vsub.f32 %v3499, %v4037
        %v4129 = vsub.f32 %v3528, %v4037
        %v4130 = vsub.f32 %v3557, %v4037
        %v4131 = vsub.f32 %v3586, %v4037
        %v4132 = vsub.f32 %v3615, %v4037
        %v4133 = vsub.f32 %v3644, %v4037
        %v4134 = vsub.f32 %v3664, %v4034
        %v4135 = vsub.f32 %v3693, %v4034
        %v4136 = vsub.f32 %v3722, %v4034
        %v4137 = vsub.f32 %v3751, %v4034
        %v4138 = vsub.f32 %v3780, %v4034
        %v4139 = vsub.f32 %v3809, %v4034
        %v4140 = vsub.f32 %v3838, %v4034
        %v4141 = vsub.f32 %v3867, %v4034
        %v4142 = vsub.f32 %v3667, %v4035
        %v4143 = vsub.f32 %v3696, %v4035
        %v4144 = vsub.f32 %v3725, %v4035
        %v4145 = vsub.f32 %v3754, %v4035
        %v4146 = vsub.f32 %v3783, %v4035
        %v4147 = vsub.f32 %v3812, %v4035
        %v4148 = vsub.f32 %v3841, %v4035
        %v4149 = vsub.f32 %v3870, %v4035
        %v4150 = vsub.f32 %v3670, %v4036
        %v4151 = vsub.f32 %v3699, %v4036
        %v4152 = vsub.f32 %v3728, %v4036
        %v4153 = vsub.f32 %v3757, %v4036
        %v4154 = vsub.f32 %v3786, %v4036
        %v4155 = vsub.f32 %v3815, %v4036
        %v4156 = vsub.f32 %v3844, %v4036
        %v4157 = vsub.f32 %v3873, %v4036
        %v4158 = vsub.f32 %v3673, %v4037
        %v4159 = vsub.f32 %v3702, %v4037
        %v4160 = vsub.f32 %v3731, %v4037
        %v4161 = vsub.f32 %v3760, %v4037
        %v4162 = vsub.f32 %v3789, %v4037
        %v4163 = vsub.f32 %v3818, %v4037
        %v4164 = vsub.f32 %v3847, %v4037
        %v4165 = vsub.f32 %v3876, %v4037
        %v4166 = vmul.f32 %v4038, %v4038
        %v4167 = vmul.f32 %v4039, %v4039
        %v4168 = vmul.f32 %v4040, %v4040
        %v4169 = vmul.f32 %v4041, %v4041
        %v4170 = vmul.f32 %v4042, %v4042
        %v4171 = vmul.f32 %v4043, %v4043
        %v4172 = vmul.f32 %v4044, %v4044
        %v4173 = vmul.f32 %v4045, %v4045
        %v4174 = vmul.f32 %v4046, %v4046
        %v4175 = vmul.f32 %v4047, %v4047
        %v4176 = vmul.f32 %v4048, %v4048
        %v4177 = vmul.f32 %v4049, %v4049
        %v4178 = vmul.f32 %v4050, %v4050
        %v4179 = vmul.f32 %v4051, %v4051
        %v4180 = vmul.f32 %v4052, %v4052
        %v4181 = vmul.f32 %v4053, %v4053
        %v4182 = vmul.f32 %v4054, %v4054
        %v4183 = vmul.f32 %v4055, %v4055
        %v4184 = vmul.f32 %v4056, %v4056
        %v4185 = vmul.f32 %v4057, %v4057
        %v4186 = vmul.f32 %v4058, %v4058
        %v4187 = vmul.f32 %v4059, %v4059
        %v4188 = vmul.f32 %v4060, %v4060
        %v4189 = vmul.f32 %v4061, %v4061
        %v4190 = vmul.f32 %v4062, %v4062
        %v4191 = vmul.f32 %v4063, %v4063
        %v4192 = vmul.f32 %v4064, %v4064
        %v4193 = vmul.f32 %v4065, %v4065
        %v4194 = vmul.f32 %v4066, %v4066
        %v4195 = vmul.f32 %v4067, %v4067
        %v4196 = vmul.f32 %v4068, %v4068
        %v4197 = vmul.f32 %v4069, %v4069
        %v4198 = vadd.f32 %v4166, %v4167
        %v4199 = vadd.f32 %v4198, %v4168
        %v4200 = vadd.f32 %v4199, %v4169
        %v4201 = vadd.f32 %v4200, %v4170
        %v4202 = vadd.f32 %v4201, %v4171
        %v4203 = vadd.f32 %v4202, %v4172
        %v4204 = vadd.f32 %v4203, %v4173
        %4205 = vadd.xlane.f32.xlu0 %v4204
        %v4206 = vpop.xlane.xlu0 %4205
        %v4207 = vadd.f32 %v4174, %v4175
        %v4208 = vadd.f32 %v4207, %v4176
        %v4209 = vadd.f32 %v4208, %v4177
        %v4210 = vadd.f32 %v4209, %v4178
        %v4211 = vadd.f32 %v4210, %v4179
        %v4212 = vadd.f32 %v4211, %v4180
        %v4213 = vadd.f32 %v4212, %v4181
        %4214 = vadd.xlane.f32.xlu0 %v4213
        %v4215 = vpop.xlane.xlu0 %4214
        %v4216 = vadd.f32 %v4182, %v4183
        %v4217 = vadd.f32 %v4216, %v4184
        %v4218 = vadd.f32 %v4217, %v4185
        %v4219 = vadd.f32 %v4218, %v4186
        %v4220 = vadd.f32 %v4219, %v4187
        %v4221 = vadd.f32 %v4220, %v4188
        %v4222 = vadd.f32 %v4221, %v4189
        %4223 = vadd.xlane.f32.xlu0 %v4222
        %v4224 = vpop.xlane.xlu0 %4223
        %v4225 = vadd.f32 %v4190, %v4191
        %v4226 = vadd.f32 %v4225, %v4192
        %v4227 = vadd.f32 %v4226, %v4193
        %v4228 = vadd.f32 %v4227, %v4194
        %v4229 = vadd.f32 %v4228, %v4195
        %v4230 = vadd.f32 %v4229, %v4196
        %v4231 = vadd.f32 %v4230, %v4197
        %4232 = vadd.xlane.f32.xlu0 %v4231
        %v4233 = vpop.xlane.xlu0 %4232
        %v4234 = vmul.f32 %v4070, %v4070
        %v4235 = vmul.f32 %v4071, %v4071
        %v4236 = vmul.f32 %v4072, %v4072
        %v4237 = vmul.f32 %v4073, %v4073
        %v4238 = vmul.f32 %v4074, %v4074
        %v4239 = vmul.f32 %v4075, %v4075
        %v4240 = vmul.f32 %v4076, %v4076
        %v4241 = vmul.f32 %v4077, %v4077
        %v4242 = vmul.f32 %v4078, %v4078
        %v4243 = vmul.f32 %v4079, %v4079
        %v4244 = vmul.f32 %v4080, %v4080
        %v4245 = vmul.f32 %v4081, %v4081
        %v4246 = vmul.f32 %v4082, %v4082
        %v4247 = vmul.f32 %v4083, %v4083
        %v4248 = vmul.f32 %v4084, %v4084
        %v4249 = vmul.f32 %v4085, %v4085
        %v4250 = vmul.f32 %v4086, %v4086
        %v4251 = vmul.f32 %v4087, %v4087
        %v4252 = vmul.f32 %v4088, %v4088
        %v4253 = vmul.f32 %v4089, %v4089
        %v4254 = vmul.f32 %v4090, %v4090
        %v4255 = vmul.f32 %v4091, %v4091
        %v4256 = vmul.f32 %v4092, %v4092
        %v4257 = vmul.f32 %v4093, %v4093
        %v4258 = vmul.f32 %v4094, %v4094
        %v4259 = vmul.f32 %v4095, %v4095
        %v4260 = vmul.f32 %v4096, %v4096
        %v4261 = vmul.f32 %v4097, %v4097
        %v4262 = vmul.f32 %v4098, %v4098
        %v4263 = vmul.f32 %v4099, %v4099
        %v4264 = vmul.f32 %v4100, %v4100
        %v4265 = vmul.f32 %v4101, %v4101
        %v4266 = vadd.f32 %v4234, %v4235
        %v4267 = vadd.f32 %v4266, %v4236
        %v4268 = vadd.f32 %v4267, %v4237
        %v4269 = vadd.f32 %v4268, %v4238
        %v4270 = vadd.f32 %v4269, %v4239
        %v4271 = vadd.f32 %v4270, %v4240
        %v4272 = vadd.f32 %v4271, %v4241
        %4273 = vadd.xlane.f32.xlu0 %v4272
        %v4274 = vpop.xlane.xlu0 %4273
        %v4275 = vadd.f32 %v4242, %v4243
        %v4276 = vadd.f32 %v4275, %v4244
        %v4277 = vadd.f32 %v4276, %v4245
        %v4278 = vadd.f32 %v4277, %v4246
        %v4279 = vadd.f32 %v4278, %v4247
        %v4280 = vadd.f32 %v4279, %v4248
        %v4281 = vadd.f32 %v4280, %v4249
        %4282 = vadd.xlane.f32.xlu0 %v4281
        %v4283 = vpop.xlane.xlu0 %4282
        %v4284 = vadd.f32 %v4250, %v4251
        %v4285 = vadd.f32 %v4284, %v4252
        %v4286 = vadd.f32 %v4285, %v4253
        %v4287 = vadd.f32 %v4286, %v4254
        %v4288 = vadd.f32 %v4287, %v4255
        %v4289 = vadd.f32 %v4288, %v4256
        %v4290 = vadd.f32 %v4289, %v4257
        %4291 = vadd.xlane.f32.xlu0 %v4290
        %v4292 = vpop.xlane.xlu0 %4291
        %v4293 = vadd.f32 %v4258, %v4259
        %v4294 = vadd.f32 %v4293, %v4260
        %v4295 = vadd.f32 %v4294, %v4261
        %v4296 = vadd.f32 %v4295, %v4262
        %v4297 = vadd.f32 %v4296, %v4263
        %v4298 = vadd.f32 %v4297, %v4264
        %v4299 = vadd.f32 %v4298, %v4265
        %4300 = vadd.xlane.f32.xlu0 %v4299
        %v4301 = vpop.xlane.xlu0 %4300
        %v4302 = vadd.f32 %v4206, %v4274
        %v4303 = vadd.f32 %v4215, %v4283
        %v4304 = vadd.f32 %v4224, %v4292
        %v4305 = vadd.f32 %v4233, %v4301
        %v4306 = vmul.f32 %v4102, %v4102
        %v4307 = vmul.f32 %v4103, %v4103
        %v4308 = vmul.f32 %v4104, %v4104
        %v4309 = vmul.f32 %v4105, %v4105
        %v4310 = vmul.f32 %v4106, %v4106
        %v4311 = vmul.f32 %v4107, %v4107
        %v4312 = vmul.f32 %v4108, %v4108
        %v4313 = vmul.f32 %v4109, %v4109
        %v4314 = vmul.f32 %v4110, %v4110
        %v4315 = vmul.f32 %v4111, %v4111
        %v4316 = vmul.f32 %v4112, %v4112
        %v4317 = vmul.f32 %v4113, %v4113
        %v4318 = vmul.f32 %v4114, %v4114
        %v4319 = vmul.f32 %v4115, %v4115
        %v4320 = vmul.f32 %v4116, %v4116
        %v4321 = vmul.f32 %v4117, %v4117
        %v4322 = vmul.f32 %v4118, %v4118
        %v4323 = vmul.f32 %v4119, %v4119
        %v4324 = vmul.f32 %v4120, %v4120
        %v4325 = vmul.f32 %v4121, %v4121
        %v4326 = vmul.f32 %v4122, %v4122
        %v4327 = vmul.f32 %v4123, %v4123
        %v4328 = vmul.f32 %v4124, %v4124
        %v4329 = vmul.f32 %v4125, %v4125
        %v4330 = vmul.f32 %v4126, %v4126
        %v4331 = vmul.f32 %v4127, %v4127
        %v4332 = vmul.f32 %v4128, %v4128
        %v4333 = vmul.f32 %v4129, %v4129
        %v4334 = vmul.f32 %v4130, %v4130
        %v4335 = vmul.f32 %v4131, %v4131
        %v4336 = vmul.f32 %v4132, %v4132
        %v4337 = vmul.f32 %v4133, %v4133
        %v4338 = vadd.f32 %v4306, %v4307
        %v4339 = vadd.f32 %v4338, %v4308
        %v4340 = vadd.f32 %v4339, %v4309
        %v4341 = vadd.f32 %v4340, %v4310
        %v4342 = vadd.f32 %v4341, %v4311
        %v4343 = vadd.f32 %v4342, %v4312
        %v4344 = vadd.f32 %v4343, %v4313
        %4345 = vadd.xlane.f32.xlu0 %v4344
        %v4346 = vpop.xlane.xlu0 %4345
        %v4347 = vadd.f32 %v4314, %v4315
        %v4348 = vadd.f32 %v4347, %v4316
        %v4349 = vadd.f32 %v4348, %v4317
        %v4350 = vadd.f32 %v4349, %v4318
        %v4351 = vadd.f32 %v4350, %v4319
        %v4352 = vadd.f32 %v4351, %v4320
        %v4353 = vadd.f32 %v4352, %v4321
        %4354 = vadd.xlane.f32.xlu0 %v4353
        %v4355 = vpop.xlane.xlu0 %4354
        %v4356 = vadd.f32 %v4322, %v4323
        %v4357 = vadd.f32 %v4356, %v4324
        %v4358 = vadd.f32 %v4357, %v4325
        %v4359 = vadd.f32 %v4358, %v4326
        %v4360 = vadd.f32 %v4359, %v4327
        %v4361 = vadd.f32 %v4360, %v4328
        %v4362 = vadd.f32 %v4361, %v4329
        %4363 = vadd.xlane.f32.xlu0 %v4362
        %v4364 = vpop.xlane.xlu0 %4363
        %v4365 = vadd.f32 %v4330, %v4331
        %v4366 = vadd.f32 %v4365, %v4332
        %v4367 = vadd.f32 %v4366, %v4333
        %v4368 = vadd.f32 %v4367, %v4334
        %v4369 = vadd.f32 %v4368, %v4335
        %v4370 = vadd.f32 %v4369, %v4336
        %v4371 = vadd.f32 %v4370, %v4337
        %4372 = vadd.xlane.f32.xlu0 %v4371
        %v4373 = vpop.xlane.xlu0 %4372
        %v4374 = vadd.f32 %v4302, %v4346
        %v4375 = vadd.f32 %v4303, %v4355
        %v4376 = vadd.f32 %v4304, %v4364
        %v4377 = vadd.f32 %v4305, %v4373
        %v4378 = vmul.f32 %v4134, %v4134
        %v4379 = vmul.f32 %v4135, %v4135
        %v4380 = vmul.f32 %v4136, %v4136
        %v4381 = vmul.f32 %v4137, %v4137
        %v4382 = vmul.f32 %v4138, %v4138
        %v4383 = vmul.f32 %v4139, %v4139
        %v4384 = vmul.f32 %v4140, %v4140
        %v4385 = vmul.f32 %v4141, %v4141
        %v4386 = vmul.f32 %v4142, %v4142
        %v4387 = vmul.f32 %v4143, %v4143
        %v4388 = vmul.f32 %v4144, %v4144
        %v4389 = vmul.f32 %v4145, %v4145
        %v4390 = vmul.f32 %v4146, %v4146
        %v4391 = vmul.f32 %v4147, %v4147
        %v4392 = vmul.f32 %v4148, %v4148
        %v4393 = vmul.f32 %v4149, %v4149
        %v4394 = vmul.f32 %v4150, %v4150
        %v4395 = vmul.f32 %v4151, %v4151
        %v4396 = vmul.f32 %v4152, %v4152
        %v4397 = vmul.f32 %v4153, %v4153
        %v4398 = vmul.f32 %v4154, %v4154
        %v4399 = vmul.f32 %v4155, %v4155
        %v4400 = vmul.f32 %v4156, %v4156
        %v4401 = vmul.f32 %v4157, %v4157
        %v4402 = vmul.f32 %v4158, %v4158
        %v4403 = vmul.f32 %v4159, %v4159
        %v4404 = vmul.f32 %v4160, %v4160
        %v4405 = vmul.f32 %v4161, %v4161
        %v4406 = vmul.f32 %v4162, %v4162
        %v4407 = vmul.f32 %v4163, %v4163
        %v4408 = vmul.f32 %v4164, %v4164
        %v4409 = vmul.f32 %v4165, %v4165
        %v4410 = vadd.f32 %v4378, %v4379
        %v4411 = vadd.f32 %v4410, %v4380
        %v4412 = vadd.f32 %v4411, %v4381
        %v4413 = vadd.f32 %v4412, %v4382
        %v4414 = vadd.f32 %v4413, %v4383
        %v4415 = vadd.f32 %v4414, %v4384
        %v4416 = vadd.f32 %v4415, %v4385
        %4417 = vadd.xlane.f32.xlu0 %v4416
        %v4418 = vpop.xlane.xlu0 %4417
        %v4419 = vadd.f32 %v4386, %v4387
        %v4420 = vadd.f32 %v4419, %v4388
        %v4421 = vadd.f32 %v4420, %v4389
        %v4422 = vadd.f32 %v4421, %v4390
        %v4423 = vadd.f32 %v4422, %v4391
        %v4424 = vadd.f32 %v4423, %v4392
        %v4425 = vadd.f32 %v4424, %v4393
        %4426 = vadd.xlane.f32.xlu0 %v4425
        %v4427 = vpop.xlane.xlu0 %4426
        %v4428 = vadd.f32 %v4394, %v4395
        %v4429 = vadd.f32 %v4428, %v4396
        %v4430 = vadd.f32 %v4429, %v4397
        %v4431 = vadd.f32 %v4430, %v4398
        %v4432 = vadd.f32 %v4431, %v4399
        %v4433 = vadd.f32 %v4432, %v4400
        %v4434 = vadd.f32 %v4433, %v4401
        %4435 = vadd.xlane.f32.xlu0 %v4434
        %v4436 = vpop.xlane.xlu0 %4435
        %v4437 = vadd.f32 %v4402, %v4403
        %v4438 = vadd.f32 %v4437, %v4404
        %v4439 = vadd.f32 %v4438, %v4405
        %v4440 = vadd.f32 %v4439, %v4406
        %v4441 = vadd.f32 %v4440, %v4407
        %v4442 = vadd.f32 %v4441, %v4408
        %v4443 = vadd.f32 %v4442, %v4409
        %4444 = vadd.xlane.f32.xlu0 %v4443
        %v4445 = vpop.xlane.xlu0 %4444
        %v4446 = vadd.f32 %v4374, %v4418
        %v4447 = vadd.f32 %v4375, %v4427
        %v4448 = vadd.f32 %v4376, %v4436
        %v4449 = vadd.f32 %v4377, %v4445
        %v4450 = vmul.f32 %v4446, 0.00024414063
        %v4451 = vmul.f32 %v4447, 0.00024414063
        %v4452 = vmul.f32 %v4448, 0.00024414063
        %v4453 = vmul.f32 %v4449, 0.00024414063
        %v4454 = vadd.f32 %v4450, 1e-05
        %v4455 = vadd.f32 %v4451, 1e-05
        %v4456 = vadd.f32 %v4452, 1e-05
        %v4457 = vadd.f32 %v4453, 1e-05
        %v4458 = vrsqrt.pop %v4454
        %v4459 = vmul.f32 %v4458, %v4454
        %v4460 = vmul.f32 %v4459, %v4458
        %v4461 = vmul.f32 0.5, %v4460
        %v4462 = vsub.f32 1.5, %v4461
        %v4463 = vmul.f32 %v4458, %v4462
        %vm4464 = vweird.f32 %v4454
        %vm4465 = vweird.f32 %v4458
        %vm4466 = vmor %vm4464, %vm4465
        %v4467 = vsel %vm4466, %v4458, %v4463
        %v4468 = vrsqrt.pop %v4455
        %v4469 = vmul.f32 %v4468, %v4455
        %v4470 = vmul.f32 %v4469, %v4468
        %v4471 = vmul.f32 0.5, %v4470
        %v4472 = vsub.f32 1.5, %v4471
        %v4473 = vmul.f32 %v4468, %v4472
        %vm4474 = vweird.f32 %v4455
        %vm4475 = vweird.f32 %v4468
        %vm4476 = vmor %vm4474, %vm4475
        %v4477 = vsel %vm4476, %v4468, %v4473
        %v4478 = vrsqrt.pop %v4456
        %v4479 = vmul.f32 %v4478, %v4456
        %v4480 = vmul.f32 %v4479, %v4478
        %v4481 = vmul.f32 0.5, %v4480
        %v4482 = vsub.f32 1.5, %v4481
        %v4483 = vmul.f32 %v4478, %v4482
        %vm4484 = vweird.f32 %v4456
        %vm4485 = vweird.f32 %v4478
        %vm4486 = vmor %vm4484, %vm4485
        %v4487 = vsel %vm4486, %v4478, %v4483
        %v4488 = vrsqrt.pop %v4457
        %v4489 = vmul.f32 %v4488, %v4457
        %v4490 = vmul.f32 %v4489, %v4488
        %v4491 = vmul.f32 0.5, %v4490
        %v4492 = vsub.f32 1.5, %v4491
        %v4493 = vmul.f32 %v4488, %v4492
        %vm4494 = vweird.f32 %v4457
        %vm4495 = vweird.f32 %v4488
        %vm4496 = vmor %vm4494, %vm4495
        %v4497 = vsel %vm4496, %v4488, %v4493
        %v4498 = vmul.f32 %v4038, %v4467
        %v4499 = vmul.f32 %v4039, %v4467
        %v4500 = vmul.f32 %v4040, %v4467
        %v4501 = vmul.f32 %v4041, %v4467
        %v4502 = vmul.f32 %v4042, %v4467
        %v4503 = vmul.f32 %v4043, %v4467
        %v4504 = vmul.f32 %v4044, %v4467
        %v4505 = vmul.f32 %v4045, %v4467
        %v4506 = vmul.f32 %v4046, %v4477
        %v4507 = vmul.f32 %v4047, %v4477
        %v4508 = vmul.f32 %v4048, %v4477
        %v4509 = vmul.f32 %v4049, %v4477
        %v4510 = vmul.f32 %v4050, %v4477
        %v4511 = vmul.f32 %v4051, %v4477
        %v4512 = vmul.f32 %v4052, %v4477
        %v4513 = vmul.f32 %v4053, %v4477
        %v4514 = vmul.f32 %v4054, %v4487
        %v4515 = vmul.f32 %v4055, %v4487
        %v4516 = vmul.f32 %v4056, %v4487
        %v4517 = vmul.f32 %v4057, %v4487
        %v4518 = vmul.f32 %v4058, %v4487
        %v4519 = vmul.f32 %v4059, %v4487
        %v4520 = vmul.f32 %v4060, %v4487
        %v4521 = vmul.f32 %v4061, %v4487
        %v4522 = vmul.f32 %v4062, %v4497
        %v4523 = vmul.f32 %v4063, %v4497
        %v4524 = vmul.f32 %v4064, %v4497
        %v4525 = vmul.f32 %v4065, %v4497
        %v4526 = vmul.f32 %v4066, %v4497
        %v4527 = vmul.f32 %v4067, %v4497
        %v4528 = vmul.f32 %v4068, %v4497
        %v4529 = vmul.f32 %v4069, %v4497
        %v4530 = vmax.f32 %v4498, 0.0
        %v4531 = vmax.f32 %v4499, 0.0
        %v4532 = vmax.f32 %v4500, 0.0
        %v4533 = vmax.f32 %v4501, 0.0
        %v4534 = vmax.f32 %v4502, 0.0
        %v4535 = vmax.f32 %v4503, 0.0
        %v4536 = vmax.f32 %v4504, 0.0
        %v4537 = vmax.f32 %v4505, 0.0
        %v4538 = vmax.f32 %v4506, 0.0
        %v4539 = vmax.f32 %v4507, 0.0
        %v4540 = vmax.f32 %v4508, 0.0
        %v4541 = vmax.f32 %v4509, 0.0
        %v4542 = vmax.f32 %v4510, 0.0
        %v4543 = vmax.f32 %v4511, 0.0
        %v4544 = vmax.f32 %v4512, 0.0
        %v4545 = vmax.f32 %v4513, 0.0
        %v4546 = vmax.f32 %v4514, 0.0
        %v4547 = vmax.f32 %v4515, 0.0
        %v4548 = vmax.f32 %v4516, 0.0
        %v4549 = vmax.f32 %v4517, 0.0
        %v4550 = vmax.f32 %v4518, 0.0
        %v4551 = vmax.f32 %v4519, 0.0
        %v4552 = vmax.f32 %v4520, 0.0
        %v4553 = vmax.f32 %v4521, 0.0
        %v4554 = vmax.f32 %v4522, 0.0
        %v4555 = vmax.f32 %v4523, 0.0
        %v4556 = vmax.f32 %v4524, 0.0
        %v4557 = vmax.f32 %v4525, 0.0
        %v4558 = vmax.f32 %v4526, 0.0
        %v4559 = vmax.f32 %v4527, 0.0
        %v4560 = vmax.f32 %v4528, 0.0
        %v4561 = vmax.f32 %v4529, 0.0
        %v4562 = vmul.f32 %v4070, %v4467
        %v4563 = vmul.f32 %v4071, %v4467
        %v4564 = vmul.f32 %v4072, %v4467
        %v4565 = vmul.f32 %v4073, %v4467
        %v4566 = vmul.f32 %v4074, %v4467
        %v4567 = vmul.f32 %v4075, %v4467
        %v4568 = vmul.f32 %v4076, %v4467
        %v4569 = vmul.f32 %v4077, %v4467
        %v4570 = vmul.f32 %v4078, %v4477
        %v4571 = vmul.f32 %v4079, %v4477
        %v4572 = vmul.f32 %v4080, %v4477
        %v4573 = vmul.f32 %v4081, %v4477
        %v4574 = vmul.f32 %v4082, %v4477
        %v4575 = vmul.f32 %v4083, %v4477
        %v4576 = vmul.f32 %v4084, %v4477
        %v4577 = vmul.f32 %v4085, %v4477
        %v4578 = vmul.f32 %v4086, %v4487
        %v4579 = vmul.f32 %v4087, %v4487
        %v4580 = vmul.f32 %v4088, %v4487
        %v4581 = vmul.f32 %v4089, %v4487
        %v4582 = vmul.f32 %v4090, %v4487
        %v4583 = vmul.f32 %v4091, %v4487
        %v4584 = vmul.f32 %v4092, %v4487
        %v4585 = vmul.f32 %v4093, %v4487
        %v4586 = vmul.f32 %v4094, %v4497
        %v4587 = vmul.f32 %v4095, %v4497
        %v4588 = vmul.f32 %v4096, %v4497
        %v4589 = vmul.f32 %v4097, %v4497
        %v4590 = vmul.f32 %v4098, %v4497
        %v4591 = vmul.f32 %v4099, %v4497
        %v4592 = vmul.f32 %v4100, %v4497
        %v4593 = vmul.f32 %v4101, %v4497
        %v4594 = vmax.f32 %v4562, 0.0
        %v4595 = vmax.f32 %v4563, 0.0
        %v4596 = vmax.f32 %v4564, 0.0
        %v4597 = vmax.f32 %v4565, 0.0
        %v4598 = vmax.f32 %v4566, 0.0
        %v4599 = vmax.f32 %v4567, 0.0
        %v4600 = vmax.f32 %v4568, 0.0
        %v4601 = vmax.f32 %v4569, 0.0
        %v4602 = vmax.f32 %v4570, 0.0
        %v4603 = vmax.f32 %v4571, 0.0
        %v4604 = vmax.f32 %v4572, 0.0
        %v4605 = vmax.f32 %v4573, 0.0
        %v4606 = vmax.f32 %v4574, 0.0
        %v4607 = vmax.f32 %v4575, 0.0
        %v4608 = vmax.f32 %v4576, 0.0
        %v4609 = vmax.f32 %v4577, 0.0
        %v4610 = vmax.f32 %v4578, 0.0
        %v4611 = vmax.f32 %v4579, 0.0
        %v4612 = vmax.f32 %v4580, 0.0
        %v4613 = vmax.f32 %v4581, 0.0
        %v4614 = vmax.f32 %v4582, 0.0
        %v4615 = vmax.f32 %v4583, 0.0
        %v4616 = vmax.f32 %v4584, 0.0
        %v4617 = vmax.f32 %v4585, 0.0
        %v4618 = vmax.f32 %v4586, 0.0
        %v4619 = vmax.f32 %v4587, 0.0
        %v4620 = vmax.f32 %v4588, 0.0
        %v4621 = vmax.f32 %v4589, 0.0
        %v4622 = vmax.f32 %v4590, 0.0
        %v4623 = vmax.f32 %v4591, 0.0
        %v4624 = vmax.f32 %v4592, 0.0
        %v4625 = vmax.f32 %v4593, 0.0
        %v4626 = vmul.f32 %v4102, %v4467
        %v4627 = vmul.f32 %v4103, %v4467
        %v4628 = vmul.f32 %v4104, %v4467
        %v4629 = vmul.f32 %v4105, %v4467
        %v4630 = vmul.f32 %v4106, %v4467
        %v4631 = vmul.f32 %v4107, %v4467
        %v4632 = vmul.f32 %v4108, %v4467
        %v4633 = vmul.f32 %v4109, %v4467
        %v4634 = vmul.f32 %v4110, %v4477
        %v4635 = vmul.f32 %v4111, %v4477
        %v4636 = vmul.f32 %v4112, %v4477
        %v4637 = vmul.f32 %v4113, %v4477
        %v4638 = vmul.f32 %v4114, %v4477
        %v4639 = vmul.f32 %v4115, %v4477
        %v4640 = vmul.f32 %v4116, %v4477
        %v4641 = vmul.f32 %v4117, %v4477
        %v4642 = vmul.f32 %v4118, %v4487
        %v4643 = vmul.f32 %v4119, %v4487
        %v4644 = vmul.f32 %v4120, %v4487
        %v4645 = vmul.f32 %v4121, %v4487
        %v4646 = vmul.f32 %v4122, %v4487
        %v4647 = vmul.f32 %v4123, %v4487
        %v4648 = vmul.f32 %v4124, %v4487
        %v4649 = vmul.f32 %v4125, %v4487
        %v4650 = vmul.f32 %v4126, %v4497
        %v4651 = vmul.f32 %v4127, %v4497
        %v4652 = vmul.f32 %v4128, %v4497
        %v4653 = vmul.f32 %v4129, %v4497
        %v4654 = vmul.f32 %v4130, %v4497
        %v4655 = vmul.f32 %v4131, %v4497
        %v4656 = vmul.f32 %v4132, %v4497
        %v4657 = vmul.f32 %v4133, %v4497
        %v4658 = vmax.f32 %v4626, 0.0
        %v4659 = vmax.f32 %v4627, 0.0
        %v4660 = vmax.f32 %v4628, 0.0
        %v4661 = vmax.f32 %v4629, 0.0
        %v4662 = vmax.f32 %v4630, 0.0
        %v4663 = vmax.f32 %v4631, 0.0
        %v4664 = vmax.f32 %v4632, 0.0
        %v4665 = vmax.f32 %v4633, 0.0
        %v4666 = vmax.f32 %v4634, 0.0
        %v4667 = vmax.f32 %v4635, 0.0
        %v4668 = vmax.f32 %v4636, 0.0
        %v4669 = vmax.f32 %v4637, 0.0
        %v4670 = vmax.f32 %v4638, 0.0
        %v4671 = vmax.f32 %v4639, 0.0
        %v4672 = vmax.f32 %v4640, 0.0
        %v4673 = vmax.f32 %v4641, 0.0
        %v4674 = vmax.f32 %v4642, 0.0
        %v4675 = vmax.f32 %v4643, 0.0
        %v4676 = vmax.f32 %v4644, 0.0
        %v4677 = vmax.f32 %v4645, 0.0
        %v4678 = vmax.f32 %v4646, 0.0
        %v4679 = vmax.f32 %v4647, 0.0
        %v4680 = vmax.f32 %v4648, 0.0
        %v4681 = vmax.f32 %v4649, 0.0
        %v4682 = vmax.f32 %v4650, 0.0
        %v4683 = vmax.f32 %v4651, 0.0
        %v4684 = vmax.f32 %v4652, 0.0
        %v4685 = vmax.f32 %v4653, 0.0
        %v4686 = vmax.f32 %v4654, 0.0
        %v4687 = vmax.f32 %v4655, 0.0
        %v4688 = vmax.f32 %v4656, 0.0
        %v4689 = vmax.f32 %v4657, 0.0
        %v4690 = vmul.f32 %v4134, %v4467
        %v4691 = vmul.f32 %v4135, %v4467
        %v4692 = vmul.f32 %v4136, %v4467
        %v4693 = vmul.f32 %v4137, %v4467
        %v4694 = vmul.f32 %v4138, %v4467
        %v4695 = vmul.f32 %v4139, %v4467
        %v4696 = vmul.f32 %v4140, %v4467
        %v4697 = vmul.f32 %v4141, %v4467
        %v4698 = vmul.f32 %v4142, %v4477
        %v4699 = vmul.f32 %v4143, %v4477
        %v4700 = vmul.f32 %v4144, %v4477
        %v4701 = vmul.f32 %v4145, %v4477
        %v4702 = vmul.f32 %v4146, %v4477
        %v4703 = vmul.f32 %v4147, %v4477
        %v4704 = vmul.f32 %v4148, %v4477
        %v4705 = vmul.f32 %v4149, %v4477
        %v4706 = vmul.f32 %v4150, %v4487
        %v4707 = vmul.f32 %v4151, %v4487
        %v4708 = vmul.f32 %v4152, %v4487
        %v4709 = vmul.f32 %v4153, %v4487
        %v4710 = vmul.f32 %v4154, %v4487
        %v4711 = vmul.f32 %v4155, %v4487
        %v4712 = vmul.f32 %v4156, %v4487
        %v4713 = vmul.f32 %v4157, %v4487
        %v4714 = vmul.f32 %v4158, %v4497
        %v4715 = vmul.f32 %v4159, %v4497
        %v4716 = vmul.f32 %v4160, %v4497
        %v4717 = vmul.f32 %v4161, %v4497
        %v4718 = vmul.f32 %v4162, %v4497
        %v4719 = vmul.f32 %v4163, %v4497
        %v4720 = vmul.f32 %v4164, %v4497
        %v4721 = vmul.f32 %v4165, %v4497
        %v4722 = vmax.f32 %v4690, 0.0
        %v4723 = vmax.f32 %v4691, 0.0
        %v4724 = vmax.f32 %v4692, 0.0
        %v4725 = vmax.f32 %v4693, 0.0
        %v4726 = vmax.f32 %v4694, 0.0
        %v4727 = vmax.f32 %v4695, 0.0
        %v4728 = vmax.f32 %v4696, 0.0
        %v4729 = vmax.f32 %v4697, 0.0
        %v4730 = vmax.f32 %v4698, 0.0
        %v4731 = vmax.f32 %v4699, 0.0
        %v4732 = vmax.f32 %v4700, 0.0
        %v4733 = vmax.f32 %v4701, 0.0
        %v4734 = vmax.f32 %v4702, 0.0
        %v4735 = vmax.f32 %v4703, 0.0
        %v4736 = vmax.f32 %v4704, 0.0
        %v4737 = vmax.f32 %v4705, 0.0
        %v4738 = vmax.f32 %v4706, 0.0
        %v4739 = vmax.f32 %v4707, 0.0
        %v4740 = vmax.f32 %v4708, 0.0
        %v4741 = vmax.f32 %v4709, 0.0
        %v4742 = vmax.f32 %v4710, 0.0
        %v4743 = vmax.f32 %v4711, 0.0
        %v4744 = vmax.f32 %v4712, 0.0
        %v4745 = vmax.f32 %v4713, 0.0
        %v4746 = vmax.f32 %v4714, 0.0
        %v4747 = vmax.f32 %v4715, 0.0
        %v4748 = vmax.f32 %v4716, 0.0
        %v4749 = vmax.f32 %v4717, 0.0
        %v4750 = vmax.f32 %v4718, 0.0
        %v4751 = vmax.f32 %v4719, 0.0
        %v4752 = vmax.f32 %v4720, 0.0
        %v4753 = vmax.f32 %v4721, 0.0
        %v4754 = vsel %vm564, 1, 0
        %v4755 = vsel %vm565, 1, 0
        %v4756 = vsel %vm566, 1, 0
        %v4757 = vsel %vm567, 1, 0
        %vm4758 = vcmp.eq.s32.totalorder %v4754, 1
        %vm4759 = vcmp.eq.s32.totalorder %v4755, 1
        %vm4760 = vcmp.eq.s32.totalorder %v4756, 1
        %vm4761 = vcmp.eq.s32.totalorder %v4757, 1
        %v4762 = vsel %vm4758, %v4530, 0.0
        %v4763 = vsel %vm4758, %v4531, 0.0
        %v4764 = vsel %vm4758, %v4532, 0.0
        %v4765 = vsel %vm4758, %v4533, 0.0
        %v4766 = vsel %vm4758, %v4534, 0.0
        %v4767 = vsel %vm4758, %v4535, 0.0
        %v4768 = vsel %vm4758, %v4536, 0.0
        %v4769 = vsel %vm4758, %v4537, 0.0
        %v4770 = vsel %vm4759, %v4538, 0.0
        %v4771 = vsel %vm4759, %v4539, 0.0
        %v4772 = vsel %vm4759, %v4540, 0.0
        %v4773 = vsel %vm4759, %v4541, 0.0
        %v4774 = vsel %vm4759, %v4542, 0.0
        %v4775 = vsel %vm4759, %v4543, 0.0
        %v4776 = vsel %vm4759, %v4544, 0.0
        %v4777 = vsel %vm4759, %v4545, 0.0
        %v4778 = vsel %vm4760, %v4546, 0.0
        %v4779 = vsel %vm4760, %v4547, 0.0
        %v4780 = vsel %vm4760, %v4548, 0.0
        %v4781 = vsel %vm4760, %v4549, 0.0
        %v4782 = vsel %vm4760, %v4550, 0.0
        %v4783 = vsel %vm4760, %v4551, 0.0
        %v4784 = vsel %vm4760, %v4552, 0.0
        %v4785 = vsel %vm4760, %v4553, 0.0
        %v4786 = vsel %vm4761, %v4554, 0.0
        %v4787 = vsel %vm4761, %v4555, 0.0
        %v4788 = vsel %vm4761, %v4556, 0.0
        %v4789 = vsel %vm4761, %v4557, 0.0
        %v4790 = vsel %vm4761, %v4558, 0.0
        %v4791 = vsel %vm4761, %v4559, 0.0
        %v4792 = vsel %vm4761, %v4560, 0.0
        %v4793 = vsel %vm4761, %v4561, 0.0
        %v4794 = vmax.f32 %v4762, %v4770
        %v4795 = vmax.f32 %v4794, %v4778
        %v4796 = vmax.f32 %v4795, %v4786
        %v4797 = vrot.slane %v4796, 4
        %v4798 = vmax.f32 %v4796, %v4797
        %v4799 = vrot.slane %v4798, 2
        %v4800 = vmax.f32 %v4798, %v4799
        %v4801 = vrot.slane %v4800, 1
        %v4802 = vmax.f32 %v4800, %v4801
        %v4803 = vmax.f32 %v4763, %v4771
        %v4804 = vmax.f32 %v4803, %v4779
        %v4805 = vmax.f32 %v4804, %v4787
        %v4806 = vrot.slane %v4805, 4
        %v4807 = vmax.f32 %v4805, %v4806
        %v4808 = vrot.slane %v4807, 2
        %v4809 = vmax.f32 %v4807, %v4808
        %v4810 = vrot.slane %v4809, 1
        %v4811 = vmax.f32 %v4809, %v4810
        %v4812 = vmax.f32 %v4764, %v4772
        %v4813 = vmax.f32 %v4812, %v4780
        %v4814 = vmax.f32 %v4813, %v4788
        %v4815 = vrot.slane %v4814, 4
        %v4816 = vmax.f32 %v4814, %v4815
        %v4817 = vrot.slane %v4816, 2
        %v4818 = vmax.f32 %v4816, %v4817
        %v4819 = vrot.slane %v4818, 1
        %v4820 = vmax.f32 %v4818, %v4819
        %v4821 = vmax.f32 %v4765, %v4773
        %v4822 = vmax.f32 %v4821, %v4781
        %v4823 = vmax.f32 %v4822, %v4789
        %v4824 = vrot.slane %v4823, 4
        %v4825 = vmax.f32 %v4823, %v4824
        %v4826 = vrot.slane %v4825, 2
        %v4827 = vmax.f32 %v4825, %v4826
        %v4828 = vrot.slane %v4827, 1
        %v4829 = vmax.f32 %v4827, %v4828
        %v4830 = vmax.f32 %v4766, %v4774
        %v4831 = vmax.f32 %v4830, %v4782
        %v4832 = vmax.f32 %v4831, %v4790
        %v4833 = vrot.slane %v4832, 4
        %v4834 = vmax.f32 %v4832, %v4833
        %v4835 = vrot.slane %v4834, 2
        %v4836 = vmax.f32 %v4834, %v4835
        %v4837 = vrot.slane %v4836, 1
        %v4838 = vmax.f32 %v4836, %v4837
        %v4839 = vmax.f32 %v4767, %v4775
        %v4840 = vmax.f32 %v4839, %v4783
        %v4841 = vmax.f32 %v4840, %v4791
        %v4842 = vrot.slane %v4841, 4
        %v4843 = vmax.f32 %v4841, %v4842
        %v4844 = vrot.slane %v4843, 2
        %v4845 = vmax.f32 %v4843, %v4844
        %v4846 = vrot.slane %v4845, 1
        %v4847 = vmax.f32 %v4845, %v4846
        %v4848 = vmax.f32 %v4768, %v4776
        %v4849 = vmax.f32 %v4848, %v4784
        %v4850 = vmax.f32 %v4849, %v4792
        %v4851 = vrot.slane %v4850, 4
        %v4852 = vmax.f32 %v4850, %v4851
        %v4853 = vrot.slane %v4852, 2
        %v4854 = vmax.f32 %v4852, %v4853
        %v4855 = vrot.slane %v4854, 1
        %v4856 = vmax.f32 %v4854, %v4855
        %v4857 = vmax.f32 %v4769, %v4777
        %v4858 = vmax.f32 %v4857, %v4785
        %v4859 = vmax.f32 %v4858, %v4793
        %v4860 = vrot.slane %v4859, 4
        %v4861 = vmax.f32 %v4859, %v4860
        %v4862 = vrot.slane %v4861, 2
        %v4863 = vmax.f32 %v4861, %v4862
        %v4864 = vrot.slane %v4863, 1
        %v4865 = vmax.f32 %v4863, %v4864
        %v4874 = vrot.slane %v4811, 7
        %v4875 = vrot.slane %v4820, 6
        %v4876 = vrot.slane %v4829, 5
        %v4877 = vrot.slane %v4838, 4
        %v4878 = vrot.slane %v4847, 3
        %v4879 = vrot.slane %v4856, 2
        %v4880 = vrot.slane %v4865, 1
        %vm4881 = vcmask 1040384
        %v4882 = vsel %vm4881, %v4802, %v4874
        %vm4883 = vcmask 1042434
        %v4884 = vsel %vm4883, %v4875, %v4876
        %vm4885 = vcmask 1041408
        %v4886 = vsel %vm4885, %v4882, %v4884
        %vm4887 = vcmask 1044484
        %v4888 = vsel %vm4887, %v4877, %v4878
        %vm4889 = vcmask 1046534
        %v4890 = vsel %vm4889, %v4879, %v4880
        %vm4891 = vcmask 1045508
        %v4892 = vsel %vm4891, %v4888, %v4890
        %vm4893 = vcmask 1043456
        %v4894 = vsel %vm4893, %v4886, %v4892
        %4896 = vst [vmem:[%s551] ss:$4 sm:$0xff] %v4894
        %v4897 = vsel %vm4758, %v4594, 0.0
        %v4898 = vsel %vm4758, %v4595, 0.0
        %v4899 = vsel %vm4758, %v4596, 0.0
        %v4900 = vsel %vm4758, %v4597, 0.0
        %v4901 = vsel %vm4758, %v4598, 0.0
        %v4902 = vsel %vm4758, %v4599, 0.0
        %v4903 = vsel %vm4758, %v4600, 0.0
        %v4904 = vsel %vm4758, %v4601, 0.0
        %v4905 = vsel %vm4759, %v4602, 0.0
        %v4906 = vsel %vm4759, %v4603, 0.0
        %v4907 = vsel %vm4759, %v4604, 0.0
        %v4908 = vsel %vm4759, %v4605, 0.0
        %v4909 = vsel %vm4759, %v4606, 0.0
        %v4910 = vsel %vm4759, %v4607, 0.0
        %v4911 = vsel %vm4759, %v4608, 0.0
        %v4912 = vsel %vm4759, %v4609, 0.0
        %v4913 = vsel %vm4760, %v4610, 0.0
        %v4914 = vsel %vm4760, %v4611, 0.0
        %v4915 = vsel %vm4760, %v4612, 0.0
        %v4916 = vsel %vm4760, %v4613, 0.0
        %v4917 = vsel %vm4760, %v4614, 0.0
        %v4918 = vsel %vm4760, %v4615, 0.0
        %v4919 = vsel %vm4760, %v4616, 0.0
        %v4920 = vsel %vm4760, %v4617, 0.0
        %v4921 = vsel %vm4761, %v4618, 0.0
        %v4922 = vsel %vm4761, %v4619, 0.0
        %v4923 = vsel %vm4761, %v4620, 0.0
        %v4924 = vsel %vm4761, %v4621, 0.0
        %v4925 = vsel %vm4761, %v4622, 0.0
        %v4926 = vsel %vm4761, %v4623, 0.0
        %v4927 = vsel %vm4761, %v4624, 0.0
        %v4928 = vsel %vm4761, %v4625, 0.0
        %v4929 = vmax.f32 %v4897, %v4905
        %v4930 = vmax.f32 %v4929, %v4913
        %v4931 = vmax.f32 %v4930, %v4921
        %v4932 = vrot.slane %v4931, 4
        %v4933 = vmax.f32 %v4931, %v4932
        %v4934 = vrot.slane %v4933, 2
        %v4935 = vmax.f32 %v4933, %v4934
        %v4936 = vrot.slane %v4935, 1
        %v4937 = vmax.f32 %v4935, %v4936
        %v4938 = vmax.f32 %v4898, %v4906
        %v4939 = vmax.f32 %v4938, %v4914
        %v4940 = vmax.f32 %v4939, %v4922
        %v4941 = vrot.slane %v4940, 4
        %v4942 = vmax.f32 %v4940, %v4941
        %v4943 = vrot.slane %v4942, 2
        %v4944 = vmax.f32 %v4942, %v4943
        %v4945 = vrot.slane %v4944, 1
        %v4946 = vmax.f32 %v4944, %v4945
        %v4947 = vmax.f32 %v4899, %v4907
        %v4948 = vmax.f32 %v4947, %v4915
        %v4949 = vmax.f32 %v4948, %v4923
        %v4950 = vrot.slane %v4949, 4
        %v4951 = vmax.f32 %v4949, %v4950
        %v4952 = vrot.slane %v4951, 2
        %v4953 = vmax.f32 %v4951, %v4952
        %v4954 = vrot.slane %v4953, 1
        %v4955 = vmax.f32 %v4953, %v4954
        %v4956 = vmax.f32 %v4900, %v4908
        %v4957 = vmax.f32 %v4956, %v4916
        %v4958 = vmax.f32 %v4957, %v4924
        %v4959 = vrot.slane %v4958, 4
        %v4960 = vmax.f32 %v4958, %v4959
        %v4961 = vrot.slane %v4960, 2
        %v4962 = vmax.f32 %v4960, %v4961
        %v4963 = vrot.slane %v4962, 1
        %v4964 = vmax.f32 %v4962, %v4963
        %v4965 = vmax.f32 %v4901, %v4909
        %v4966 = vmax.f32 %v4965, %v4917
        %v4967 = vmax.f32 %v4966, %v4925
        %v4968 = vrot.slane %v4967, 4
        %v4969 = vmax.f32 %v4967, %v4968
        %v4970 = vrot.slane %v4969, 2
        %v4971 = vmax.f32 %v4969, %v4970
        %v4972 = vrot.slane %v4971, 1
        %v4973 = vmax.f32 %v4971, %v4972
        %v4974 = vmax.f32 %v4902, %v4910
        %v4975 = vmax.f32 %v4974, %v4918
        %v4976 = vmax.f32 %v4975, %v4926
        %v4977 = vrot.slane %v4976, 4
        %v4978 = vmax.f32 %v4976, %v4977
        %v4979 = vrot.slane %v4978, 2
        %v4980 = vmax.f32 %v4978, %v4979
        %v4981 = vrot.slane %v4980, 1
        %v4982 = vmax.f32 %v4980, %v4981
        %v4983 = vmax.f32 %v4903, %v4911
        %v4984 = vmax.f32 %v4983, %v4919
        %v4985 = vmax.f32 %v4984, %v4927
        %v4986 = vrot.slane %v4985, 4
        %v4987 = vmax.f32 %v4985, %v4986
        %v4988 = vrot.slane %v4987, 2
        %v4989 = vmax.f32 %v4987, %v4988
        %v4990 = vrot.slane %v4989, 1
        %v4991 = vmax.f32 %v4989, %v4990
        %v4992 = vmax.f32 %v4904, %v4912
        %v4993 = vmax.f32 %v4992, %v4920
        %v4994 = vmax.f32 %v4993, %v4928
        %v4995 = vrot.slane %v4994, 4
        %v4996 = vmax.f32 %v4994, %v4995
        %v4997 = vrot.slane %v4996, 2
        %v4998 = vmax.f32 %v4996, %v4997
        %v4999 = vrot.slane %v4998, 1
        %v5000 = vmax.f32 %v4998, %v4999
        %v5009 = vrot.slane %v4946, 7
        %v5010 = vrot.slane %v4955, 6
        %v5011 = vrot.slane %v4964, 5
        %v5012 = vrot.slane %v4973, 4
        %v5013 = vrot.slane %v4982, 3
        %v5014 = vrot.slane %v4991, 2
        %v5015 = vrot.slane %v5000, 1
        %v5016 = vsel %vm4881, %v4937, %v5009
        %v5017 = vsel %vm4883, %v5010, %v5011
        %v5018 = vsel %vm4885, %v5016, %v5017
        %v5019 = vsel %vm4887, %v5012, %v5013
        %v5020 = vsel %vm4889, %v5014, %v5015
        %v5021 = vsel %vm4891, %v5019, %v5020
        %v5022 = vsel %vm4893, %v5018, %v5021
        %s5024 = scalar_lea.vmem %s551, 1 [#allocation6]
        %5025 = vst [vmem:[%s5024] ss:$4 sm:$0xff] %v5022
        %v5026 = vsel %vm4758, %v4658, 0.0
        %v5027 = vsel %vm4758, %v4659, 0.0
        %v5028 = vsel %vm4758, %v4660, 0.0
        %v5029 = vsel %vm4758, %v4661, 0.0
        %v5030 = vsel %vm4758, %v4662, 0.0
        %v5031 = vsel %vm4758, %v4663, 0.0
        %v5032 = vsel %vm4758, %v4664, 0.0
        %v5033 = vsel %vm4758, %v4665, 0.0
        %v5034 = vsel %vm4759, %v4666, 0.0
        %v5035 = vsel %vm4759, %v4667, 0.0
        %v5036 = vsel %vm4759, %v4668, 0.0
        %v5037 = vsel %vm4759, %v4669, 0.0
        %v5038 = vsel %vm4759, %v4670, 0.0
        %v5039 = vsel %vm4759, %v4671, 0.0
        %v5040 = vsel %vm4759, %v4672, 0.0
        %v5041 = vsel %vm4759, %v4673, 0.0
        %v5042 = vsel %vm4760, %v4674, 0.0
        %v5043 = vsel %vm4760, %v4675, 0.0
        %v5044 = vsel %vm4760, %v4676, 0.0
        %v5045 = vsel %vm4760, %v4677, 0.0
        %v5046 = vsel %vm4760, %v4678, 0.0
        %v5047 = vsel %vm4760, %v4679, 0.0
        %v5048 = vsel %vm4760, %v4680, 0.0
        %v5049 = vsel %vm4760, %v4681, 0.0
        %v5050 = vsel %vm4761, %v4682, 0.0
        %v5051 = vsel %vm4761, %v4683, 0.0
        %v5052 = vsel %vm4761, %v4684, 0.0
        %v5053 = vsel %vm4761, %v4685, 0.0
        %v5054 = vsel %vm4761, %v4686, 0.0
        %v5055 = vsel %vm4761, %v4687, 0.0
        %v5056 = vsel %vm4761, %v4688, 0.0
        %v5057 = vsel %vm4761, %v4689, 0.0
        %v5058 = vmax.f32 %v5026, %v5034
        %v5059 = vmax.f32 %v5058, %v5042
        %v5060 = vmax.f32 %v5059, %v5050
        %v5061 = vrot.slane %v5060, 4
        %v5062 = vmax.f32 %v5060, %v5061
        %v5063 = vrot.slane %v5062, 2
        %v5064 = vmax.f32 %v5062, %v5063
        %v5065 = vrot.slane %v5064, 1
        %v5066 = vmax.f32 %v5064, %v5065
        %v5067 = vmax.f32 %v5027, %v5035
        %v5068 = vmax.f32 %v5067, %v5043
        %v5069 = vmax.f32 %v5068, %v5051
        %v5070 = vrot.slane %v5069, 4
        %v5071 = vmax.f32 %v5069, %v5070
        %v5072 = vrot.slane %v5071, 2
        %v5073 = vmax.f32 %v5071, %v5072
        %v5074 = vrot.slane %v5073, 1
        %v5075 = vmax.f32 %v5073, %v5074
        %v5076 = vmax.f32 %v5028, %v5036
        %v5077 = vmax.f32 %v5076, %v5044
        %v5078 = vmax.f32 %v5077, %v5052
        %v5079 = vrot.slane %v5078, 4
        %v5080 = vmax.f32 %v5078, %v5079
        %v5081 = vrot.slane %v5080, 2
        %v5082 = vmax.f32 %v5080, %v5081
        %v5083 = vrot.slane %v5082, 1
        %v5084 = vmax.f32 %v5082, %v5083
        %v5085 = vmax.f32 %v5029, %v5037
        %v5086 = vmax.f32 %v5085, %v5045
        %v5087 = vmax.f32 %v5086, %v5053
        %v5088 = vrot.slane %v5087, 4
        %v5089 = vmax.f32 %v5087, %v5088
        %v5090 = vrot.slane %v5089, 2
        %v5091 = vmax.f32 %v5089, %v5090
        %v5092 = vrot.slane %v5091, 1
        %v5093 = vmax.f32 %v5091, %v5092
        %v5094 = vmax.f32 %v5030, %v5038
        %v5095 = vmax.f32 %v5094, %v5046
        %v5096 = vmax.f32 %v5095, %v5054
        %v5097 = vrot.slane %v5096, 4
        %v5098 = vmax.f32 %v5096, %v5097
        %v5099 = vrot.slane %v5098, 2
        %v5100 = vmax.f32 %v5098, %v5099
        %v5101 = vrot.slane %v5100, 1
        %v5102 = vmax.f32 %v5100, %v5101
        %v5103 = vmax.f32 %v5031, %v5039
        %v5104 = vmax.f32 %v5103, %v5047
        %v5105 = vmax.f32 %v5104, %v5055
        %v5106 = vrot.slane %v5105, 4
        %v5107 = vmax.f32 %v5105, %v5106
        %v5108 = vrot.slane %v5107, 2
        %v5109 = vmax.f32 %v5107, %v5108
        %v5110 = vrot.slane %v5109, 1
        %v5111 = vmax.f32 %v5109, %v5110
        %v5112 = vmax.f32 %v5032, %v5040
        %v5113 = vmax.f32 %v5112, %v5048
        %v5114 = vmax.f32 %v5113, %v5056
        %v5115 = vrot.slane %v5114, 4
        %v5116 = vmax.f32 %v5114, %v5115
        %v5117 = vrot.slane %v5116, 2
        %v5118 = vmax.f32 %v5116, %v5117
        %v5119 = vrot.slane %v5118, 1
        %v5120 = vmax.f32 %v5118, %v5119
        %v5121 = vmax.f32 %v5033, %v5041
        %v5122 = vmax.f32 %v5121, %v5049
        %v5123 = vmax.f32 %v5122, %v5057
        %v5124 = vrot.slane %v5123, 4
        %v5125 = vmax.f32 %v5123, %v5124
        %v5126 = vrot.slane %v5125, 2
        %v5127 = vmax.f32 %v5125, %v5126
        %v5128 = vrot.slane %v5127, 1
        %v5129 = vmax.f32 %v5127, %v5128
        %v5138 = vrot.slane %v5075, 7
        %v5139 = vrot.slane %v5084, 6
        %v5140 = vrot.slane %v5093, 5
        %v5141 = vrot.slane %v5102, 4
        %v5142 = vrot.slane %v5111, 3
        %v5143 = vrot.slane %v5120, 2
        %v5144 = vrot.slane %v5129, 1
        %v5145 = vsel %vm4881, %v5066, %v5138
        %v5146 = vsel %vm4883, %v5139, %v5140
        %v5147 = vsel %vm4885, %v5145, %v5146
        %v5148 = vsel %vm4887, %v5141, %v5142
        %v5149 = vsel %vm4889, %v5143, %v5144
        %v5150 = vsel %vm4891, %v5148, %v5149
        %v5151 = vsel %vm4893, %v5147, %v5150
        %s5153 = scalar_lea.vmem %s551, 2 [#allocation6]
        %5154 = vst [vmem:[%s5153] ss:$4 sm:$0xff] %v5151
        %v5155 = vsel %vm4758, %v4722, 0.0
        %v5156 = vsel %vm4758, %v4723, 0.0
        %v5157 = vsel %vm4758, %v4724, 0.0
        %v5158 = vsel %vm4758, %v4725, 0.0
        %v5159 = vsel %vm4758, %v4726, 0.0
        %v5160 = vsel %vm4758, %v4727, 0.0
        %v5161 = vsel %vm4758, %v4728, 0.0
        %v5162 = vsel %vm4758, %v4729, 0.0
        %v5163 = vsel %vm4759, %v4730, 0.0
        %v5164 = vsel %vm4759, %v4731, 0.0
        %v5165 = vsel %vm4759, %v4732, 0.0
        %v5166 = vsel %vm4759, %v4733, 0.0
        %v5167 = vsel %vm4759, %v4734, 0.0
        %v5168 = vsel %vm4759, %v4735, 0.0
        %v5169 = vsel %vm4759, %v4736, 0.0
        %v5170 = vsel %vm4759, %v4737, 0.0
        %v5171 = vsel %vm4760, %v4738, 0.0
        %v5172 = vsel %vm4760, %v4739, 0.0
        %v5173 = vsel %vm4760, %v4740, 0.0
        %v5174 = vsel %vm4760, %v4741, 0.0
        %v5175 = vsel %vm4760, %v4742, 0.0
        %v5176 = vsel %vm4760, %v4743, 0.0
        %v5177 = vsel %vm4760, %v4744, 0.0
        %v5178 = vsel %vm4760, %v4745, 0.0
        %v5179 = vsel %vm4761, %v4746, 0.0
        %v5180 = vsel %vm4761, %v4747, 0.0
        %v5181 = vsel %vm4761, %v4748, 0.0
        %v5182 = vsel %vm4761, %v4749, 0.0
        %v5183 = vsel %vm4761, %v4750, 0.0
        %v5184 = vsel %vm4761, %v4751, 0.0
        %v5185 = vsel %vm4761, %v4752, 0.0
        %v5186 = vsel %vm4761, %v4753, 0.0
        %v5187 = vmax.f32 %v5155, %v5163
        %v5188 = vmax.f32 %v5187, %v5171
        %v5189 = vmax.f32 %v5188, %v5179
        %v5190 = vrot.slane %v5189, 4
        %v5191 = vmax.f32 %v5189, %v5190
        %v5192 = vrot.slane %v5191, 2
        %v5193 = vmax.f32 %v5191, %v5192
        %v5194 = vrot.slane %v5193, 1
        %v5195 = vmax.f32 %v5193, %v5194
        %v5196 = vmax.f32 %v5156, %v5164
        %v5197 = vmax.f32 %v5196, %v5172
        %v5198 = vmax.f32 %v5197, %v5180
        %v5199 = vrot.slane %v5198, 4
        %v5200 = vmax.f32 %v5198, %v5199
        %v5201 = vrot.slane %v5200, 2
        %v5202 = vmax.f32 %v5200, %v5201
        %v5203 = vrot.slane %v5202, 1
        %v5204 = vmax.f32 %v5202, %v5203
        %v5205 = vmax.f32 %v5157, %v5165
        %v5206 = vmax.f32 %v5205, %v5173
        %v5207 = vmax.f32 %v5206, %v5181
        %v5208 = vrot.slane %v5207, 4
        %v5209 = vmax.f32 %v5207, %v5208
        %v5210 = vrot.slane %v5209, 2
        %v5211 = vmax.f32 %v5209, %v5210
        %v5212 = vrot.slane %v5211, 1
        %v5213 = vmax.f32 %v5211, %v5212
        %v5214 = vmax.f32 %v5158, %v5166
        %v5215 = vmax.f32 %v5214, %v5174
        %v5216 = vmax.f32 %v5215, %v5182
        %v5217 = vrot.slane %v5216, 4
        %v5218 = vmax.f32 %v5216, %v5217
        %v5219 = vrot.slane %v5218, 2
        %v5220 = vmax.f32 %v5218, %v5219
        %v5221 = vrot.slane %v5220, 1
        %v5222 = vmax.f32 %v5220, %v5221
        %v5223 = vmax.f32 %v5159, %v5167
        %v5224 = vmax.f32 %v5223, %v5175
        %v5225 = vmax.f32 %v5224, %v5183
        %v5226 = vrot.slane %v5225, 4
        %v5227 = vmax.f32 %v5225, %v5226
        %v5228 = vrot.slane %v5227, 2
        %v5229 = vmax.f32 %v5227, %v5228
        %v5230 = vrot.slane %v5229, 1
        %v5231 = vmax.f32 %v5229, %v5230
        %v5232 = vmax.f32 %v5160, %v5168
        %v5233 = vmax.f32 %v5232, %v5176
        %v5234 = vmax.f32 %v5233, %v5184
        %v5235 = vrot.slane %v5234, 4
        %v5236 = vmax.f32 %v5234, %v5235
        %v5237 = vrot.slane %v5236, 2
        %v5238 = vmax.f32 %v5236, %v5237
        %v5239 = vrot.slane %v5238, 1
        %v5240 = vmax.f32 %v5238, %v5239
        %v5241 = vmax.f32 %v5161, %v5169
        %v5242 = vmax.f32 %v5241, %v5177
        %v5243 = vmax.f32 %v5242, %v5185
        %v5244 = vrot.slane %v5243, 4
        %v5245 = vmax.f32 %v5243, %v5244
        %v5246 = vrot.slane %v5245, 2
        %v5247 = vmax.f32 %v5245, %v5246
        %v5248 = vrot.slane %v5247, 1
        %v5249 = vmax.f32 %v5247, %v5248
        %v5250 = vmax.f32 %v5162, %v5170
        %v5251 = vmax.f32 %v5250, %v5178
        %v5252 = vmax.f32 %v5251, %v5186
        %v5253 = vrot.slane %v5252, 4
        %v5254 = vmax.f32 %v5252, %v5253
        %v5255 = vrot.slane %v5254, 2
        %v5256 = vmax.f32 %v5254, %v5255
        %v5257 = vrot.slane %v5256, 1
        %v5258 = vmax.f32 %v5256, %v5257
        %v5267 = vrot.slane %v5204, 7
        %v5268 = vrot.slane %v5213, 6
        %v5269 = vrot.slane %v5222, 5
        %v5270 = vrot.slane %v5231, 4
        %v5271 = vrot.slane %v5240, 3
        %v5272 = vrot.slane %v5249, 2
        %v5273 = vrot.slane %v5258, 1
        %v5274 = vsel %vm4881, %v5195, %v5267
        %v5275 = vsel %vm4883, %v5268, %v5269
        %v5276 = vsel %vm4885, %v5274, %v5275
        %v5277 = vsel %vm4887, %v5270, %v5271
        %v5278 = vsel %vm4889, %v5272, %v5273
        %v5279 = vsel %vm4891, %v5277, %v5278
        %v5280 = vsel %vm4893, %v5276, %v5279
        %s5282 = scalar_lea.vmem %s551, 3 [#allocation6]
        %5283 = vst [vmem:[%s5282] ss:$4 sm:$0xff] %v5280
        %s5284 = sand.u32 %s314, 1
        %s5285 = scalar_lea.sflag [#allocation5], %s5284
        %s5286 = sand.u32 %s314, 1
        %s5287 = smul.addr %s5286, 32
        %s5288 = scalar_lea.vmem [#allocation6], %s5287
        // Predicated region
        $region115: #{tpu_custom_call.1} parent=105 // pred_check
          %p5289 = pneg %p324
        $region116: #{tpu_custom_call.1} parent=105 // pred_check_branch
          %5291 = sbr.rel (%p5289) target = $region118
        $region117: #{tpu_custom_call.1} parent=105 // pred_region
          %5293 = vsyncadd %s5285, 0
          %s5294 = smul.addr %s28, 8
          %s5295 = smul.addr %s5294, 4
          %s5296 = scalar_lea.hbm %s13, %s5295
          %s5298 = sshll.u32 %s5288, 4
          %s5299 = int_to_ptr.vmem [resolvable:$true] %s5298
          %s5300 = sshll.u32 %s5296, 4
          %s5301 = int_to_ptr.hbm [resolvable:$true] %s5300
          %5303 = dma.vmem_to_hbm [thread:$0]  %s5299, 512, %s5301, %s5285
        $region118: #{tpu_custom_call.1} parent=105 // pred_fallthru
          _
      $region106: #{tpu_custom_call.1} parent=5 // pred_fallthru
        _
      %p5304 = scmp.le.s32.totalorder 2, %s23
      // Predicated region
      $region119: #{tpu_custom_call.1} parent=5 // pred_check
        %p5305 = pneg %p5304
      $region120: #{tpu_custom_call.1} parent=5 // pred_check_branch
        %5307 = sbr.rel (%p5305) target = $region122
      $region121: #{tpu_custom_call.1} parent=5 // pred_region
        %s5308 = ssub.s32 %s23, 2
        // Predicated region
        $region123: #{tpu_custom_call.1} parent=121 // pred_check
          %p5309 = pneg %p330
        $region124: #{tpu_custom_call.1} parent=121 // pred_check_branch
          %5311 = sbr.rel (%p5309) target = $region126
        $region125: #{tpu_custom_call.1} parent=121 // pred_region
          %s5312 = sand.u32 %s315, 1
          %s5313 = scalar_lea.sflag [#allocation5], %s5312
          %s5314 = sand.u32 %s315, 1
          %s5315 = smul.addr %s5314, 32
          %s5316 = scalar_lea.vmem [#allocation6], %s5315
          %5318 = dma.done %s5313, 512
        $region126: #{tpu_custom_call.1} parent=121 // pred_fallthru
          _
      $region122: #{tpu_custom_call.1} parent=5 // pred_fallthru
        _
    $region6: #{tpu_custom_call.1} parent=1 // loop_footer
      %s27 = sadd.s32 1, %s23
    $region7: #{tpu_custom_call.1} parent=1 // loop_footer_branch
      %22 = sbr.rel target = $region3
    $region8: #{tpu_custom_call.1} parent=1 // loop_exit
      _
    %5319 = vsyncpa [#allocation4], 1
    %s5320 = scalar_lea.sflag [#allocation4], 1
    %5321 = vsyncpa %s5320, 1
    %5322 = vsyncpa [#allocation5], 1
    %s5323 = scalar_lea.sflag [#allocation5], 1
    %5324 = vsyncpa %s5323, 1

</llo_original>
